<compile_context>
chip_gen: v7x
topology: tpu7x:2x2x1
jax: 0.10.0
libtpu: 0.0.40
codegen_flags: <defaults>
</compile_context>

<pallas_src>
import jax
import jax.numpy as jnp
from jax.experimental import pallas as pl
from jax.experimental.pallas import tpu as pltpu

HIDDEN = 1024
N_ACTIONS = 4
N_PAD = 128                      # lane-dense padded output width
BN_EPS = 1e-5

K_TILE_CAP = 2048                # feedback #3: 512 was too conservative
RESIDENT_W1_BYTES = 8 * 1024 * 1024   # bf16 w1 kept VMEM-resident up to 8 MiB
_X_BLOCK_BYTES = 4 * 1024 * 1024      # f32 x-tile budget (double-buffered)
VMEM_LIMIT_BYTES = 48 * 1024 * 1024   # < v7x 64 MiB physical, >> v5e 16 MiB scope
STATS_ROWS = 8                   # per-tile BN stats padded to an 8-sublane tile


def _round_up(x, m):
    return ((x + m - 1) // m) * m


def _pick_batch_tile(batch, d_pad):
    """Batch tile: multiple of 8 dividing `batch`, capped so the f32 x block
    stays within _X_BLOCK_BYTES, and (for batch >= 256) giving >= 2 tiles so
    the 'parallel' grid axis spans both v7x TensorCores (feedback #6)."""
    if batch <= 8 or batch % 8 != 0:
        return batch                      # tiny / awkward batch: one block
    cap = max(8, (_X_BLOCK_BYTES // (4 * d_pad)) // 8 * 8)
    start = batch // 2 if batch >= 256 else batch
    bt = min(cap, start)
    bt -= bt % 8
    while bt >= 8:
        if batch % bt == 0:
            return bt
        bt -= 8
    return batch


# --------------------------------------------------------------------------
# Parameter preparation (done once; cached across forward calls; feedback #2)
# --------------------------------------------------------------------------
def prepare_params(params, *, max_resident_w1_bytes=RESIDENT_W1_BYTES,
                   k_tile=None):
    """Cast + pad the weights once.  w1 -> bf16 (K padded); w2/b2 -> lane-dense
    128-wide padding (extra columns are exact zeros); b1/gamma/beta as (1,H)
    f32 rows.  Also records the K-tiling plan (resident vs tiled)."""
    w1 = jnp.asarray(params["w1"], jnp.float32)
    d = w1.shape[0]
    d128 = _round_up(d, 128)
    if k_tile is not None:                          # testing / manual override
        tk = max(128, _round_up(min(k_tile, d128), 128))
        d_pad = _round_up(d128, tk)
        nk = d_pad // tk
    elif d128 * HIDDEN * 2 <= max_resident_w1_bytes:
        tk, d_pad, nk = d128, d128, 1               # w1 fully VMEM-resident (#1)
    else:
        nk = -(-d128 // K_TILE_CAP)
        tk = _round_up(-(-d128 // nk), 128)
        d_pad = tk * nk

    w1_bf = w1.astype(jnp.bfloat16)
    if d_pad != d:
        w1_bf = jnp.pad(w1_bf, ((0, d_pad - d), (0, 0)))
    w2_bf = jnp.pad(jnp.asarray(params["w2"], jnp.float32).astype(jnp.bfloat16),
                    ((0, 0), (0, N_PAD - N_ACTIONS)))
    b2_p = jnp.pad(jnp.asarray(params["b2"], jnp.float32).reshape(1, N_ACTIONS),
                   ((0, 0), (0, N_PAD - N_ACTIONS)))
    return {
        "w1": w1_bf,
        "b1": jnp.asarray(params["b1"], jnp.float32).reshape(1, HIDDEN),
        "gamma": jnp.asarray(params["gamma"], jnp.float32).reshape(1, HIDDEN),
        "beta": jnp.asarray(params["beta"], jnp.float32).reshape(1, HIDDEN),
        "w2": w2_bf,
        "b2": b2_p,
        "d": d, "d_pad": d_pad, "tk": tk, "nk": nk,
    }


# --------------------------------------------------------------------------
# Kernels
# --------------------------------------------------------------------------
def _make_fused_kernel(use_bn, k_tiled):
    """Fused dense1 [+ whole-batch BN] + ReLU + dense2."""

    def epilogue(h, gamma_ref, beta_ref, w2_ref, b2_ref, o_ref):
        if use_bn:
            # Whole batch lives in this block -> exact two-pass batch stats
            # (training-mode BatchNorm1d, biased variance).
            mean = jnp.mean(h, axis=0, keepdims=True)
            var = jnp.mean(jnp.square(h - mean), axis=0, keepdims=True)
            h = (gamma_ref[...] * (h - mean) * jax.lax.rsqrt(var + BN_EPS)
                 + beta_ref[...])
        h = jnp.maximum(h, 0.0)
        # dense2 into a lane-dense 128-wide tile (cols >= N_ACTIONS are zero).
        o_ref[...] = (jnp.dot(h.astype(jnp.bfloat16), w2_ref[...],
                              preferred_element_type=jnp.float32)
                      + b2_ref[...]).astype(o_ref.dtype)

    if k_tiled:
        def kernel(*refs):
            if use_bn:
                (x_ref, w1_ref, b1_ref, gamma_ref, beta_ref,
                 w2_ref, b2_ref, o_ref, acc_ref) = refs
            else:
                (x_ref, w1_ref, b1_ref, w2_ref, b2_ref, o_ref, acc_ref) = refs
                gamma_ref = beta_ref = None
            k = pl.program_id(1)

            @pl.when(k == 0)
            def _():
                # Fold b1 into the accumulator init (feedback #8).
                acc_ref[...] = jnp.broadcast_to(b1_ref[...], acc_ref.shape)

            acc_ref[...] += jnp.dot(x_ref[...].astype(jnp.bfloat16), w1_ref[...],
                                    preferred_element_type=jnp.float32)

            @pl.when(k == pl.num_programs(1) - 1)
            def _():
                epilogue(acc_ref[...], gamma_ref, beta_ref, w2_ref, b2_ref, o_ref)
    else:
        def kernel(*refs):
            if use_bn:
                (x_ref, w1_ref, b1_ref, gamma_ref, beta_ref,
                 w2_ref, b2_ref, o_ref) = refs
            else:
                (x_ref, w1_ref, b1_ref, w2_ref, b2_ref, o_ref) = refs
                gamma_ref = beta_ref = None
            # Resident w1: no K axis, no accumulator scratch (feedback #1);
            # x is f32 in HBM, cast to bf16 per-tile here (feedback #2).
            h = (jnp.dot(x_ref[...].astype(jnp.bfloat16), w1_ref[...],
                         preferred_element_type=jnp.float32) + b1_ref[...])
            epilogue(h, gamma_ref, beta_ref, w2_ref, b2_ref, o_ref)

    return kernel


def _stage_a_epilogue(acc, b1_ref, h_ref, stats_ref):
    """Write h = acc + b1 and robust per-tile statistics of the pre-bias
    activations (per-tile two-pass; combined across tiles in the wrapper)."""
    h_ref[...] = acc + b1_ref[...]
    mean_t = jnp.mean(acc, axis=0, keepdims=True)
    m2_t = jnp.sum(jnp.square(acc - mean_t), axis=0, keepdims=True)
    stats_ref[...] = jnp.concatenate(
        [mean_t, m2_t, jnp.zeros((STATS_ROWS - 2, acc.shape[1]), jnp.float32)],
        axis=0)


def _make_stage_a_kernel(k_tiled):
    """Tiled-BN stage A: hidden pre-activation + per-batch-tile BN statistics."""
    if k_tiled:
        def kernel(x_ref, w1_ref, b1_ref, h_ref, stats_ref, acc_ref):
            k = pl.program_id(1)

            @pl.when(k == 0)
            def _():
                acc_ref[...] = jnp.zeros_like(acc_ref)

            acc_ref[...] += jnp.dot(x_ref[...].astype(jnp.bfloat16), w1_ref[...],
                                    preferred_element_type=jnp.float32)

            @pl.when(k == pl.num_programs(1) - 1)
            def _():
                _stage_a_epilogue(acc_ref[...], b1_ref, h_ref, stats_ref)
    else:
        def kernel(x_ref, w1_ref, b1_ref, h_ref, stats_ref):
            acc = jnp.dot(x_ref[...].astype(jnp.bfloat16), w1_ref[...],
                          preferred_element_type=jnp.float32)
            _stage_a_epilogue(acc, b1_ref, h_ref, stats_ref)
    return kernel


def _stage_b_kernel(h_ref, scale_ref, offset_ref, w2_ref, b2_ref, o_ref):
    """Tiled-BN stage B: affine-normalize + ReLU + dense2 (batch-parallel)."""
    h = jnp.maximum(h_ref[...] * scale_ref[...] + offset_ref[...], 0.0)
    o_ref[...] = (jnp.dot(h.astype(jnp.bfloat16), w2_ref[...],
                          preferred_element_type=jnp.float32)
                  + b2_ref[...]).astype(o_ref.dtype)


# --------------------------------------------------------------------------
# Forward wrappers
# --------------------------------------------------------------------------
def _compiler_params(sem):
    return pltpu.CompilerParams(dimension_semantics=sem,
                                vmem_limit_bytes=VMEM_LIMIT_BYTES)


def _forward_fused(x2d, p, batch, bt, use_bn):
    d_pad, tk, nk = p["d_pad"], p["tk"], p["nk"]
    nb = batch // bt
    k_tiled = nk > 1

    if k_tiled:
        grid = (nb, nk)
        x_spec = pl.BlockSpec((bt, tk), lambda bi, ki: (bi, ki))
        w1_spec = pl.BlockSpec((tk, HIDDEN), lambda bi, ki: (ki, 0))
        const = lambda bi, ki: (0, 0)
        out_spec = pl.BlockSpec((bt, N_PAD), lambda bi, ki: (bi, 0))
        scratch = [pltpu.VMEM((bt, HIDDEN), jnp.float32)]
        sem = ("parallel", "arbitrary")
    else:
        grid = (nb,)
        x_spec = pl.BlockSpec((bt, d_pad), lambda bi: (bi, 0))
        w1_spec = pl.BlockSpec((d_pad, HIDDEN), lambda bi: (0, 0))   # resident
        const = lambda bi: (0, 0)
        out_spec = pl.BlockSpec((bt, N_PAD), lambda bi: (bi, 0))
        scratch = []
        sem = ("parallel",)

    in_specs = [x_spec, w1_spec, pl.BlockSpec((1, HIDDEN), const)]
    args = [x2d, p["w1"], p["b1"]]
    if use_bn:
        in_specs += [pl.BlockSpec((1, HIDDEN), const),
                     pl.BlockSpec((1, HIDDEN), const)]
        args += [p["gamma"], p["beta"]]
    in_specs += [pl.BlockSpec((HIDDEN, N_PAD), const),
                 pl.BlockSpec((1, N_PAD), const)]
    args += [p["w2"], p["b2"]]

    out = pl.pallas_call(
        _make_fused_kernel(use_bn, k_tiled),
        out_shape=jax.ShapeDtypeStruct((batch, N_PAD), jnp.float32),
        grid=grid,
        in_specs=in_specs,
        out_specs=out_spec,
        scratch_shapes=scratch,
        compiler_params=_compiler_params(sem),
    )(*args)
    return out[:, :N_ACTIONS]


def _forward_bn_tiled(x2d, p, batch, bt):
    """Batch-tiled BatchNorm path (feedback #4/#5): two batch-parallel calls."""
    d_pad, tk, nk = p["d_pad"], p["tk"], p["nk"]
    nb = batch // bt
    k_tiled = nk > 1

    # ---- stage A: h = x @ w1 + b1 and per-tile statistics ----
    if k_tiled:
        grid = (nb, nk)
        x_spec = pl.BlockSpec((bt, tk), lambda bi, ki: (bi, ki))
        w1_spec = pl.BlockSpec((tk, HIDDEN), lambda bi, ki: (ki, 0))
        b1_spec = pl.BlockSpec((1, HIDDEN), lambda bi, ki: (0, 0))
        h_spec = pl.BlockSpec((bt, HIDDEN), lambda bi, ki: (bi, 0))
        st_spec = pl.BlockSpec((STATS_ROWS, HIDDEN), lambda bi, ki: (bi, 0))
        scratch = [pltpu.VMEM((bt, HIDDEN), jnp.float32)]
        sem = ("parallel", "arbitrary")
    else:
        grid = (nb,)
        x_spec = pl.BlockSpec((bt, d_pad), lambda bi: (bi, 0))
        w1_spec = pl.BlockSpec((d_pad, HIDDEN), lambda bi: (0, 0))
        b1_spec = pl.BlockSpec((1, HIDDEN), lambda bi: (0, 0))
        h_spec = pl.BlockSpec((bt, HIDDEN), lambda bi: (bi, 0))
        st_spec = pl.BlockSpec((STATS_ROWS, HIDDEN), lambda bi: (bi, 0))
        scratch = []
        sem = ("parallel",)

    h, stats = pl.pallas_call(
        _make_stage_a_kernel(k_tiled),
        out_shape=(jax.ShapeDtypeStruct((batch, HIDDEN), jnp.float32),
                   jax.ShapeDtypeStruct((STATS_ROWS * nb, HIDDEN), jnp.float32)),
        grid=grid,
        in_specs=[x_spec, w1_spec, b1_spec],
        out_specs=(h_spec, st_spec),
        scratch_shapes=scratch,
        compiler_params=_compiler_params(sem),
    )(x2d, p["w1"], p["b1"])

    # ---- combine per-tile stats (tiny (nb, H) arrays; plain JAX) ----
    stats = stats.reshape(nb, STATS_ROWS, HIDDEN)
    tile_mean = stats[:, 0, :]            # per-tile mean of (h - b1)
    tile_m2 = stats[:, 1, :]              # per-tile sum of squared deviations
    mean_shift = jnp.mean(tile_mean, axis=0)
    var = (jnp.sum(tile_m2, axis=0)
           + bt * jnp.sum(jnp.square(tile_mean - mean_shift), axis=0)) / batch
    mean = mean_shift + p["b1"][0]
    scale = (p["gamma"][0] * jax.lax.rsqrt(var + BN_EPS)).reshape(1, HIDDEN)
    offset = (p["beta"][0] - mean * scale[0]).reshape(1, HIDDEN)

    # ---- stage B: normalize + ReLU + dense2 (batch-parallel) ----
    const = lambda bi: (0, 0)
    out = pl.pallas_call(
        _stage_b_kernel,
        out_shape=jax.ShapeDtypeStruct((batch, N_PAD), jnp.float32),
        grid=(nb,),
        in_specs=[pl.BlockSpec((bt, HIDDEN), lambda bi: (bi, 0)),
                  pl.BlockSpec((1, HIDDEN), const),
                  pl.BlockSpec((1, HIDDEN), const),
                  pl.BlockSpec((HIDDEN, N_PAD), const),
                  pl.BlockSpec((1, N_PAD), const)],
        out_specs=pl.BlockSpec((bt, N_PAD), lambda bi: (bi, 0)),
        compiler_params=_compiler_params(("parallel",)),
    )(h, scale, offset, p["w2"], p["b2"])
    return out[:, :N_ACTIONS]


def mlp_dqn_forward(x, params, *, use_batch_norm):
    """Forward pass of MlpDQN.

    x: any shape (B, ...); flattened to (B, input_dim) like the PyTorch module.
    params: either the raw f32 dict (w1 (D,1024), b1, gamma, beta, w2 (1024,4),
            b2) or the cached output of prepare_params() (recommended: prepare
            once per parameter update, not per forward call).
    """
    prepared = params if "d_pad" in params else prepare_params(params)
    batch = x.shape[0]
    x2d = x.reshape(batch, -1).astype(jnp.float32)
    d = x2d.shape[1]
    if d != prepared["d"]:
        raise ValueError(f"input_dim mismatch: x has {d}, params have "
                         f"{prepared['d']}")
    d_pad = prepared["d_pad"]
    if d_pad != d:
        x2d = jnp.pad(x2d, ((0, 0), (0, d_pad - d)))

    bt = _pick_batch_tile(batch, d_pad)
    if use_batch_norm:
        if bt < batch:                    # batch large enough: tiled-BN path
            return _forward_bn_tiled(x2d, prepared, batch, bt)
        # Small / awkward batch: whole batch in one block, exact two-pass BN.
        return _forward_fused(x2d, prepared, batch, batch, True)
    return _forward_fused(x2d, prepared, batch, bt, False)


# --------------------------------------------------------------------------
# Parameters + pure-JAX reference
# --------------------------------------------------------------------------
def init_params(key, input_dim):
    """nn.Linear-style U(-1/sqrt(fan_in), +1/sqrt(fan_in)) init, weights stored
    transposed (fan_in, fan_out); BatchNorm1d affine params at their defaults."""
    k1, k2, k3, k4 = jax.random.split(key, 4)
    bound1 = 1.0 / jnp.sqrt(jnp.float32(input_dim))
    bound2 = 1.0 / jnp.sqrt(jnp.float32(HIDDEN))
    return {
        "w1": jax.random.uniform(k1, (input_dim, HIDDEN), jnp.float32,
                                 -bound1, bound1),
        "b1": jax.random.uniform(k2, (HIDDEN,), jnp.float32, -bound1, bound1),
        "gamma": jnp.ones((HIDDEN,), jnp.float32),
        "beta": jnp.zeros((HIDDEN,), jnp.float32),
        "w2": jax.random.uniform(k3, (HIDDEN, N_ACTIONS), jnp.float32,
                                 -bound2, bound2),
        "b2": jax.random.uniform(k4, (N_ACTIONS,), jnp.float32,
                                 -bound2, bound2),
    }


def _reference_forward(x, params, *, use_batch_norm):
    """Pure-JAX reference matching the PyTorch forward (training-mode BN),
    using the same bf16-in / f32-accumulate matmul precision as the kernel."""
    b = x.shape[0]
    x2d = x.reshape(b, -1).astype(jnp.float32)
    h = jnp.dot(x2d.astype(jnp.bfloat16), params["w1"].astype(jnp.bfloat16),
                preferred_element_type=jnp.float32) + params["b1"]
    if use_batch_norm:
        mean = jnp.mean(h, axis=0, keepdims=True)
        var = jnp.mean((h - mean) ** 2, axis=0, keepdims=True)
        h = params["gamma"] * (h - mean) / jnp.sqrt(var + BN_EPS) + params["beta"]
    h = jnp.maximum(h, 0.0)
    return jnp.dot(h.astype(jnp.bfloat16), params["w2"].astype(jnp.bfloat16),
                   preferred_element_type=jnp.float32) + params["b2"]


if __name__ == "__main__":
    key = jax.random.PRNGKey(0)
    kx, kp, kx2, kp2 = jax.random.split(key, 4)

    # --- Case 1: DQN-style obs (2,4,16,16) -> D=1024; resident-w1 path. ---
    B, C, Hs, Ws = 2, 4, 16, 16
    input_dim = C * Hs * Ws                     # 1024
    x = jax.random.normal(kx, (B, C, Hs, Ws), jnp.float32)
    params = init_params(kp, input_dim)
    prepared = prepare_params(params)           # cast/pad ONCE, reuse below
    assert prepared["nk"] == 1                  # w1 fully VMEM-resident

    for use_bn in (True, False):
        out = jax.block_until_ready(
            mlp_dqn_forward(x, prepared, use_batch_norm=use_bn))
        ref = _reference_forward(x, params, use_batch_norm=use_bn)
        assert out.shape == (B, N_ACTIONS)
        assert jnp.allclose(out, ref, atol=1e-2, rtol=1e-2), (use_bn, out, ref)

    # --- Case 2: force the K-tiled accumulator fallback (the path large
    #     input_dim would take) on the same small problem. ---
    prepared_kt = prepare_params(params, k_tile=512)
    assert prepared_kt["nk"] == 2
    for use_bn in (True, False):
        out = jax.block_until_ready(
            mlp_dqn_forward(x, prepared_kt, use_batch_norm=use_bn))
        ref = _reference_forward(x, params, use_batch_norm=use_bn)
        assert jnp.allclose(out, ref, atol=1e-2, rtol=1e-2), (use_bn, out, ref)

    # --- Case 3: batch=256 -> batch-parallel grid (megacore) and the
    #     two-stage tiled-BatchNorm path. ---
    B2, D2 = 256, 128
    x2 = jax.random.normal(kx2, (B2, D2), jnp.float32)
    params2 = init_params(kp2, D2)
    prepared2 = prepare_params(params2)
    for use_bn in (True, False):
        out = jax.block_until_ready(
            mlp_dqn_forward(x2, prepared2, use_batch_norm=use_bn))
        ref = _reference_forward(x2, params2, use_batch_norm=use_bn)
        assert out.shape == (B2, N_ACTIONS)
        assert jnp.allclose(out, ref, atol=1e-2, rtol=1e-2), (use_bn,)

    print("KERNEL_OK")
</pallas_src>

<mosaic_0001>
module attributes {stable_mosaic.version = 11 : i64} {
  func.func @kernel(%arg0: i32, %arg1: memref<2x1024xf32, #tpu.memory_space<vmem>>, %arg2: memref<1024x1024xbf16, #tpu.memory_space<vmem>>, %arg3: memref<1x1024xf32, #tpu.memory_space<vmem>>, %arg4: memref<1x1024xf32, #tpu.memory_space<vmem>>, %arg5: memref<1x1024xf32, #tpu.memory_space<vmem>>, %arg6: memref<1024x128xbf16, #tpu.memory_space<vmem>>, %arg7: memref<1x128xf32, #tpu.memory_space<vmem>>, %arg8: memref<2x128xf32, #tpu.memory_space<vmem>>) attributes {dimension_semantics = [#tpu.dimension_semantics<parallel>], iteration_bounds = array<i64: 1>, scalar_prefetch = 0 : i64, scratch_operands = 0 : i64, tpu.core_type = #tpu.core_type<tc>, window_params = [{transform_indices = @transform_0, window_bounds = array<i64: 2, 1024>}, {pipeline_mode = #tpu.pipeline_mode<synchronous>, transform_indices = @transform_1, window_bounds = array<i64: 1024, 1024>}, {pipeline_mode = #tpu.pipeline_mode<synchronous>, transform_indices = @transform_2, window_bounds = array<i64: 1, 1024>}, {pipeline_mode = #tpu.pipeline_mode<synchronous>, transform_indices = @transform_3, window_bounds = array<i64: 1, 1024>}, {pipeline_mode = #tpu.pipeline_mode<synchronous>, transform_indices = @transform_4, window_bounds = array<i64: 1, 1024>}, {pipeline_mode = #tpu.pipeline_mode<synchronous>, transform_indices = @transform_5, window_bounds = array<i64: 1024, 128>}, {pipeline_mode = #tpu.pipeline_mode<synchronous>, transform_indices = @transform_6, window_bounds = array<i64: 1, 128>}, {transform_indices = @transform_7, window_bounds = array<i64: 2, 128>}]} {
    %c0 = arith.constant 0 : index
    %c0_0 = arith.constant 0 : index
    %0 = vector.load %arg1[%c0, %c0_0] : memref<2x1024xf32, #tpu.memory_space<vmem>>, vector<2x1024xf32>
    %1 = arith.truncf %0 : vector<2x1024xf32> to vector<2x1024xbf16>
    %c0_1 = arith.constant 0 : index
    %c0_2 = arith.constant 0 : index
    %2 = vector.load %arg2[%c0_1, %c0_2] : memref<1024x1024xbf16, #tpu.memory_space<vmem>>, vector<1024x1024xbf16>
    %cst = arith.constant dense<0.000000e+00> : vector<2x1024xf32>
    %3 = tpu.matmul %1, %2, %cst {dimension_numbers = #tpu.dot_dimension_numbers<[1], [0], [0], [1], [0, 0, 1, 1], [], []>} : vector<2x1024xbf16>, vector<1024x1024xbf16>, vector<2x1024xf32> -> vector<2x1024xf32>
    %c0_3 = arith.constant 0 : index
    %c0_4 = arith.constant 0 : index
    %4 = vector.load %arg3[%c0_3, %c0_4] : memref<1x1024xf32, #tpu.memory_space<vmem>>, vector<1x1024xf32>
    %5 = vector.broadcast %4 : vector<1x1024xf32> to vector<2x1024xf32>
    %6 = arith.addf %3, %5 : vector<2x1024xf32>
    %cst_5 = arith.constant dense<0.000000e+00> : vector<1024xf32>
    %7 = vector.multi_reduction <add>, %6, %cst_5 [0] : vector<2x1024xf32> to vector<1024xf32>
    %8 = vector.shape_cast %7 : vector<1024xf32> to vector<1x1024xf32>
    %cst_6 = arith.constant 2.000000e+00 : f32
    %9 = vector.broadcast %cst_6 : f32 to vector<1x1024xf32>
    %10 = arith.divf %8, %9 : vector<1x1024xf32>
    %11 = vector.broadcast %10 : vector<1x1024xf32> to vector<2x1024xf32>
    %12 = arith.subf %6, %11 : vector<2x1024xf32>
    %13 = arith.mulf %12, %12 : vector<2x1024xf32>
    %cst_7 = arith.constant dense<0.000000e+00> : vector<1024xf32>
    %14 = vector.multi_reduction <add>, %13, %cst_7 [0] : vector<2x1024xf32> to vector<1024xf32>
    %15 = vector.shape_cast %14 : vector<1024xf32> to vector<1x1024xf32>
    %cst_8 = arith.constant 2.000000e+00 : f32
    %16 = vector.broadcast %cst_8 : f32 to vector<1x1024xf32>
    %17 = arith.divf %15, %16 : vector<1x1024xf32>
    %c0_9 = arith.constant 0 : index
    %c0_10 = arith.constant 0 : index
    %18 = vector.load %arg4[%c0_9, %c0_10] : memref<1x1024xf32, #tpu.memory_space<vmem>>, vector<1x1024xf32>
    %19 = vector.broadcast %10 : vector<1x1024xf32> to vector<2x1024xf32>
    %20 = arith.subf %6, %19 : vector<2x1024xf32>
    %21 = vector.broadcast %18 : vector<1x1024xf32> to vector<2x1024xf32>
    %22 = arith.mulf %21, %20 : vector<2x1024xf32>
    %cst_11 = arith.constant 9.99999974E-6 : f32
    %23 = vector.broadcast %cst_11 : f32 to vector<1x1024xf32>
    %24 = arith.addf %17, %23 : vector<1x1024xf32>
    %25 = math.rsqrt %24 : vector<1x1024xf32>
    %26 = vector.broadcast %25 : vector<1x1024xf32> to vector<2x1024xf32>
    %27 = arith.mulf %22, %26 : vector<2x1024xf32>
    %c0_12 = arith.constant 0 : index
    %c0_13 = arith.constant 0 : index
    %28 = vector.load %arg5[%c0_12, %c0_13] : memref<1x1024xf32, #tpu.memory_space<vmem>>, vector<1x1024xf32>
    %29 = vector.broadcast %28 : vector<1x1024xf32> to vector<2x1024xf32>
    %30 = arith.addf %27, %29 : vector<2x1024xf32>
    %cst_14 = arith.constant 0.000000e+00 : f32
    %31 = vector.broadcast %cst_14 : f32 to vector<2x1024xf32>
    %32 = arith.maximumf %30, %31 : vector<2x1024xf32>
    %33 = arith.truncf %32 : vector<2x1024xf32> to vector<2x1024xbf16>
    %c0_15 = arith.constant 0 : index
    %c0_16 = arith.constant 0 : index
    %34 = vector.load %arg6[%c0_15, %c0_16] : memref<1024x128xbf16, #tpu.memory_space<vmem>>, vector<1024x128xbf16>
    %cst_17 = arith.constant dense<0.000000e+00> : vector<2x128xf32>
    %35 = tpu.matmul %33, %34, %cst_17 {dimension_numbers = #tpu.dot_dimension_numbers<[1], [0], [0], [1], [0, 0, 1, 1], [], []>} : vector<2x1024xbf16>, vector<1024x128xbf16>, vector<2x128xf32> -> vector<2x128xf32>
    %c0_18 = arith.constant 0 : index
    %c0_19 = arith.constant 0 : index
    %36 = vector.load %arg7[%c0_18, %c0_19] : memref<1x128xf32, #tpu.memory_space<vmem>>, vector<1x128xf32>
    %37 = vector.broadcast %36 : vector<1x128xf32> to vector<2x128xf32>
    %38 = arith.addf %35, %37 : vector<2x128xf32>
    %c0_20 = arith.constant 0 : index
    %c0_21 = arith.constant 0 : index
    %39 = vector.load %arg8[%c0_20, %c0_21] : memref<2x128xf32, #tpu.memory_space<vmem>>, vector<2x128xf32>
    tpu.vector_store %arg8[%c0_20, %c0_21], %38 {strides = array<i32>} : memref<2x128xf32, #tpu.memory_space<vmem>>, vector<2x128xf32>,
    return
  }
  func.func @transform_0(%arg0: i32) -> (i32, i32) {
    %c0_i32 = arith.constant 0 : i32
    %c0_i32_0 = arith.constant 0 : i32
    return %arg0, %c0_i32 : i32, i32
  }
  func.func @transform_1(%arg0: i32) -> (i32, i32) {
    %c0_i32 = arith.constant 0 : i32
    %c0_i32_0 = arith.constant 0 : i32
    %c0_i32_1 = arith.constant 0 : i32
    return %c0_i32, %c0_i32_0 : i32, i32
  }
  func.func @transform_2(%arg0: i32) -> (i32, i32) {
    %c0_i32 = arith.constant 0 : i32
    %c0_i32_0 = arith.constant 0 : i32
    %c0_i32_1 = arith.constant 0 : i32
    return %c0_i32, %c0_i32_0 : i32, i32
  }
  func.func @transform_3(%arg0: i32) -> (i32, i32) {
    %c0_i32 = arith.constant 0 : i32
    %c0_i32_0 = arith.constant 0 : i32
    %c0_i32_1 = arith.constant 0 : i32
    return %c0_i32, %c0_i32_0 : i32, i32
  }
  func.func @transform_4(%arg0: i32) -> (i32, i32) {
    %c0_i32 = arith.constant 0 : i32
    %c0_i32_0 = arith.constant 0 : i32
    %c0_i32_1 = arith.constant 0 : i32
    return %c0_i32, %c0_i32_0 : i32, i32
  }
  func.func @transform_5(%arg0: i32) -> (i32, i32) {
    %c0_i32 = arith.constant 0 : i32
    %c0_i32_0 = arith.constant 0 : i32
    %c0_i32_1 = arith.constant 0 : i32
    return %c0_i32, %c0_i32_0 : i32, i32
  }
  func.func @transform_6(%arg0: i32) -> (i32, i32) {
    %c0_i32 = arith.constant 0 : i32
    %c0_i32_0 = arith.constant 0 : i32
    %c0_i32_1 = arith.constant 0 : i32
    return %c0_i32, %c0_i32_0 : i32, i32
  }
  func.func @transform_7(%arg0: i32) -> (i32, i32) {
    %c0_i32 = arith.constant 0 : i32
    %c0_i32_0 = arith.constant 0 : i32
    return %arg0, %c0_i32 : i32, i32
  }
}

</mosaic_0001>

<llo_original>
// kernel: tpu_custom_call.1
$region0: #{tpu_custom_call.1}
  #allocation0 [shape = 'u32[]', space=smem, size = 0x4, offset = 0x4, fixed_abs, tag = 'smem constant byte address 0x4 - core index']
  #allocation1 [shape = 'u32[144,128]{1,0:T(1,128)}', space=vmem, size = 0x12000, scoped, tag = 'internal scratch']
  %s0 = inlined_call_operand.hbm [shape: f32[2,1024], index: 0, kind: input, shape index: {}]
  %s1 = inlined_call_operand.hbm [shape: bf16[1024,1024], index: 1, kind: input, shape index: {}]
  %s2 = inlined_call_operand.hbm [shape: f32[1,1024], index: 2, kind: input, shape index: {}]
  %s3 = inlined_call_operand.hbm [shape: f32[1,1024], index: 3, kind: input, shape index: {}]
  %s4 = inlined_call_operand.hbm [shape: f32[1,1024], index: 4, kind: input, shape index: {}]
  %s5 = inlined_call_operand.hbm [shape: bf16[1024,128], index: 5, kind: input, shape index: {}]
  %s6 = inlined_call_operand.hbm [shape: f32[1,128], index: 6, kind: input, shape index: {}]
  %s7 = inlined_call_operand.hbm [shape: f32[2,128], index: 7, kind: output, shape index: {}]
  %s8 = sld [smem:[#allocation0]]
  $region66: #{tpu_custom_call.1} parent=0
    _
  %s10 = ssub.s32 1, %s8
  %s11 = scalar_select 0, %s10, %s8
  $region1: #{tpu_custom_call.1} parent=0
    #allocation2 [shape = 'u8[8192]{0}', space=vmem, size = 0x2000, scoped, tag = 'input window, operand 0, single buffered']
    #allocation3 [shape = 's32[1]{0}', space=sflag, size = 0x4, scoped, tag = 'scoped memory for tpu_custom_call.1']
    #allocation4 [shape = 's32[1]{0}', space=sflag, size = 0x4, scoped, tag = 'scoped memory for tpu_custom_call.1']
    #allocation5 [shape = 'u8[2097152]{0}', space=vmem, size = 0x200000, scoped, tag = 'input window, operand 1, single buffered']
    #allocation6 [shape = 's32[1]{0}', space=sflag, size = 0x4, scoped, tag = 'scoped memory for tpu_custom_call.1']
    #allocation7 [shape = 'u8[4096]{0}', space=vmem, size = 0x1000, scoped, tag = 'input window, operand 2, single buffered']
    #allocation8 [shape = 'u8[4096]{0}', space=vmem, size = 0x1000, scoped, tag = 'input window, operand 3, single buffered']
    #allocation9 [shape = 's32[1]{0}', space=sflag, size = 0x4, scoped, tag = 'scoped memory for tpu_custom_call.1']
    #allocation10 [shape = 'u8[4096]{0}', space=vmem, size = 0x1000, scoped, tag = 'input window, operand 4, single buffered']
    #allocation11 [shape = 'u8[262144]{0}', space=vmem, size = 0x40000, scoped, tag = 'input window, operand 5, single buffered']
    #allocation12 [shape = 's32[1]{0}', space=sflag, size = 0x4, scoped, tag = 'scoped memory for tpu_custom_call.1']
    #allocation13 [shape = 'u8[512]{0}', space=vmem, size = 0x400, scoped, tag = 'input window, operand 6, single buffered']
    #allocation14 [shape = 'u8[1024]{0}', space=vmem, size = 0x400, scoped, tag = 'output window, operand 0, single buffered']
    %12 = vsyncpa [#allocation3], 0
    %13 = vsyncpa [#allocation6], 0
    %14 = vsyncpa [#allocation9], 0
    %15 = vsyncpa [#allocation12], 0
    %16 = vsyncpa [#allocation4], 0
    // Predicated region
    $region2: #{tpu_custom_call.1} parent=1 // pred_check
      _
    $region3: #{tpu_custom_call.1} parent=1 // pred_check_branch
      %18 = sbr.rel (0) target = $region5
    $region4: #{tpu_custom_call.1} parent=1 // pred_region
      %s20 = ssub.s32 256, 256
      %21 = vsyncadd [#allocation3], %s20
      %s23 = sshll.u32 [#allocation2], 4
      %s24 = int_to_ptr.vmem [resolvable:$true] %s23
      %26 = dma.hbm_to_vmem [thread:$0]  %s0, 256, %s24, [#allocation3]
    $region5: #{tpu_custom_call.1} parent=1 // pred_fallthru
      _
    // Predicated region
    $region6: #{tpu_custom_call.1} parent=1 // pred_check
      _
    $region7: #{tpu_custom_call.1} parent=1 // pred_check_branch
      %28 = sbr.rel (0) target = $region9
    $region8: #{tpu_custom_call.1} parent=1 // pred_region
      %s30 = ssub.s32 65536, 65536
      %31 = vsyncadd [#allocation6], %s30
      %s32 = sshll.u32 [#allocation5], 4
      %s33 = int_to_ptr.vmem [resolvable:$true] %s32
      %38 = dma.hbm_to_vmem [thread:$0]  %s1, 65536, %s33, [#allocation6], 512, 512, 32
    $region9: #{tpu_custom_call.1} parent=1 // pred_fallthru
      _
    // Predicated region
    $region10: #{tpu_custom_call.1} parent=1 // pred_check
      _
    $region11: #{tpu_custom_call.1} parent=1 // pred_check_branch
      %40 = sbr.rel (0) target = $region13
    $region12: #{tpu_custom_call.1} parent=1 // pred_region
      %s42 = ssub.s32 128, 128
      %43 = vsyncadd [#allocation6], %s42
      %s45 = sshll.u32 [#allocation7], 4
      %s46 = int_to_ptr.vmem [resolvable:$true] %s45
      %48 = dma.hbm_to_vmem [thread:$0]  %s2, 128, %s46, [#allocation6]
    $region13: #{tpu_custom_call.1} parent=1 // pred_fallthru
      _
    // Predicated region
    $region14: #{tpu_custom_call.1} parent=1 // pred_check
      _
    $region15: #{tpu_custom_call.1} parent=1 // pred_check_branch
      %50 = sbr.rel (0) target = $region17
    $region16: #{tpu_custom_call.1} parent=1 // pred_region
      %s52 = ssub.s32 128, 128
      %53 = vsyncadd [#allocation9], %s52
      %s55 = sshll.u32 [#allocation8], 4
      %s56 = int_to_ptr.vmem [resolvable:$true] %s55
      %58 = dma.hbm_to_vmem [thread:$0]  %s3, 128, %s56, [#allocation9]
    $region17: #{tpu_custom_call.1} parent=1 // pred_fallthru
      _
    // Predicated region
    $region18: #{tpu_custom_call.1} parent=1 // pred_check
      _
    $region19: #{tpu_custom_call.1} parent=1 // pred_check_branch
      %60 = sbr.rel (0) target = $region21
    $region20: #{tpu_custom_call.1} parent=1 // pred_region
      %s62 = ssub.s32 128, 128
      %63 = vsyncadd [#allocation9], %s62
      %s65 = sshll.u32 [#allocation10], 4
      %s66 = int_to_ptr.vmem [resolvable:$true] %s65
      %68 = dma.hbm_to_vmem [thread:$0]  %s4, 128, %s66, [#allocation9]
    $region21: #{tpu_custom_call.1} parent=1 // pred_fallthru
      _
    // Predicated region
    $region22: #{tpu_custom_call.1} parent=1 // pred_check
      _
    $region23: #{tpu_custom_call.1} parent=1 // pred_check_branch
      %70 = sbr.rel (0) target = $region25
    $region24: #{tpu_custom_call.1} parent=1 // pred_region
      %s72 = ssub.s32 8192, 8192
      %73 = vsyncadd [#allocation12], %s72
      %s74 = sshll.u32 [#allocation11], 4
      %s75 = int_to_ptr.vmem [resolvable:$true] %s74
      %80 = dma.hbm_to_vmem [thread:$0]  %s5, 8192, %s75, [#allocation12], 64, 64, 4
    $region25: #{tpu_custom_call.1} parent=1 // pred_fallthru
      _
    // Predicated region
    $region26: #{tpu_custom_call.1} parent=1 // pred_check
      _
    $region27: #{tpu_custom_call.1} parent=1 // pred_check_branch
      %82 = sbr.rel (0) target = $region29
    $region28: #{tpu_custom_call.1} parent=1 // pred_region
      %s84 = ssub.s32 16, 16
      %85 = vsyncadd [#allocation12], %s84
      %s87 = sshll.u32 [#allocation13], 4
      %s88 = int_to_ptr.vmem [resolvable:$true] %s87
      %90 = dma.hbm_to_vmem [thread:$0]  %s6, 16, %s88, [#allocation12]
    $region29: #{tpu_custom_call.1} parent=1 // pred_fallthru
      _
    // Predicated region
    $region30: #{tpu_custom_call.1} parent=1 // pred_check
      _
    $region31: #{tpu_custom_call.1} parent=1 // pred_check_branch
      %92 = sbr.rel (0) target = $region33
    $region32: #{tpu_custom_call.1} parent=1 // pred_region
      %93 = dma.done [#allocation3], 256
    $region33: #{tpu_custom_call.1} parent=1 // pred_fallthru
      _
    // Predicated region
    $region34: #{tpu_custom_call.1} parent=1 // pred_check
      _
    $region35: #{tpu_custom_call.1} parent=1 // pred_check_branch
      %95 = sbr.rel (0) target = $region37
    $region36: #{tpu_custom_call.1} parent=1 // pred_region
      %96 = dma.done [#allocation6], 65536
    $region37: #{tpu_custom_call.1} parent=1 // pred_fallthru
      _
    // Predicated region
    $region38: #{tpu_custom_call.1} parent=1 // pred_check
      _
    $region39: #{tpu_custom_call.1} parent=1 // pred_check_branch
      %98 = sbr.rel (0) target = $region41
    $region40: #{tpu_custom_call.1} parent=1 // pred_region
      %99 = dma.done [#allocation6], 128
    $region41: #{tpu_custom_call.1} parent=1 // pred_fallthru
      _
    // Predicated region
    $region42: #{tpu_custom_call.1} parent=1 // pred_check
      _
    $region43: #{tpu_custom_call.1} parent=1 // pred_check_branch
      %101 = sbr.rel (0) target = $region45
    $region44: #{tpu_custom_call.1} parent=1 // pred_region
      %102 = dma.done [#allocation9], 128
    $region45: #{tpu_custom_call.1} parent=1 // pred_fallthru
      _
    // Predicated region
    $region46: #{tpu_custom_call.1} parent=1 // pred_check
      _
    $region47: #{tpu_custom_call.1} parent=1 // pred_check_branch
      %104 = sbr.rel (0) target = $region49
    $region48: #{tpu_custom_call.1} parent=1 // pred_region
      %105 = dma.done [#allocation9], 128
    $region49: #{tpu_custom_call.1} parent=1 // pred_fallthru
      _
    // Predicated region
    $region50: #{tpu_custom_call.1} parent=1 // pred_check
      _
    $region51: #{tpu_custom_call.1} parent=1 // pred_check_branch
      %107 = sbr.rel (0) target = $region53
    $region52: #{tpu_custom_call.1} parent=1 // pred_region
      %108 = dma.done [#allocation12], 8192
    $region53: #{tpu_custom_call.1} parent=1 // pred_fallthru
      _
    // Predicated region
    $region54: #{tpu_custom_call.1} parent=1 // pred_check
      _
    $region55: #{tpu_custom_call.1} parent=1 // pred_check_branch
      %110 = sbr.rel (0) target = $region57
    $region56: #{tpu_custom_call.1} parent=1 // pred_region
      %111 = dma.done [#allocation12], 16
    $region57: #{tpu_custom_call.1} parent=1 // pred_fallthru
      _
    %v113 = vld [vmem:[#allocation2] sm:$0xff]
    %v114 = vld [vmem:[#allocation2 + $0x8] sm:$0xff]
    %v117 = vcombine.high %v113, %v113
    %v119 = vunpack.c.l.s4 1983009808
    %v120 = vunpack.c.0.s8 %v119
    %v121 = vlaneseq
    %v122 = vshrl.u32 %v121, 7
    %v123 = vsub.s32 %v120, %v122
    %v124 = vrot.slane %v113, %v123
    %v126 = vunpack.c.l.s4 1983009808
    %v127 = vunpack.c.0.s8 %v126
    %v128 = vlaneseq
    %v129 = vshrl.u32 %v128, 7
    %v130 = vsub.s32 %v127, %v129
    %v131 = vrot.slane %v117, %v130
    %v132 = vcombine.high %v124, %v124
    %v133 = vcombine.high %v131, %v131
    %v134 = vcombine.high %v114, %v114
    %v136 = vunpack.c.l.s4 1983009808
    %v137 = vunpack.c.0.s8 %v136
    %v138 = vlaneseq
    %v139 = vshrl.u32 %v138, 7
    %v140 = vsub.s32 %v137, %v139
    %v141 = vrot.slane %v114, %v140
    %v143 = vunpack.c.l.s4 1983009808
    %v144 = vunpack.c.0.s8 %v143
    %v145 = vlaneseq
    %v146 = vshrl.u32 %v145, 7
    %v147 = vsub.s32 %v144, %v146
    %v148 = vrot.slane %v134, %v147
    %v149 = vcombine.high %v141, %v141
    %v150 = vcombine.high %v148, %v148
    %v159 = vpack.c.bf16 %v124, %v124
    %v160 = vpack.c.bf16 %v132, %v132
    %v161 = vpack.c.bf16 %v131, %v131
    %v162 = vpack.c.bf16 %v133, %v133
    %v163 = vpack.c.bf16 %v141, %v141
    %v164 = vpack.c.bf16 %v149, %v149
    %v165 = vpack.c.bf16 %v148, %v148
    %v166 = vpack.c.bf16 %v150, %v150
    %v167 = vld [vmem:[#allocation5] sm:$0xff]
    %v168 = vld [vmem:[#allocation5 + $0x8] sm:$0xff]
    %v169 = vld [vmem:[#allocation5 + $0x10] sm:$0xff]
    %v170 = vld [vmem:[#allocation5 + $0x18] sm:$0xff]
    %v171 = vld [vmem:[#allocation5 + $0x20] sm:$0xff]
    %v172 = vld [vmem:[#allocation5 + $0x28] sm:$0xff]
    %v173 = vld [vmem:[#allocation5 + $0x30] sm:$0xff]
    %v174 = vld [vmem:[#allocation5 + $0x38] sm:$0xff]
    %v175 = vld [vmem:[#allocation5 + $0x40] sm:$0xff]
    %v176 = vld [vmem:[#allocation5 + $0x48] sm:$0xff]
    %v177 = vld [vmem:[#allocation5 + $0x50] sm:$0xff]
    %v178 = vld [vmem:[#allocation5 + $0x58] sm:$0xff]
    %v179 = vld [vmem:[#allocation5 + $0x60] sm:$0xff]
    %v180 = vld [vmem:[#allocation5 + $0x68] sm:$0xff]
    %v181 = vld [vmem:[#allocation5 + $0x70] sm:$0xff]
    %v182 = vld [vmem:[#allocation5 + $0x78] sm:$0xff]
    %v183 = vld [vmem:[#allocation5 + $0x80] sm:$0xff]
    %v184 = vld [vmem:[#allocation5 + $0x88] sm:$0xff]
    %v185 = vld [vmem:[#allocation5 + $0x90] sm:$0xff]
    %v186 = vld [vmem:[#allocation5 + $0x98] sm:$0xff]
    %v187 = vld [vmem:[#allocation5 + $0xa0] sm:$0xff]
    %v188 = vld [vmem:[#allocation5 + $0xa8] sm:$0xff]
    %v189 = vld [vmem:[#allocation5 + $0xb0] sm:$0xff]
    %v190 = vld [vmem:[#allocation5 + $0xb8] sm:$0xff]
    %v191 = vld [vmem:[#allocation5 + $0xc0] sm:$0xff]
    %v192 = vld [vmem:[#allocation5 + $0xc8] sm:$0xff]
    %v193 = vld [vmem:[#allocation5 + $0xd0] sm:$0xff]
    %v194 = vld [vmem:[#allocation5 + $0xd8] sm:$0xff]
    %v195 = vld [vmem:[#allocation5 + $0xe0] sm:$0xff]
    %v196 = vld [vmem:[#allocation5 + $0xe8] sm:$0xff]
    %v197 = vld [vmem:[#allocation5 + $0xf0] sm:$0xff]
    %v198 = vld [vmem:[#allocation5 + $0xf8] sm:$0xff]
    %v199 = vld [vmem:[#allocation5 + $0x100] sm:$0xff]
    %v200 = vld [vmem:[#allocation5 + $0x108] sm:$0xff]
    %v201 = vld [vmem:[#allocation5 + $0x110] sm:$0xff]
    %v202 = vld [vmem:[#allocation5 + $0x118] sm:$0xff]
    %v203 = vld [vmem:[#allocation5 + $0x120] sm:$0xff]
    %v204 = vld [vmem:[#allocation5 + $0x128] sm:$0xff]
    %v205 = vld [vmem:[#allocation5 + $0x130] sm:$0xff]
    %v206 = vld [vmem:[#allocation5 + $0x138] sm:$0xff]
    %v207 = vld [vmem:[#allocation5 + $0x140] sm:$0xff]
    %v208 = vld [vmem:[#allocation5 + $0x148] sm:$0xff]
    %v209 = vld [vmem:[#allocation5 + $0x150] sm:$0xff]
    %v210 = vld [vmem:[#allocation5 + $0x158] sm:$0xff]
    %v211 = vld [vmem:[#allocation5 + $0x160] sm:$0xff]
    %v212 = vld [vmem:[#allocation5 + $0x168] sm:$0xff]
    %v213 = vld [vmem:[#allocation5 + $0x170] sm:$0xff]
    %v214 = vld [vmem:[#allocation5 + $0x178] sm:$0xff]
    %v215 = vld [vmem:[#allocation5 + $0x180] sm:$0xff]
    %v216 = vld [vmem:[#allocation5 + $0x188] sm:$0xff]
    %v217 = vld [vmem:[#allocation5 + $0x190] sm:$0xff]
    %v218 = vld [vmem:[#allocation5 + $0x198] sm:$0xff]
    %v219 = vld [vmem:[#allocation5 + $0x1a0] sm:$0xff]
    %v220 = vld [vmem:[#allocation5 + $0x1a8] sm:$0xff]
    %v221 = vld [vmem:[#allocation5 + $0x1b0] sm:$0xff]
    %v222 = vld [vmem:[#allocation5 + $0x1b8] sm:$0xff]
    %v223 = vld [vmem:[#allocation5 + $0x1c0] sm:$0xff]
    %v224 = vld [vmem:[#allocation5 + $0x1c8] sm:$0xff]
    %v225 = vld [vmem:[#allocation5 + $0x1d0] sm:$0xff]
    %v226 = vld [vmem:[#allocation5 + $0x1d8] sm:$0xff]
    %v227 = vld [vmem:[#allocation5 + $0x1e0] sm:$0xff]
    %v228 = vld [vmem:[#allocation5 + $0x1e8] sm:$0xff]
    %v229 = vld [vmem:[#allocation5 + $0x1f0] sm:$0xff]
    %v230 = vld [vmem:[#allocation5 + $0x1f8] sm:$0xff]
    %v231 = vld [vmem:[#allocation5 + $0x200] sm:$0xff]
    %v232 = vld [vmem:[#allocation5 + $0x208] sm:$0xff]
    %v233 = vld [vmem:[#allocation5 + $0x210] sm:$0xff]
    %v234 = vld [vmem:[#allocation5 + $0x218] sm:$0xff]
    %v235 = vld [vmem:[#allocation5 + $0x220] sm:$0xff]
    %v236 = vld [vmem:[#allocation5 + $0x228] sm:$0xff]
    %v237 = vld [vmem:[#allocation5 + $0x230] sm:$0xff]
    %v238 = vld [vmem:[#allocation5 + $0x238] sm:$0xff]
    %v239 = vld [vmem:[#allocation5 + $0x240] sm:$0xff]
    %v240 = vld [vmem:[#allocation5 + $0x248] sm:$0xff]
    %v241 = vld [vmem:[#allocation5 + $0x250] sm:$0xff]
    %v242 = vld [vmem:[#allocation5 + $0x258] sm:$0xff]
    %v243 = vld [vmem:[#allocation5 + $0x260] sm:$0xff]
    %v244 = vld [vmem:[#allocation5 + $0x268] sm:$0xff]
    %v245 = vld [vmem:[#allocation5 + $0x270] sm:$0xff]
    %v246 = vld [vmem:[#allocation5 + $0x278] sm:$0xff]
    %v247 = vld [vmem:[#allocation5 + $0x280] sm:$0xff]
    %v248 = vld [vmem:[#allocation5 + $0x288] sm:$0xff]
    %v249 = vld [vmem:[#allocation5 + $0x290] sm:$0xff]
    %v250 = vld [vmem:[#allocation5 + $0x298] sm:$0xff]
    %v251 = vld [vmem:[#allocation5 + $0x2a0] sm:$0xff]
    %v252 = vld [vmem:[#allocation5 + $0x2a8] sm:$0xff]
    %v253 = vld [vmem:[#allocation5 + $0x2b0] sm:$0xff]
    %v254 = vld [vmem:[#allocation5 + $0x2b8] sm:$0xff]
    %v255 = vld [vmem:[#allocation5 + $0x2c0] sm:$0xff]
    %v256 = vld [vmem:[#allocation5 + $0x2c8] sm:$0xff]
    %v257 = vld [vmem:[#allocation5 + $0x2d0] sm:$0xff]
    %v258 = vld [vmem:[#allocation5 + $0x2d8] sm:$0xff]
    %v259 = vld [vmem:[#allocation5 + $0x2e0] sm:$0xff]
    %v260 = vld [vmem:[#allocation5 + $0x2e8] sm:$0xff]
    %v261 = vld [vmem:[#allocation5 + $0x2f0] sm:$0xff]
    %v262 = vld [vmem:[#allocation5 + $0x2f8] sm:$0xff]
    %v263 = vld [vmem:[#allocation5 + $0x300] sm:$0xff]
    %v264 = vld [vmem:[#allocation5 + $0x308] sm:$0xff]
    %v265 = vld [vmem:[#allocation5 + $0x310] sm:$0xff]
    %v266 = vld [vmem:[#allocation5 + $0x318] sm:$0xff]
    %v267 = vld [vmem:[#allocation5 + $0x320] sm:$0xff]
    %v268 = vld [vmem:[#allocation5 + $0x328] sm:$0xff]
    %v269 = vld [vmem:[#allocation5 + $0x330] sm:$0xff]
    %v270 = vld [vmem:[#allocation5 + $0x338] sm:$0xff]
    %v271 = vld [vmem:[#allocation5 + $0x340] sm:$0xff]
    %v272 = vld [vmem:[#allocation5 + $0x348] sm:$0xff]
    %v273 = vld [vmem:[#allocation5 + $0x350] sm:$0xff]
    %v274 = vld [vmem:[#allocation5 + $0x358] sm:$0xff]
    %v275 = vld [vmem:[#allocation5 + $0x360] sm:$0xff]
    %v276 = vld [vmem:[#allocation5 + $0x368] sm:$0xff]
    %v277 = vld [vmem:[#allocation5 + $0x370] sm:$0xff]
    %v278 = vld [vmem:[#allocation5 + $0x378] sm:$0xff]
    %v279 = vld [vmem:[#allocation5 + $0x380] sm:$0xff]
    %v280 = vld [vmem:[#allocation5 + $0x388] sm:$0xff]
    %v281 = vld [vmem:[#allocation5 + $0x390] sm:$0xff]
    %v282 = vld [vmem:[#allocation5 + $0x398] sm:$0xff]
    %v283 = vld [vmem:[#allocation5 + $0x3a0] sm:$0xff]
    %v284 = vld [vmem:[#allocation5 + $0x3a8] sm:$0xff]
    %v285 = vld [vmem:[#allocation5 + $0x3b0] sm:$0xff]
    %v286 = vld [vmem:[#allocation5 + $0x3b8] sm:$0xff]
    %v287 = vld [vmem:[#allocation5 + $0x3c0] sm:$0xff]
    %v288 = vld [vmem:[#allocation5 + $0x3c8] sm:$0xff]
    %v289 = vld [vmem:[#allocation5 + $0x3d0] sm:$0xff]
    %v290 = vld [vmem:[#allocation5 + $0x3d8] sm:$0xff]
    %v291 = vld [vmem:[#allocation5 + $0x3e0] sm:$0xff]
    %v292 = vld [vmem:[#allocation5 + $0x3e8] sm:$0xff]
    %v293 = vld [vmem:[#allocation5 + $0x3f0] sm:$0xff]
    %v294 = vld [vmem:[#allocation5 + $0x3f8] sm:$0xff]
    %v295 = vld [vmem:[#allocation5 + $0x400] sm:$0xff]
    %v296 = vld [vmem:[#allocation5 + $0x408] sm:$0xff]
    %v297 = vld [vmem:[#allocation5 + $0x410] sm:$0xff]
    %v298 = vld [vmem:[#allocation5 + $0x418] sm:$0xff]
    %v299 = vld [vmem:[#allocation5 + $0x420] sm:$0xff]
    %v300 = vld [vmem:[#allocation5 + $0x428] sm:$0xff]
    %v301 = vld [vmem:[#allocation5 + $0x430] sm:$0xff]
    %v302 = vld [vmem:[#allocation5 + $0x438] sm:$0xff]
    %v303 = vld [vmem:[#allocation5 + $0x440] sm:$0xff]
    %v304 = vld [vmem:[#allocation5 + $0x448] sm:$0xff]
    %v305 = vld [vmem:[#allocation5 + $0x450] sm:$0xff]
    %v306 = vld [vmem:[#allocation5 + $0x458] sm:$0xff]
    %v307 = vld [vmem:[#allocation5 + $0x460] sm:$0xff]
    %v308 = vld [vmem:[#allocation5 + $0x468] sm:$0xff]
    %v309 = vld [vmem:[#allocation5 + $0x470] sm:$0xff]
    %v310 = vld [vmem:[#allocation5 + $0x478] sm:$0xff]
    %v311 = vld [vmem:[#allocation5 + $0x480] sm:$0xff]
    %v312 = vld [vmem:[#allocation5 + $0x488] sm:$0xff]
    %v313 = vld [vmem:[#allocation5 + $0x490] sm:$0xff]
    %v314 = vld [vmem:[#allocation5 + $0x498] sm:$0xff]
    %v315 = vld [vmem:[#allocation5 + $0x4a0] sm:$0xff]
    %v316 = vld [vmem:[#allocation5 + $0x4a8] sm:$0xff]
    %v317 = vld [vmem:[#allocation5 + $0x4b0] sm:$0xff]
    %v318 = vld [vmem:[#allocation5 + $0x4b8] sm:$0xff]
    %v319 = vld [vmem:[#allocation5 + $0x4c0] sm:$0xff]
    %v320 = vld [vmem:[#allocation5 + $0x4c8] sm:$0xff]
    %v321 = vld [vmem:[#allocation5 + $0x4d0] sm:$0xff]
    %v322 = vld [vmem:[#allocation5 + $0x4d8] sm:$0xff]
    %v323 = vld [vmem:[#allocation5 + $0x4e0] sm:$0xff]
    %v324 = vld [vmem:[#allocation5 + $0x4e8] sm:$0xff]
    %v325 = vld [vmem:[#allocation5 + $0x4f0] sm:$0xff]
    %v326 = vld [vmem:[#allocation5 + $0x4f8] sm:$0xff]
    %v327 = vld [vmem:[#allocation5 + $0x500] sm:$0xff]
    %v328 = vld [vmem:[#allocation5 + $0x508] sm:$0xff]
    %v329 = vld [vmem:[#allocation5 + $0x510] sm:$0xff]
    %v330 = vld [vmem:[#allocation5 + $0x518] sm:$0xff]
    %v331 = vld [vmem:[#allocation5 + $0x520] sm:$0xff]
    %v332 = vld [vmem:[#allocation5 + $0x528] sm:$0xff]
    %v333 = vld [vmem:[#allocation5 + $0x530] sm:$0xff]
    %v334 = vld [vmem:[#allocation5 + $0x538] sm:$0xff]
    %v335 = vld [vmem:[#allocation5 + $0x540] sm:$0xff]
    %v336 = vld [vmem:[#allocation5 + $0x548] sm:$0xff]
    %v337 = vld [vmem:[#allocation5 + $0x550] sm:$0xff]
    %v338 = vld [vmem:[#allocation5 + $0x558] sm:$0xff]
    %v339 = vld [vmem:[#allocation5 + $0x560] sm:$0xff]
    %v340 = vld [vmem:[#allocation5 + $0x568] sm:$0xff]
    %v341 = vld [vmem:[#allocation5 + $0x570] sm:$0xff]
    %v342 = vld [vmem:[#allocation5 + $0x578] sm:$0xff]
    %v343 = vld [vmem:[#allocation5 + $0x580] sm:$0xff]
    %v344 = vld [vmem:[#allocation5 + $0x588] sm:$0xff]
    %v345 = vld [vmem:[#allocation5 + $0x590] sm:$0xff]
    %v346 = vld [vmem:[#allocation5 + $0x598] sm:$0xff]
    %v347 = vld [vmem:[#allocation5 + $0x5a0] sm:$0xff]
    %v348 = vld [vmem:[#allocation5 + $0x5a8] sm:$0xff]
    %v349 = vld [vmem:[#allocation5 + $0x5b0] sm:$0xff]
    %v350 = vld [vmem:[#allocation5 + $0x5b8] sm:$0xff]
    %v351 = vld [vmem:[#allocation5 + $0x5c0] sm:$0xff]
    %v352 = vld [vmem:[#allocation5 + $0x5c8] sm:$0xff]
    %v353 = vld [vmem:[#allocation5 + $0x5d0] sm:$0xff]
    %v354 = vld [vmem:[#allocation5 + $0x5d8] sm:$0xff]
    %v355 = vld [vmem:[#allocation5 + $0x5e0] sm:$0xff]
    %v356 = vld [vmem:[#allocation5 + $0x5e8] sm:$0xff]
    %v357 = vld [vmem:[#allocation5 + $0x5f0] sm:$0xff]
    %v358 = vld [vmem:[#allocation5 + $0x5f8] sm:$0xff]
    %v359 = vld [vmem:[#allocation5 + $0x600] sm:$0xff]
    %v360 = vld [vmem:[#allocation5 + $0x608] sm:$0xff]
    %v361 = vld [vmem:[#allocation5 + $0x610] sm:$0xff]
    %v362 = vld [vmem:[#allocation5 + $0x618] sm:$0xff]
    %v363 = vld [vmem:[#allocation5 + $0x620] sm:$0xff]
    %v364 = vld [vmem:[#allocation5 + $0x628] sm:$0xff]
    %v365 = vld [vmem:[#allocation5 + $0x630] sm:$0xff]
    %v366 = vld [vmem:[#allocation5 + $0x638] sm:$0xff]
    %v367 = vld [vmem:[#allocation5 + $0x640] sm:$0xff]
    %v368 = vld [vmem:[#allocation5 + $0x648] sm:$0xff]
    %v369 = vld [vmem:[#allocation5 + $0x650] sm:$0xff]
    %v370 = vld [vmem:[#allocation5 + $0x658] sm:$0xff]
    %v371 = vld [vmem:[#allocation5 + $0x660] sm:$0xff]
    %v372 = vld [vmem:[#allocation5 + $0x668] sm:$0xff]
    %v373 = vld [vmem:[#allocation5 + $0x670] sm:$0xff]
    %v374 = vld [vmem:[#allocation5 + $0x678] sm:$0xff]
    %v375 = vld [vmem:[#allocation5 + $0x680] sm:$0xff]
    %v376 = vld [vmem:[#allocation5 + $0x688] sm:$0xff]
    %v377 = vld [vmem:[#allocation5 + $0x690] sm:$0xff]
    %v378 = vld [vmem:[#allocation5 + $0x698] sm:$0xff]
    %v379 = vld [vmem:[#allocation5 + $0x6a0] sm:$0xff]
    %v380 = vld [vmem:[#allocation5 + $0x6a8] sm:$0xff]
    %v381 = vld [vmem:[#allocation5 + $0x6b0] sm:$0xff]
    %v382 = vld [vmem:[#allocation5 + $0x6b8] sm:$0xff]
    %v383 = vld [vmem:[#allocation5 + $0x6c0] sm:$0xff]
    %v384 = vld [vmem:[#allocation5 + $0x6c8] sm:$0xff]
    %v385 = vld [vmem:[#allocation5 + $0x6d0] sm:$0xff]
    %v386 = vld [vmem:[#allocation5 + $0x6d8] sm:$0xff]
    %v387 = vld [vmem:[#allocation5 + $0x6e0] sm:$0xff]
    %v388 = vld [vmem:[#allocation5 + $0x6e8] sm:$0xff]
    %v389 = vld [vmem:[#allocation5 + $0x6f0] sm:$0xff]
    %v390 = vld [vmem:[#allocation5 + $0x6f8] sm:$0xff]
    %v391 = vld [vmem:[#allocation5 + $0x700] sm:$0xff]
    %v392 = vld [vmem:[#allocation5 + $0x708] sm:$0xff]
    %v393 = vld [vmem:[#allocation5 + $0x710] sm:$0xff]
    %v394 = vld [vmem:[#allocation5 + $0x718] sm:$0xff]
    %v395 = vld [vmem:[#allocation5 + $0x720] sm:$0xff]
    %v396 = vld [vmem:[#allocation5 + $0x728] sm:$0xff]
    %v397 = vld [vmem:[#allocation5 + $0x730] sm:$0xff]
    %v398 = vld [vmem:[#allocation5 + $0x738] sm:$0xff]
    %v399 = vld [vmem:[#allocation5 + $0x740] sm:$0xff]
    %v400 = vld [vmem:[#allocation5 + $0x748] sm:$0xff]
    %v401 = vld [vmem:[#allocation5 + $0x750] sm:$0xff]
    %v402 = vld [vmem:[#allocation5 + $0x758] sm:$0xff]
    %v403 = vld [vmem:[#allocation5 + $0x760] sm:$0xff]
    %v404 = vld [vmem:[#allocation5 + $0x768] sm:$0xff]
    %v405 = vld [vmem:[#allocation5 + $0x770] sm:$0xff]
    %v406 = vld [vmem:[#allocation5 + $0x778] sm:$0xff]
    %v407 = vld [vmem:[#allocation5 + $0x780] sm:$0xff]
    %v408 = vld [vmem:[#allocation5 + $0x788] sm:$0xff]
    %v409 = vld [vmem:[#allocation5 + $0x790] sm:$0xff]
    %v410 = vld [vmem:[#allocation5 + $0x798] sm:$0xff]
    %v411 = vld [vmem:[#allocation5 + $0x7a0] sm:$0xff]
    %v412 = vld [vmem:[#allocation5 + $0x7a8] sm:$0xff]
    %v413 = vld [vmem:[#allocation5 + $0x7b0] sm:$0xff]
    %v414 = vld [vmem:[#allocation5 + $0x7b8] sm:$0xff]
    %v415 = vld [vmem:[#allocation5 + $0x7c0] sm:$0xff]
    %v416 = vld [vmem:[#allocation5 + $0x7c8] sm:$0xff]
    %v417 = vld [vmem:[#allocation5 + $0x7d0] sm:$0xff]
    %v418 = vld [vmem:[#allocation5 + $0x7d8] sm:$0xff]
    %v419 = vld [vmem:[#allocation5 + $0x7e0] sm:$0xff]
    %v420 = vld [vmem:[#allocation5 + $0x7e8] sm:$0xff]
    %v421 = vld [vmem:[#allocation5 + $0x7f0] sm:$0xff]
    %v422 = vld [vmem:[#allocation5 + $0x7f8] sm:$0xff]
    %v423 = vld [vmem:[#allocation5 + $0x800] sm:$0xff]
    %v424 = vld [vmem:[#allocation5 + $0x808] sm:$0xff]
    %v425 = vld [vmem:[#allocation5 + $0x810] sm:$0xff]
    %v426 = vld [vmem:[#allocation5 + $0x818] sm:$0xff]
    %v427 = vld [vmem:[#allocation5 + $0x820] sm:$0xff]
    %v428 = vld [vmem:[#allocation5 + $0x828] sm:$0xff]
    %v429 = vld [vmem:[#allocation5 + $0x830] sm:$0xff]
    %v430 = vld [vmem:[#allocation5 + $0x838] sm:$0xff]
    %v431 = vld [vmem:[#allocation5 + $0x840] sm:$0xff]
    %v432 = vld [vmem:[#allocation5 + $0x848] sm:$0xff]
    %v433 = vld [vmem:[#allocation5 + $0x850] sm:$0xff]
    %v434 = vld [vmem:[#allocation5 + $0x858] sm:$0xff]
    %v435 = vld [vmem:[#allocation5 + $0x860] sm:$0xff]
    %v436 = vld [vmem:[#allocation5 + $0x868] sm:$0xff]
    %v437 = vld [vmem:[#allocation5 + $0x870] sm:$0xff]
    %v438 = vld [vmem:[#allocation5 + $0x878] sm:$0xff]
    %v439 = vld [vmem:[#allocation5 + $0x880] sm:$0xff]
    %v440 = vld [vmem:[#allocation5 + $0x888] sm:$0xff]
    %v441 = vld [vmem:[#allocation5 + $0x890] sm:$0xff]
    %v442 = vld [vmem:[#allocation5 + $0x898] sm:$0xff]
    %v443 = vld [vmem:[#allocation5 + $0x8a0] sm:$0xff]
    %v444 = vld [vmem:[#allocation5 + $0x8a8] sm:$0xff]
    %v445 = vld [vmem:[#allocation5 + $0x8b0] sm:$0xff]
    %v446 = vld [vmem:[#allocation5 + $0x8b8] sm:$0xff]
    %v447 = vld [vmem:[#allocation5 + $0x8c0] sm:$0xff]
    %v448 = vld [vmem:[#allocation5 + $0x8c8] sm:$0xff]
    %v449 = vld [vmem:[#allocation5 + $0x8d0] sm:$0xff]
    %v450 = vld [vmem:[#allocation5 + $0x8d8] sm:$0xff]
    %v451 = vld [vmem:[#allocation5 + $0x8e0] sm:$0xff]
    %v452 = vld [vmem:[#allocation5 + $0x8e8] sm:$0xff]
    %v453 = vld [vmem:[#allocation5 + $0x8f0] sm:$0xff]
    %v454 = vld [vmem:[#allocation5 + $0x8f8] sm:$0xff]
    %v455 = vld [vmem:[#allocation5 + $0x900] sm:$0xff]
    %v456 = vld [vmem:[#allocation5 + $0x908] sm:$0xff]
    %v457 = vld [vmem:[#allocation5 + $0x910] sm:$0xff]
    %v458 = vld [vmem:[#allocation5 + $0x918] sm:$0xff]
    %v459 = vld [vmem:[#allocation5 + $0x920] sm:$0xff]
    %v460 = vld [vmem:[#allocation5 + $0x928] sm:$0xff]
    %v461 = vld [vmem:[#allocation5 + $0x930] sm:$0xff]
    %v462 = vld [vmem:[#allocation5 + $0x938] sm:$0xff]
    %v463 = vld [vmem:[#allocation5 + $0x940] sm:$0xff]
    %v464 = vld [vmem:[#allocation5 + $0x948] sm:$0xff]
    %v465 = vld [vmem:[#allocation5 + $0x950] sm:$0xff]
    %v466 = vld [vmem:[#allocation5 + $0x958] sm:$0xff]
    %v467 = vld [vmem:[#allocation5 + $0x960] sm:$0xff]
    %v468 = vld [vmem:[#allocation5 + $0x968] sm:$0xff]
    %v469 = vld [vmem:[#allocation5 + $0x970] sm:$0xff]
    %v470 = vld [vmem:[#allocation5 + $0x978] sm:$0xff]
    %v471 = vld [vmem:[#allocation5 + $0x980] sm:$0xff]
    %v472 = vld [vmem:[#allocation5 + $0x988] sm:$0xff]
    %v473 = vld [vmem:[#allocation5 + $0x990] sm:$0xff]
    %v474 = vld [vmem:[#allocation5 + $0x998] sm:$0xff]
    %v475 = vld [vmem:[#allocation5 + $0x9a0] sm:$0xff]
    %v476 = vld [vmem:[#allocation5 + $0x9a8] sm:$0xff]
    %v477 = vld [vmem:[#allocation5 + $0x9b0] sm:$0xff]
    %v478 = vld [vmem:[#allocation5 + $0x9b8] sm:$0xff]
    %v479 = vld [vmem:[#allocation5 + $0x9c0] sm:$0xff]
    %v480 = vld [vmem:[#allocation5 + $0x9c8] sm:$0xff]
    %v481 = vld [vmem:[#allocation5 + $0x9d0] sm:$0xff]
    %v482 = vld [vmem:[#allocation5 + $0x9d8] sm:$0xff]
    %v483 = vld [vmem:[#allocation5 + $0x9e0] sm:$0xff]
    %v484 = vld [vmem:[#allocation5 + $0x9e8] sm:$0xff]
    %v485 = vld [vmem:[#allocation5 + $0x9f0] sm:$0xff]
    %v486 = vld [vmem:[#allocation5 + $0x9f8] sm:$0xff]
    %v487 = vld [vmem:[#allocation5 + $0xa00] sm:$0xff]
    %v488 = vld [vmem:[#allocation5 + $0xa08] sm:$0xff]
    %v489 = vld [vmem:[#allocation5 + $0xa10] sm:$0xff]
    %v490 = vld [vmem:[#allocation5 + $0xa18] sm:$0xff]
    %v491 = vld [vmem:[#allocation5 + $0xa20] sm:$0xff]
    %v492 = vld [vmem:[#allocation5 + $0xa28] sm:$0xff]
    %v493 = vld [vmem:[#allocation5 + $0xa30] sm:$0xff]
    %v494 = vld [vmem:[#allocation5 + $0xa38] sm:$0xff]
    %v495 = vld [vmem:[#allocation5 + $0xa40] sm:$0xff]
    %v496 = vld [vmem:[#allocation5 + $0xa48] sm:$0xff]
    %v497 = vld [vmem:[#allocation5 + $0xa50] sm:$0xff]
    %v498 = vld [vmem:[#allocation5 + $0xa58] sm:$0xff]
    %v499 = vld [vmem:[#allocation5 + $0xa60] sm:$0xff]
    %v500 = vld [vmem:[#allocation5 + $0xa68] sm:$0xff]
    %v501 = vld [vmem:[#allocation5 + $0xa70] sm:$0xff]
    %v502 = vld [vmem:[#allocation5 + $0xa78] sm:$0xff]
    %v503 = vld [vmem:[#allocation5 + $0xa80] sm:$0xff]
    %v504 = vld [vmem:[#allocation5 + $0xa88] sm:$0xff]
    %v505 = vld [vmem:[#allocation5 + $0xa90] sm:$0xff]
    %v506 = vld [vmem:[#allocation5 + $0xa98] sm:$0xff]
    %v507 = vld [vmem:[#allocation5 + $0xaa0] sm:$0xff]
    %v508 = vld [vmem:[#allocation5 + $0xaa8] sm:$0xff]
    %v509 = vld [vmem:[#allocation5 + $0xab0] sm:$0xff]
    %v510 = vld [vmem:[#allocation5 + $0xab8] sm:$0xff]
    %v511 = vld [vmem:[#allocation5 + $0xac0] sm:$0xff]
    %v512 = vld [vmem:[#allocation5 + $0xac8] sm:$0xff]
    %v513 = vld [vmem:[#allocation5 + $0xad0] sm:$0xff]
    %v514 = vld [vmem:[#allocation5 + $0xad8] sm:$0xff]
    %v515 = vld [vmem:[#allocation5 + $0xae0] sm:$0xff]
    %v516 = vld [vmem:[#allocation5 + $0xae8] sm:$0xff]
    %v517 = vld [vmem:[#allocation5 + $0xaf0] sm:$0xff]
    %v518 = vld [vmem:[#allocation5 + $0xaf8] sm:$0xff]
    %v519 = vld [vmem:[#allocation5 + $0xb00] sm:$0xff]
    %v520 = vld [vmem:[#allocation5 + $0xb08] sm:$0xff]
    %v521 = vld [vmem:[#allocation5 + $0xb10] sm:$0xff]
    %v522 = vld [vmem:[#allocation5 + $0xb18] sm:$0xff]
    %v523 = vld [vmem:[#allocation5 + $0xb20] sm:$0xff]
    %v524 = vld [vmem:[#allocation5 + $0xb28] sm:$0xff]
    %v525 = vld [vmem:[#allocation5 + $0xb30] sm:$0xff]
    %v526 = vld [vmem:[#allocation5 + $0xb38] sm:$0xff]
    %v527 = vld [vmem:[#allocation5 + $0xb40] sm:$0xff]
    %v528 = vld [vmem:[#allocation5 + $0xb48] sm:$0xff]
    %v529 = vld [vmem:[#allocation5 + $0xb50] sm:$0xff]
    %v530 = vld [vmem:[#allocation5 + $0xb58] sm:$0xff]
    %v531 = vld [vmem:[#allocation5 + $0xb60] sm:$0xff]
    %v532 = vld [vmem:[#allocation5 + $0xb68] sm:$0xff]
    %v533 = vld [vmem:[#allocation5 + $0xb70] sm:$0xff]
    %v534 = vld [vmem:[#allocation5 + $0xb78] sm:$0xff]
    %v535 = vld [vmem:[#allocation5 + $0xb80] sm:$0xff]
    %v536 = vld [vmem:[#allocation5 + $0xb88] sm:$0xff]
    %v537 = vld [vmem:[#allocation5 + $0xb90] sm:$0xff]
    %v538 = vld [vmem:[#allocation5 + $0xb98] sm:$0xff]
    %v539 = vld [vmem:[#allocation5 + $0xba0] sm:$0xff]
    %v540 = vld [vmem:[#allocation5 + $0xba8] sm:$0xff]
    %v541 = vld [vmem:[#allocation5 + $0xbb0] sm:$0xff]
    %v542 = vld [vmem:[#allocation5 + $0xbb8] sm:$0xff]
    %v543 = vld [vmem:[#allocation5 + $0xbc0] sm:$0xff]
    %v544 = vld [vmem:[#allocation5 + $0xbc8] sm:$0xff]
    %v545 = vld [vmem:[#allocation5 + $0xbd0] sm:$0xff]
    %v546 = vld [vmem:[#allocation5 + $0xbd8] sm:$0xff]
    %v547 = vld [vmem:[#allocation5 + $0xbe0] sm:$0xff]
    %v548 = vld [vmem:[#allocation5 + $0xbe8] sm:$0xff]
    %v549 = vld [vmem:[#allocation5 + $0xbf0] sm:$0xff]
    %v550 = vld [vmem:[#allocation5 + $0xbf8] sm:$0xff]
    %v551 = vld [vmem:[#allocation5 + $0xc00] sm:$0xff]
    %v552 = vld [vmem:[#allocation5 + $0xc08] sm:$0xff]
    %v553 = vld [vmem:[#allocation5 + $0xc10] sm:$0xff]
    %v554 = vld [vmem:[#allocation5 + $0xc18] sm:$0xff]
    %v555 = vld [vmem:[#allocation5 + $0xc20] sm:$0xff]
    %v556 = vld [vmem:[#allocation5 + $0xc28] sm:$0xff]
    %v557 = vld [vmem:[#allocation5 + $0xc30] sm:$0xff]
    %v558 = vld [vmem:[#allocation5 + $0xc38] sm:$0xff]
    %v559 = vld [vmem:[#allocation5 + $0xc40] sm:$0xff]
    %v560 = vld [vmem:[#allocation5 + $0xc48] sm:$0xff]
    %v561 = vld [vmem:[#allocation5 + $0xc50] sm:$0xff]
    %v562 = vld [vmem:[#allocation5 + $0xc58] sm:$0xff]
    %v563 = vld [vmem:[#allocation5 + $0xc60] sm:$0xff]
    %v564 = vld [vmem:[#allocation5 + $0xc68] sm:$0xff]
    %v565 = vld [vmem:[#allocation5 + $0xc70] sm:$0xff]
    %v566 = vld [vmem:[#allocation5 + $0xc78] sm:$0xff]
    %v567 = vld [vmem:[#allocation5 + $0xc80] sm:$0xff]
    %v568 = vld [vmem:[#allocation5 + $0xc88] sm:$0xff]
    %v569 = vld [vmem:[#allocation5 + $0xc90] sm:$0xff]
    %v570 = vld [vmem:[#allocation5 + $0xc98] sm:$0xff]
    %v571 = vld [vmem:[#allocation5 + $0xca0] sm:$0xff]
    %v572 = vld [vmem:[#allocation5 + $0xca8] sm:$0xff]
    %v573 = vld [vmem:[#allocation5 + $0xcb0] sm:$0xff]
    %v574 = vld [vmem:[#allocation5 + $0xcb8] sm:$0xff]
    %v575 = vld [vmem:[#allocation5 + $0xcc0] sm:$0xff]
    %v576 = vld [vmem:[#allocation5 + $0xcc8] sm:$0xff]
    %v577 = vld [vmem:[#allocation5 + $0xcd0] sm:$0xff]
    %v578 = vld [vmem:[#allocation5 + $0xcd8] sm:$0xff]
    %v579 = vld [vmem:[#allocation5 + $0xce0] sm:$0xff]
    %v580 = vld [vmem:[#allocation5 + $0xce8] sm:$0xff]
    %v581 = vld [vmem:[#allocation5 + $0xcf0] sm:$0xff]
    %v582 = vld [vmem:[#allocation5 + $0xcf8] sm:$0xff]
    %v583 = vld [vmem:[#allocation5 + $0xd00] sm:$0xff]
    %v584 = vld [vmem:[#allocation5 + $0xd08] sm:$0xff]
    %v585 = vld [vmem:[#allocation5 + $0xd10] sm:$0xff]
    %v586 = vld [vmem:[#allocation5 + $0xd18] sm:$0xff]
    %v587 = vld [vmem:[#allocation5 + $0xd20] sm:$0xff]
    %v588 = vld [vmem:[#allocation5 + $0xd28] sm:$0xff]
    %v589 = vld [vmem:[#allocation5 + $0xd30] sm:$0xff]
    %v590 = vld [vmem:[#allocation5 + $0xd38] sm:$0xff]
    %v591 = vld [vmem:[#allocation5 + $0xd40] sm:$0xff]
    %v592 = vld [vmem:[#allocation5 + $0xd48] sm:$0xff]
    %v593 = vld [vmem:[#allocation5 + $0xd50] sm:$0xff]
    %v594 = vld [vmem:[#allocation5 + $0xd58] sm:$0xff]
    %v595 = vld [vmem:[#allocation5 + $0xd60] sm:$0xff]
    %v596 = vld [vmem:[#allocation5 + $0xd68] sm:$0xff]
    %v597 = vld [vmem:[#allocation5 + $0xd70] sm:$0xff]
    %v598 = vld [vmem:[#allocation5 + $0xd78] sm:$0xff]
    %v599 = vld [vmem:[#allocation5 + $0xd80] sm:$0xff]
    %v600 = vld [vmem:[#allocation5 + $0xd88] sm:$0xff]
    %v601 = vld [vmem:[#allocation5 + $0xd90] sm:$0xff]
    %v602 = vld [vmem:[#allocation5 + $0xd98] sm:$0xff]
    %v603 = vld [vmem:[#allocation5 + $0xda0] sm:$0xff]
    %v604 = vld [vmem:[#allocation5 + $0xda8] sm:$0xff]
    %v605 = vld [vmem:[#allocation5 + $0xdb0] sm:$0xff]
    %v606 = vld [vmem:[#allocation5 + $0xdb8] sm:$0xff]
    %v607 = vld [vmem:[#allocation5 + $0xdc0] sm:$0xff]
    %v608 = vld [vmem:[#allocation5 + $0xdc8] sm:$0xff]
    %v609 = vld [vmem:[#allocation5 + $0xdd0] sm:$0xff]
    %v610 = vld [vmem:[#allocation5 + $0xdd8] sm:$0xff]
    %v611 = vld [vmem:[#allocation5 + $0xde0] sm:$0xff]
    %v612 = vld [vmem:[#allocation5 + $0xde8] sm:$0xff]
    %v613 = vld [vmem:[#allocation5 + $0xdf0] sm:$0xff]
    %v614 = vld [vmem:[#allocation5 + $0xdf8] sm:$0xff]
    %v615 = vld [vmem:[#allocation5 + $0xe00] sm:$0xff]
    %v616 = vld [vmem:[#allocation5 + $0xe08] sm:$0xff]
    %v617 = vld [vmem:[#allocation5 + $0xe10] sm:$0xff]
    %v618 = vld [vmem:[#allocation5 + $0xe18] sm:$0xff]
    %v619 = vld [vmem:[#allocation5 + $0xe20] sm:$0xff]
    %v620 = vld [vmem:[#allocation5 + $0xe28] sm:$0xff]
    %v621 = vld [vmem:[#allocation5 + $0xe30] sm:$0xff]
    %v622 = vld [vmem:[#allocation5 + $0xe38] sm:$0xff]
    %v623 = vld [vmem:[#allocation5 + $0xe40] sm:$0xff]
    %v624 = vld [vmem:[#allocation5 + $0xe48] sm:$0xff]
    %v625 = vld [vmem:[#allocation5 + $0xe50] sm:$0xff]
    %v626 = vld [vmem:[#allocation5 + $0xe58] sm:$0xff]
    %v627 = vld [vmem:[#allocation5 + $0xe60] sm:$0xff]
    %v628 = vld [vmem:[#allocation5 + $0xe68] sm:$0xff]
    %v629 = vld [vmem:[#allocation5 + $0xe70] sm:$0xff]
    %v630 = vld [vmem:[#allocation5 + $0xe78] sm:$0xff]
    %v631 = vld [vmem:[#allocation5 + $0xe80] sm:$0xff]
    %v632 = vld [vmem:[#allocation5 + $0xe88] sm:$0xff]
    %v633 = vld [vmem:[#allocation5 + $0xe90] sm:$0xff]
    %v634 = vld [vmem:[#allocation5 + $0xe98] sm:$0xff]
    %v635 = vld [vmem:[#allocation5 + $0xea0] sm:$0xff]
    %v636 = vld [vmem:[#allocation5 + $0xea8] sm:$0xff]
    %v637 = vld [vmem:[#allocation5 + $0xeb0] sm:$0xff]
    %v638 = vld [vmem:[#allocation5 + $0xeb8] sm:$0xff]
    %v639 = vld [vmem:[#allocation5 + $0xec0] sm:$0xff]
    %v640 = vld [vmem:[#allocation5 + $0xec8] sm:$0xff]
    %v641 = vld [vmem:[#allocation5 + $0xed0] sm:$0xff]
    %v642 = vld [vmem:[#allocation5 + $0xed8] sm:$0xff]
    %v643 = vld [vmem:[#allocation5 + $0xee0] sm:$0xff]
    %v644 = vld [vmem:[#allocation5 + $0xee8] sm:$0xff]
    %v645 = vld [vmem:[#allocation5 + $0xef0] sm:$0xff]
    %v646 = vld [vmem:[#allocation5 + $0xef8] sm:$0xff]
    %v647 = vld [vmem:[#allocation5 + $0xf00] sm:$0xff]
    %v648 = vld [vmem:[#allocation5 + $0xf08] sm:$0xff]
    %v649 = vld [vmem:[#allocation5 + $0xf10] sm:$0xff]
    %v650 = vld [vmem:[#allocation5 + $0xf18] sm:$0xff]
    %v651 = vld [vmem:[#allocation5 + $0xf20] sm:$0xff]
    %v652 = vld [vmem:[#allocation5 + $0xf28] sm:$0xff]
    %v653 = vld [vmem:[#allocation5 + $0xf30] sm:$0xff]
    %v654 = vld [vmem:[#allocation5 + $0xf38] sm:$0xff]
    %v655 = vld [vmem:[#allocation5 + $0xf40] sm:$0xff]
    %v656 = vld [vmem:[#allocation5 + $0xf48] sm:$0xff]
    %v657 = vld [vmem:[#allocation5 + $0xf50] sm:$0xff]
    %v658 = vld [vmem:[#allocation5 + $0xf58] sm:$0xff]
    %v659 = vld [vmem:[#allocation5 + $0xf60] sm:$0xff]
    %v660 = vld [vmem:[#allocation5 + $0xf68] sm:$0xff]
    %v661 = vld [vmem:[#allocation5 + $0xf70] sm:$0xff]
    %v662 = vld [vmem:[#allocation5 + $0xf78] sm:$0xff]
    %v663 = vld [vmem:[#allocation5 + $0xf80] sm:$0xff]
    %v664 = vld [vmem:[#allocation5 + $0xf88] sm:$0xff]
    %v665 = vld [vmem:[#allocation5 + $0xf90] sm:$0xff]
    %v666 = vld [vmem:[#allocation5 + $0xf98] sm:$0xff]
    %v667 = vld [vmem:[#allocation5 + $0xfa0] sm:$0xff]
    %v668 = vld [vmem:[#allocation5 + $0xfa8] sm:$0xff]
    %v669 = vld [vmem:[#allocation5 + $0xfb0] sm:$0xff]
    %v670 = vld [vmem:[#allocation5 + $0xfb8] sm:$0xff]
    %v671 = vld [vmem:[#allocation5 + $0xfc0] sm:$0xff]
    %v672 = vld [vmem:[#allocation5 + $0xfc8] sm:$0xff]
    %v673 = vld [vmem:[#allocation5 + $0xfd0] sm:$0xff]
    %v674 = vld [vmem:[#allocation5 + $0xfd8] sm:$0xff]
    %v675 = vld [vmem:[#allocation5 + $0xfe0] sm:$0xff]
    %v676 = vld [vmem:[#allocation5 + $0xfe8] sm:$0xff]
    %v677 = vld [vmem:[#allocation5 + $0xff0] sm:$0xff]
    %v678 = vld [vmem:[#allocation5 + $0xff8] sm:$0xff]
    %v679 = vld [vmem:[#allocation7] sm:$0xff]
    %v681 = vlaneseq
    %v682 = vshrl.u32 %v681, 7
    %v683 = vsub.s32 0, %v682
    %v684 = vrot.slane %v679, %v683
    %v685 = vlaneseq
    %v686 = vshrl.u32 %v685, 7
    %v687 = vsub.s32 1, %v686
    %v688 = vrot.slane %v679, %v687
    %v689 = vlaneseq
    %v690 = vshrl.u32 %v689, 7
    %v691 = vsub.s32 2, %v690
    %v692 = vrot.slane %v679, %v691
    %v693 = vlaneseq
    %v694 = vshrl.u32 %v693, 7
    %v695 = vsub.s32 3, %v694
    %v696 = vrot.slane %v679, %v695
    %v697 = vlaneseq
    %v698 = vshrl.u32 %v697, 7
    %v699 = vsub.s32 4, %v698
    %v700 = vrot.slane %v679, %v699
    %v701 = vlaneseq
    %v702 = vshrl.u32 %v701, 7
    %v703 = vsub.s32 5, %v702
    %v704 = vrot.slane %v679, %v703
    %v705 = vlaneseq
    %v706 = vshrl.u32 %v705, 7
    %v707 = vsub.s32 6, %v706
    %v708 = vrot.slane %v679, %v707
    %v709 = vlaneseq
    %v710 = vshrl.u32 %v709, 7
    %v711 = vsub.s32 7, %v710
    %v712 = vrot.slane %v679, %v711
    %v1233 = vunpack.c.l.b16 %v167
    %v1234 = vunpack.c.h.b16 %v167
    %v1235 = vunpack.c.l.b16 %v168
    %v1236 = vunpack.c.h.b16 %v168
    %v1237 = vunpack.c.l.b16 %v169
    %v1238 = vunpack.c.h.b16 %v169
    %v1239 = vunpack.c.l.b16 %v170
    %v1240 = vunpack.c.h.b16 %v170
    %v1241 = vunpack.c.l.b16 %v171
    %v1242 = vunpack.c.h.b16 %v171
    %v1243 = vunpack.c.l.b16 %v172
    %v1244 = vunpack.c.h.b16 %v172
    %v1245 = vunpack.c.l.b16 %v173
    %v1246 = vunpack.c.h.b16 %v173
    %v1247 = vunpack.c.l.b16 %v174
    %v1248 = vunpack.c.h.b16 %v174
    %v1249 = vunpack.c.l.b16 %v175
    %v1250 = vunpack.c.h.b16 %v175
    %v1251 = vunpack.c.l.b16 %v176
    %v1252 = vunpack.c.h.b16 %v176
    %v1253 = vunpack.c.l.b16 %v177
    %v1254 = vunpack.c.h.b16 %v177
    %v1255 = vunpack.c.l.b16 %v178
    %v1256 = vunpack.c.h.b16 %v178
    %v1257 = vunpack.c.l.b16 %v179
    %v1258 = vunpack.c.h.b16 %v179
    %v1259 = vunpack.c.l.b16 %v180
    %v1260 = vunpack.c.h.b16 %v180
    %v1261 = vunpack.c.l.b16 %v181
    %v1262 = vunpack.c.h.b16 %v181
    %v1263 = vunpack.c.l.b16 %v182
    %v1264 = vunpack.c.h.b16 %v182
    %v1265 = vunpack.c.l.b16 %v183
    %v1266 = vunpack.c.h.b16 %v183
    %v1267 = vunpack.c.l.b16 %v184
    %v1268 = vunpack.c.h.b16 %v184
    %v1269 = vunpack.c.l.b16 %v185
    %v1270 = vunpack.c.h.b16 %v185
    %v1271 = vunpack.c.l.b16 %v186
    %v1272 = vunpack.c.h.b16 %v186
    %v1273 = vunpack.c.l.b16 %v187
    %v1274 = vunpack.c.h.b16 %v187
    %v1275 = vunpack.c.l.b16 %v188
    %v1276 = vunpack.c.h.b16 %v188
    %v1277 = vunpack.c.l.b16 %v189
    %v1278 = vunpack.c.h.b16 %v189
    %v1279 = vunpack.c.l.b16 %v190
    %v1280 = vunpack.c.h.b16 %v190
    %v1281 = vunpack.c.l.b16 %v191
    %v1282 = vunpack.c.h.b16 %v191
    %v1283 = vunpack.c.l.b16 %v192
    %v1284 = vunpack.c.h.b16 %v192
    %v1285 = vunpack.c.l.b16 %v193
    %v1286 = vunpack.c.h.b16 %v193
    %v1287 = vunpack.c.l.b16 %v194
    %v1288 = vunpack.c.h.b16 %v194
    %v1289 = vunpack.c.l.b16 %v195
    %v1290 = vunpack.c.h.b16 %v195
    %v1291 = vunpack.c.l.b16 %v196
    %v1292 = vunpack.c.h.b16 %v196
    %v1293 = vunpack.c.l.b16 %v197
    %v1294 = vunpack.c.h.b16 %v197
    %v1295 = vunpack.c.l.b16 %v198
    %v1296 = vunpack.c.h.b16 %v198
    %v1297 = vunpack.c.l.b16 %v199
    %v1298 = vunpack.c.h.b16 %v199
    %v1299 = vunpack.c.l.b16 %v200
    %v1300 = vunpack.c.h.b16 %v200
    %v1301 = vunpack.c.l.b16 %v201
    %v1302 = vunpack.c.h.b16 %v201
    %v1303 = vunpack.c.l.b16 %v202
    %v1304 = vunpack.c.h.b16 %v202
    %v1305 = vunpack.c.l.b16 %v203
    %v1306 = vunpack.c.h.b16 %v203
    %v1307 = vunpack.c.l.b16 %v204
    %v1308 = vunpack.c.h.b16 %v204
    %v1309 = vunpack.c.l.b16 %v205
    %v1310 = vunpack.c.h.b16 %v205
    %v1311 = vunpack.c.l.b16 %v206
    %v1312 = vunpack.c.h.b16 %v206
    %v1313 = vunpack.c.l.b16 %v207
    %v1314 = vunpack.c.h.b16 %v207
    %v1315 = vunpack.c.l.b16 %v208
    %v1316 = vunpack.c.h.b16 %v208
    %v1317 = vunpack.c.l.b16 %v209
    %v1318 = vunpack.c.h.b16 %v209
    %v1319 = vunpack.c.l.b16 %v210
    %v1320 = vunpack.c.h.b16 %v210
    %v1321 = vunpack.c.l.b16 %v211
    %v1322 = vunpack.c.h.b16 %v211
    %v1323 = vunpack.c.l.b16 %v212
    %v1324 = vunpack.c.h.b16 %v212
    %v1325 = vunpack.c.l.b16 %v213
    %v1326 = vunpack.c.h.b16 %v213
    %v1327 = vunpack.c.l.b16 %v214
    %v1328 = vunpack.c.h.b16 %v214
    %v1329 = vunpack.c.l.b16 %v215
    %v1330 = vunpack.c.h.b16 %v215
    %v1331 = vunpack.c.l.b16 %v216
    %v1332 = vunpack.c.h.b16 %v216
    %v1333 = vunpack.c.l.b16 %v217
    %v1334 = vunpack.c.h.b16 %v217
    %v1335 = vunpack.c.l.b16 %v218
    %v1336 = vunpack.c.h.b16 %v218
    %v1337 = vunpack.c.l.b16 %v219
    %v1338 = vunpack.c.h.b16 %v219
    %v1339 = vunpack.c.l.b16 %v220
    %v1340 = vunpack.c.h.b16 %v220
    %v1341 = vunpack.c.l.b16 %v221
    %v1342 = vunpack.c.h.b16 %v221
    %v1343 = vunpack.c.l.b16 %v222
    %v1344 = vunpack.c.h.b16 %v222
    %v1345 = vunpack.c.l.b16 %v223
    %v1346 = vunpack.c.h.b16 %v223
    %v1347 = vunpack.c.l.b16 %v224
    %v1348 = vunpack.c.h.b16 %v224
    %v1349 = vunpack.c.l.b16 %v225
    %v1350 = vunpack.c.h.b16 %v225
    %v1351 = vunpack.c.l.b16 %v226
    %v1352 = vunpack.c.h.b16 %v226
    %v1353 = vunpack.c.l.b16 %v227
    %v1354 = vunpack.c.h.b16 %v227
    %v1355 = vunpack.c.l.b16 %v228
    %v1356 = vunpack.c.h.b16 %v228
    %v1357 = vunpack.c.l.b16 %v229
    %v1358 = vunpack.c.h.b16 %v229
    %v1359 = vunpack.c.l.b16 %v230
    %v1360 = vunpack.c.h.b16 %v230
    %v1361 = vunpack.c.l.b16 %v231
    %v1362 = vunpack.c.h.b16 %v231
    %v1363 = vunpack.c.l.b16 %v232
    %v1364 = vunpack.c.h.b16 %v232
    %v1365 = vunpack.c.l.b16 %v233
    %v1366 = vunpack.c.h.b16 %v233
    %v1367 = vunpack.c.l.b16 %v234
    %v1368 = vunpack.c.h.b16 %v234
    %v1369 = vunpack.c.l.b16 %v235
    %v1370 = vunpack.c.h.b16 %v235
    %v1371 = vunpack.c.l.b16 %v236
    %v1372 = vunpack.c.h.b16 %v236
    %v1373 = vunpack.c.l.b16 %v237
    %v1374 = vunpack.c.h.b16 %v237
    %v1375 = vunpack.c.l.b16 %v238
    %v1376 = vunpack.c.h.b16 %v238
    %v1377 = vunpack.c.l.b16 %v239
    %v1378 = vunpack.c.h.b16 %v239
    %v1379 = vunpack.c.l.b16 %v240
    %v1380 = vunpack.c.h.b16 %v240
    %v1381 = vunpack.c.l.b16 %v241
    %v1382 = vunpack.c.h.b16 %v241
    %v1383 = vunpack.c.l.b16 %v242
    %v1384 = vunpack.c.h.b16 %v242
    %v1385 = vunpack.c.l.b16 %v243
    %v1386 = vunpack.c.h.b16 %v243
    %v1387 = vunpack.c.l.b16 %v244
    %v1388 = vunpack.c.h.b16 %v244
    %v1389 = vunpack.c.l.b16 %v245
    %v1390 = vunpack.c.h.b16 %v245
    %v1391 = vunpack.c.l.b16 %v246
    %v1392 = vunpack.c.h.b16 %v246
    %v1393 = vunpack.c.l.b16 %v247
    %v1394 = vunpack.c.h.b16 %v247
    %v1395 = vunpack.c.l.b16 %v248
    %v1396 = vunpack.c.h.b16 %v248
    %v1397 = vunpack.c.l.b16 %v249
    %v1398 = vunpack.c.h.b16 %v249
    %v1399 = vunpack.c.l.b16 %v250
    %v1400 = vunpack.c.h.b16 %v250
    %v1401 = vunpack.c.l.b16 %v251
    %v1402 = vunpack.c.h.b16 %v251
    %v1403 = vunpack.c.l.b16 %v252
    %v1404 = vunpack.c.h.b16 %v252
    %v1405 = vunpack.c.l.b16 %v253
    %v1406 = vunpack.c.h.b16 %v253
    %v1407 = vunpack.c.l.b16 %v254
    %v1408 = vunpack.c.h.b16 %v254
    %v1409 = vunpack.c.l.b16 %v255
    %v1410 = vunpack.c.h.b16 %v255
    %v1411 = vunpack.c.l.b16 %v256
    %v1412 = vunpack.c.h.b16 %v256
    %v1413 = vunpack.c.l.b16 %v257
    %v1414 = vunpack.c.h.b16 %v257
    %v1415 = vunpack.c.l.b16 %v258
    %v1416 = vunpack.c.h.b16 %v258
    %v1417 = vunpack.c.l.b16 %v259
    %v1418 = vunpack.c.h.b16 %v259
    %v1419 = vunpack.c.l.b16 %v260
    %v1420 = vunpack.c.h.b16 %v260
    %v1421 = vunpack.c.l.b16 %v261
    %v1422 = vunpack.c.h.b16 %v261
    %v1423 = vunpack.c.l.b16 %v262
    %v1424 = vunpack.c.h.b16 %v262
    %v1425 = vunpack.c.l.b16 %v263
    %v1426 = vunpack.c.h.b16 %v263
    %v1427 = vunpack.c.l.b16 %v264
    %v1428 = vunpack.c.h.b16 %v264
    %v1429 = vunpack.c.l.b16 %v265
    %v1430 = vunpack.c.h.b16 %v265
    %v1431 = vunpack.c.l.b16 %v266
    %v1432 = vunpack.c.h.b16 %v266
    %v1433 = vunpack.c.l.b16 %v267
    %v1434 = vunpack.c.h.b16 %v267
    %v1435 = vunpack.c.l.b16 %v268
    %v1436 = vunpack.c.h.b16 %v268
    %v1437 = vunpack.c.l.b16 %v269
    %v1438 = vunpack.c.h.b16 %v269
    %v1439 = vunpack.c.l.b16 %v270
    %v1440 = vunpack.c.h.b16 %v270
    %v1441 = vunpack.c.l.b16 %v271
    %v1442 = vunpack.c.h.b16 %v271
    %v1443 = vunpack.c.l.b16 %v272
    %v1444 = vunpack.c.h.b16 %v272
    %v1445 = vunpack.c.l.b16 %v273
    %v1446 = vunpack.c.h.b16 %v273
    %v1447 = vunpack.c.l.b16 %v274
    %v1448 = vunpack.c.h.b16 %v274
    %v1449 = vunpack.c.l.b16 %v275
    %v1450 = vunpack.c.h.b16 %v275
    %v1451 = vunpack.c.l.b16 %v276
    %v1452 = vunpack.c.h.b16 %v276
    %v1453 = vunpack.c.l.b16 %v277
    %v1454 = vunpack.c.h.b16 %v277
    %v1455 = vunpack.c.l.b16 %v278
    %v1456 = vunpack.c.h.b16 %v278
    %v1457 = vunpack.c.l.b16 %v279
    %v1458 = vunpack.c.h.b16 %v279
    %v1459 = vunpack.c.l.b16 %v280
    %v1460 = vunpack.c.h.b16 %v280
    %v1461 = vunpack.c.l.b16 %v281
    %v1462 = vunpack.c.h.b16 %v281
    %v1463 = vunpack.c.l.b16 %v282
    %v1464 = vunpack.c.h.b16 %v282
    %v1465 = vunpack.c.l.b16 %v283
    %v1466 = vunpack.c.h.b16 %v283
    %v1467 = vunpack.c.l.b16 %v284
    %v1468 = vunpack.c.h.b16 %v284
    %v1469 = vunpack.c.l.b16 %v285
    %v1470 = vunpack.c.h.b16 %v285
    %v1471 = vunpack.c.l.b16 %v286
    %v1472 = vunpack.c.h.b16 %v286
    %v1473 = vunpack.c.l.b16 %v287
    %v1474 = vunpack.c.h.b16 %v287
    %v1475 = vunpack.c.l.b16 %v288
    %v1476 = vunpack.c.h.b16 %v288
    %v1477 = vunpack.c.l.b16 %v289
    %v1478 = vunpack.c.h.b16 %v289
    %v1479 = vunpack.c.l.b16 %v290
    %v1480 = vunpack.c.h.b16 %v290
    %v1481 = vunpack.c.l.b16 %v291
    %v1482 = vunpack.c.h.b16 %v291
    %v1483 = vunpack.c.l.b16 %v292
    %v1484 = vunpack.c.h.b16 %v292
    %v1485 = vunpack.c.l.b16 %v293
    %v1486 = vunpack.c.h.b16 %v293
    %v1487 = vunpack.c.l.b16 %v294
    %v1488 = vunpack.c.h.b16 %v294
    %v1489 = vunpack.c.l.b16 %v295
    %v1490 = vunpack.c.h.b16 %v295
    %v1491 = vunpack.c.l.b16 %v296
    %v1492 = vunpack.c.h.b16 %v296
    %v1493 = vunpack.c.l.b16 %v297
    %v1494 = vunpack.c.h.b16 %v297
    %v1495 = vunpack.c.l.b16 %v298
    %v1496 = vunpack.c.h.b16 %v298
    %v1497 = vunpack.c.l.b16 %v299
    %v1498 = vunpack.c.h.b16 %v299
    %v1499 = vunpack.c.l.b16 %v300
    %v1500 = vunpack.c.h.b16 %v300
    %v1501 = vunpack.c.l.b16 %v301
    %v1502 = vunpack.c.h.b16 %v301
    %v1503 = vunpack.c.l.b16 %v302
    %v1504 = vunpack.c.h.b16 %v302
    %v1505 = vunpack.c.l.b16 %v303
    %v1506 = vunpack.c.h.b16 %v303
    %v1507 = vunpack.c.l.b16 %v304
    %v1508 = vunpack.c.h.b16 %v304
    %v1509 = vunpack.c.l.b16 %v305
    %v1510 = vunpack.c.h.b16 %v305
    %v1511 = vunpack.c.l.b16 %v306
    %v1512 = vunpack.c.h.b16 %v306
    %v1513 = vunpack.c.l.b16 %v307
    %v1514 = vunpack.c.h.b16 %v307
    %v1515 = vunpack.c.l.b16 %v308
    %v1516 = vunpack.c.h.b16 %v308
    %v1517 = vunpack.c.l.b16 %v309
    %v1518 = vunpack.c.h.b16 %v309
    %v1519 = vunpack.c.l.b16 %v310
    %v1520 = vunpack.c.h.b16 %v310
    %v1521 = vunpack.c.l.b16 %v311
    %v1522 = vunpack.c.h.b16 %v311
    %v1523 = vunpack.c.l.b16 %v312
    %v1524 = vunpack.c.h.b16 %v312
    %v1525 = vunpack.c.l.b16 %v313
    %v1526 = vunpack.c.h.b16 %v313
    %v1527 = vunpack.c.l.b16 %v314
    %v1528 = vunpack.c.h.b16 %v314
    %v1529 = vunpack.c.l.b16 %v315
    %v1530 = vunpack.c.h.b16 %v315
    %v1531 = vunpack.c.l.b16 %v316
    %v1532 = vunpack.c.h.b16 %v316
    %v1533 = vunpack.c.l.b16 %v317
    %v1534 = vunpack.c.h.b16 %v317
    %v1535 = vunpack.c.l.b16 %v318
    %v1536 = vunpack.c.h.b16 %v318
    %v1537 = vunpack.c.l.b16 %v319
    %v1538 = vunpack.c.h.b16 %v319
    %v1539 = vunpack.c.l.b16 %v320
    %v1540 = vunpack.c.h.b16 %v320
    %v1541 = vunpack.c.l.b16 %v321
    %v1542 = vunpack.c.h.b16 %v321
    %v1543 = vunpack.c.l.b16 %v322
    %v1544 = vunpack.c.h.b16 %v322
    %v1545 = vunpack.c.l.b16 %v323
    %v1546 = vunpack.c.h.b16 %v323
    %v1547 = vunpack.c.l.b16 %v324
    %v1548 = vunpack.c.h.b16 %v324
    %v1549 = vunpack.c.l.b16 %v325
    %v1550 = vunpack.c.h.b16 %v325
    %v1551 = vunpack.c.l.b16 %v326
    %v1552 = vunpack.c.h.b16 %v326
    %v1553 = vunpack.c.l.b16 %v327
    %v1554 = vunpack.c.h.b16 %v327
    %v1555 = vunpack.c.l.b16 %v328
    %v1556 = vunpack.c.h.b16 %v328
    %v1557 = vunpack.c.l.b16 %v329
    %v1558 = vunpack.c.h.b16 %v329
    %v1559 = vunpack.c.l.b16 %v330
    %v1560 = vunpack.c.h.b16 %v330
    %v1561 = vunpack.c.l.b16 %v331
    %v1562 = vunpack.c.h.b16 %v331
    %v1563 = vunpack.c.l.b16 %v332
    %v1564 = vunpack.c.h.b16 %v332
    %v1565 = vunpack.c.l.b16 %v333
    %v1566 = vunpack.c.h.b16 %v333
    %v1567 = vunpack.c.l.b16 %v334
    %v1568 = vunpack.c.h.b16 %v334
    %v1569 = vunpack.c.l.b16 %v335
    %v1570 = vunpack.c.h.b16 %v335
    %v1571 = vunpack.c.l.b16 %v336
    %v1572 = vunpack.c.h.b16 %v336
    %v1573 = vunpack.c.l.b16 %v337
    %v1574 = vunpack.c.h.b16 %v337
    %v1575 = vunpack.c.l.b16 %v338
    %v1576 = vunpack.c.h.b16 %v338
    %v1577 = vunpack.c.l.b16 %v339
    %v1578 = vunpack.c.h.b16 %v339
    %v1579 = vunpack.c.l.b16 %v340
    %v1580 = vunpack.c.h.b16 %v340
    %v1581 = vunpack.c.l.b16 %v341
    %v1582 = vunpack.c.h.b16 %v341
    %v1583 = vunpack.c.l.b16 %v342
    %v1584 = vunpack.c.h.b16 %v342
    %v1585 = vunpack.c.l.b16 %v343
    %v1586 = vunpack.c.h.b16 %v343
    %v1587 = vunpack.c.l.b16 %v344
    %v1588 = vunpack.c.h.b16 %v344
    %v1589 = vunpack.c.l.b16 %v345
    %v1590 = vunpack.c.h.b16 %v345
    %v1591 = vunpack.c.l.b16 %v346
    %v1592 = vunpack.c.h.b16 %v346
    %v1593 = vunpack.c.l.b16 %v347
    %v1594 = vunpack.c.h.b16 %v347
    %v1595 = vunpack.c.l.b16 %v348
    %v1596 = vunpack.c.h.b16 %v348
    %v1597 = vunpack.c.l.b16 %v349
    %v1598 = vunpack.c.h.b16 %v349
    %v1599 = vunpack.c.l.b16 %v350
    %v1600 = vunpack.c.h.b16 %v350
    %v1601 = vunpack.c.l.b16 %v351
    %v1602 = vunpack.c.h.b16 %v351
    %v1603 = vunpack.c.l.b16 %v352
    %v1604 = vunpack.c.h.b16 %v352
    %v1605 = vunpack.c.l.b16 %v353
    %v1606 = vunpack.c.h.b16 %v353
    %v1607 = vunpack.c.l.b16 %v354
    %v1608 = vunpack.c.h.b16 %v354
    %v1609 = vunpack.c.l.b16 %v355
    %v1610 = vunpack.c.h.b16 %v355
    %v1611 = vunpack.c.l.b16 %v356
    %v1612 = vunpack.c.h.b16 %v356
    %v1613 = vunpack.c.l.b16 %v357
    %v1614 = vunpack.c.h.b16 %v357
    %v1615 = vunpack.c.l.b16 %v358
    %v1616 = vunpack.c.h.b16 %v358
    %v1617 = vunpack.c.l.b16 %v359
    %v1618 = vunpack.c.h.b16 %v359
    %v1619 = vunpack.c.l.b16 %v360
    %v1620 = vunpack.c.h.b16 %v360
    %v1621 = vunpack.c.l.b16 %v361
    %v1622 = vunpack.c.h.b16 %v361
    %v1623 = vunpack.c.l.b16 %v362
    %v1624 = vunpack.c.h.b16 %v362
    %v1625 = vunpack.c.l.b16 %v363
    %v1626 = vunpack.c.h.b16 %v363
    %v1627 = vunpack.c.l.b16 %v364
    %v1628 = vunpack.c.h.b16 %v364
    %v1629 = vunpack.c.l.b16 %v365
    %v1630 = vunpack.c.h.b16 %v365
    %v1631 = vunpack.c.l.b16 %v366
    %v1632 = vunpack.c.h.b16 %v366
    %v1633 = vunpack.c.l.b16 %v367
    %v1634 = vunpack.c.h.b16 %v367
    %v1635 = vunpack.c.l.b16 %v368
    %v1636 = vunpack.c.h.b16 %v368
    %v1637 = vunpack.c.l.b16 %v369
    %v1638 = vunpack.c.h.b16 %v369
    %v1639 = vunpack.c.l.b16 %v370
    %v1640 = vunpack.c.h.b16 %v370
    %v1641 = vunpack.c.l.b16 %v371
    %v1642 = vunpack.c.h.b16 %v371
    %v1643 = vunpack.c.l.b16 %v372
    %v1644 = vunpack.c.h.b16 %v372
    %v1645 = vunpack.c.l.b16 %v373
    %v1646 = vunpack.c.h.b16 %v373
    %v1647 = vunpack.c.l.b16 %v374
    %v1648 = vunpack.c.h.b16 %v374
    %v1649 = vunpack.c.l.b16 %v375
    %v1650 = vunpack.c.h.b16 %v375
    %v1651 = vunpack.c.l.b16 %v376
    %v1652 = vunpack.c.h.b16 %v376
    %v1653 = vunpack.c.l.b16 %v377
    %v1654 = vunpack.c.h.b16 %v377
    %v1655 = vunpack.c.l.b16 %v378
    %v1656 = vunpack.c.h.b16 %v378
    %v1657 = vunpack.c.l.b16 %v379
    %v1658 = vunpack.c.h.b16 %v379
    %v1659 = vunpack.c.l.b16 %v380
    %v1660 = vunpack.c.h.b16 %v380
    %v1661 = vunpack.c.l.b16 %v381
    %v1662 = vunpack.c.h.b16 %v381
    %v1663 = vunpack.c.l.b16 %v382
    %v1664 = vunpack.c.h.b16 %v382
    %v1665 = vunpack.c.l.b16 %v383
    %v1666 = vunpack.c.h.b16 %v383
    %v1667 = vunpack.c.l.b16 %v384
    %v1668 = vunpack.c.h.b16 %v384
    %v1669 = vunpack.c.l.b16 %v385
    %v1670 = vunpack.c.h.b16 %v385
    %v1671 = vunpack.c.l.b16 %v386
    %v1672 = vunpack.c.h.b16 %v386
    %v1673 = vunpack.c.l.b16 %v387
    %v1674 = vunpack.c.h.b16 %v387
    %v1675 = vunpack.c.l.b16 %v388
    %v1676 = vunpack.c.h.b16 %v388
    %v1677 = vunpack.c.l.b16 %v389
    %v1678 = vunpack.c.h.b16 %v389
    %v1679 = vunpack.c.l.b16 %v390
    %v1680 = vunpack.c.h.b16 %v390
    %v1681 = vunpack.c.l.b16 %v391
    %v1682 = vunpack.c.h.b16 %v391
    %v1683 = vunpack.c.l.b16 %v392
    %v1684 = vunpack.c.h.b16 %v392
    %v1685 = vunpack.c.l.b16 %v393
    %v1686 = vunpack.c.h.b16 %v393
    %v1687 = vunpack.c.l.b16 %v394
    %v1688 = vunpack.c.h.b16 %v394
    %v1689 = vunpack.c.l.b16 %v395
    %v1690 = vunpack.c.h.b16 %v395
    %v1691 = vunpack.c.l.b16 %v396
    %v1692 = vunpack.c.h.b16 %v396
    %v1693 = vunpack.c.l.b16 %v397
    %v1694 = vunpack.c.h.b16 %v397
    %v1695 = vunpack.c.l.b16 %v398
    %v1696 = vunpack.c.h.b16 %v398
    %v1697 = vunpack.c.l.b16 %v399
    %v1698 = vunpack.c.h.b16 %v399
    %v1699 = vunpack.c.l.b16 %v400
    %v1700 = vunpack.c.h.b16 %v400
    %v1701 = vunpack.c.l.b16 %v401
    %v1702 = vunpack.c.h.b16 %v401
    %v1703 = vunpack.c.l.b16 %v402
    %v1704 = vunpack.c.h.b16 %v402
    %v1705 = vunpack.c.l.b16 %v403
    %v1706 = vunpack.c.h.b16 %v403
    %v1707 = vunpack.c.l.b16 %v404
    %v1708 = vunpack.c.h.b16 %v404
    %v1709 = vunpack.c.l.b16 %v405
    %v1710 = vunpack.c.h.b16 %v405
    %v1711 = vunpack.c.l.b16 %v406
    %v1712 = vunpack.c.h.b16 %v406
    %v1713 = vunpack.c.l.b16 %v407
    %v1714 = vunpack.c.h.b16 %v407
    %v1715 = vunpack.c.l.b16 %v408
    %v1716 = vunpack.c.h.b16 %v408
    %v1717 = vunpack.c.l.b16 %v409
    %v1718 = vunpack.c.h.b16 %v409
    %v1719 = vunpack.c.l.b16 %v410
    %v1720 = vunpack.c.h.b16 %v410
    %v1721 = vunpack.c.l.b16 %v411
    %v1722 = vunpack.c.h.b16 %v411
    %v1723 = vunpack.c.l.b16 %v412
    %v1724 = vunpack.c.h.b16 %v412
    %v1725 = vunpack.c.l.b16 %v413
    %v1726 = vunpack.c.h.b16 %v413
    %v1727 = vunpack.c.l.b16 %v414
    %v1728 = vunpack.c.h.b16 %v414
    %v1729 = vunpack.c.l.b16 %v415
    %v1730 = vunpack.c.h.b16 %v415
    %v1731 = vunpack.c.l.b16 %v416
    %v1732 = vunpack.c.h.b16 %v416
    %v1733 = vunpack.c.l.b16 %v417
    %v1734 = vunpack.c.h.b16 %v417
    %v1735 = vunpack.c.l.b16 %v418
    %v1736 = vunpack.c.h.b16 %v418
    %v1737 = vunpack.c.l.b16 %v419
    %v1738 = vunpack.c.h.b16 %v419
    %v1739 = vunpack.c.l.b16 %v420
    %v1740 = vunpack.c.h.b16 %v420
    %v1741 = vunpack.c.l.b16 %v421
    %v1742 = vunpack.c.h.b16 %v421
    %v1743 = vunpack.c.l.b16 %v422
    %v1744 = vunpack.c.h.b16 %v422
    %v1745 = vunpack.c.l.b16 %v423
    %v1746 = vunpack.c.h.b16 %v423
    %v1747 = vunpack.c.l.b16 %v424
    %v1748 = vunpack.c.h.b16 %v424
    %v1749 = vunpack.c.l.b16 %v425
    %v1750 = vunpack.c.h.b16 %v425
    %v1751 = vunpack.c.l.b16 %v426
    %v1752 = vunpack.c.h.b16 %v426
    %v1753 = vunpack.c.l.b16 %v427
    %v1754 = vunpack.c.h.b16 %v427
    %v1755 = vunpack.c.l.b16 %v428
    %v1756 = vunpack.c.h.b16 %v428
    %v1757 = vunpack.c.l.b16 %v429
    %v1758 = vunpack.c.h.b16 %v429
    %v1759 = vunpack.c.l.b16 %v430
    %v1760 = vunpack.c.h.b16 %v430
    %v1761 = vunpack.c.l.b16 %v431
    %v1762 = vunpack.c.h.b16 %v431
    %v1763 = vunpack.c.l.b16 %v432
    %v1764 = vunpack.c.h.b16 %v432
    %v1765 = vunpack.c.l.b16 %v433
    %v1766 = vunpack.c.h.b16 %v433
    %v1767 = vunpack.c.l.b16 %v434
    %v1768 = vunpack.c.h.b16 %v434
    %v1769 = vunpack.c.l.b16 %v435
    %v1770 = vunpack.c.h.b16 %v435
    %v1771 = vunpack.c.l.b16 %v436
    %v1772 = vunpack.c.h.b16 %v436
    %v1773 = vunpack.c.l.b16 %v437
    %v1774 = vunpack.c.h.b16 %v437
    %v1775 = vunpack.c.l.b16 %v438
    %v1776 = vunpack.c.h.b16 %v438
    %v1777 = vunpack.c.l.b16 %v439
    %v1778 = vunpack.c.h.b16 %v439
    %v1779 = vunpack.c.l.b16 %v440
    %v1780 = vunpack.c.h.b16 %v440
    %v1781 = vunpack.c.l.b16 %v441
    %v1782 = vunpack.c.h.b16 %v441
    %v1783 = vunpack.c.l.b16 %v442
    %v1784 = vunpack.c.h.b16 %v442
    %v1785 = vunpack.c.l.b16 %v443
    %v1786 = vunpack.c.h.b16 %v443
    %v1787 = vunpack.c.l.b16 %v444
    %v1788 = vunpack.c.h.b16 %v444
    %v1789 = vunpack.c.l.b16 %v445
    %v1790 = vunpack.c.h.b16 %v445
    %v1791 = vunpack.c.l.b16 %v446
    %v1792 = vunpack.c.h.b16 %v446
    %v1793 = vunpack.c.l.b16 %v447
    %v1794 = vunpack.c.h.b16 %v447
    %v1795 = vunpack.c.l.b16 %v448
    %v1796 = vunpack.c.h.b16 %v448
    %v1797 = vunpack.c.l.b16 %v449
    %v1798 = vunpack.c.h.b16 %v449
    %v1799 = vunpack.c.l.b16 %v450
    %v1800 = vunpack.c.h.b16 %v450
    %v1801 = vunpack.c.l.b16 %v451
    %v1802 = vunpack.c.h.b16 %v451
    %v1803 = vunpack.c.l.b16 %v452
    %v1804 = vunpack.c.h.b16 %v452
    %v1805 = vunpack.c.l.b16 %v453
    %v1806 = vunpack.c.h.b16 %v453
    %v1807 = vunpack.c.l.b16 %v454
    %v1808 = vunpack.c.h.b16 %v454
    %v1809 = vunpack.c.l.b16 %v455
    %v1810 = vunpack.c.h.b16 %v455
    %v1811 = vunpack.c.l.b16 %v456
    %v1812 = vunpack.c.h.b16 %v456
    %v1813 = vunpack.c.l.b16 %v457
    %v1814 = vunpack.c.h.b16 %v457
    %v1815 = vunpack.c.l.b16 %v458
    %v1816 = vunpack.c.h.b16 %v458
    %v1817 = vunpack.c.l.b16 %v459
    %v1818 = vunpack.c.h.b16 %v459
    %v1819 = vunpack.c.l.b16 %v460
    %v1820 = vunpack.c.h.b16 %v460
    %v1821 = vunpack.c.l.b16 %v461
    %v1822 = vunpack.c.h.b16 %v461
    %v1823 = vunpack.c.l.b16 %v462
    %v1824 = vunpack.c.h.b16 %v462
    %v1825 = vunpack.c.l.b16 %v463
    %v1826 = vunpack.c.h.b16 %v463
    %v1827 = vunpack.c.l.b16 %v464
    %v1828 = vunpack.c.h.b16 %v464
    %v1829 = vunpack.c.l.b16 %v465
    %v1830 = vunpack.c.h.b16 %v465
    %v1831 = vunpack.c.l.b16 %v466
    %v1832 = vunpack.c.h.b16 %v466
    %v1833 = vunpack.c.l.b16 %v467
    %v1834 = vunpack.c.h.b16 %v467
    %v1835 = vunpack.c.l.b16 %v468
    %v1836 = vunpack.c.h.b16 %v468
    %v1837 = vunpack.c.l.b16 %v469
    %v1838 = vunpack.c.h.b16 %v469
    %v1839 = vunpack.c.l.b16 %v470
    %v1840 = vunpack.c.h.b16 %v470
    %v1841 = vunpack.c.l.b16 %v471
    %v1842 = vunpack.c.h.b16 %v471
    %v1843 = vunpack.c.l.b16 %v472
    %v1844 = vunpack.c.h.b16 %v472
    %v1845 = vunpack.c.l.b16 %v473
    %v1846 = vunpack.c.h.b16 %v473
    %v1847 = vunpack.c.l.b16 %v474
    %v1848 = vunpack.c.h.b16 %v474
    %v1849 = vunpack.c.l.b16 %v475
    %v1850 = vunpack.c.h.b16 %v475
    %v1851 = vunpack.c.l.b16 %v476
    %v1852 = vunpack.c.h.b16 %v476
    %v1853 = vunpack.c.l.b16 %v477
    %v1854 = vunpack.c.h.b16 %v477
    %v1855 = vunpack.c.l.b16 %v478
    %v1856 = vunpack.c.h.b16 %v478
    %v1857 = vunpack.c.l.b16 %v479
    %v1858 = vunpack.c.h.b16 %v479
    %v1859 = vunpack.c.l.b16 %v480
    %v1860 = vunpack.c.h.b16 %v480
    %v1861 = vunpack.c.l.b16 %v481
    %v1862 = vunpack.c.h.b16 %v481
    %v1863 = vunpack.c.l.b16 %v482
    %v1864 = vunpack.c.h.b16 %v482
    %v1865 = vunpack.c.l.b16 %v483
    %v1866 = vunpack.c.h.b16 %v483
    %v1867 = vunpack.c.l.b16 %v484
    %v1868 = vunpack.c.h.b16 %v484
    %v1869 = vunpack.c.l.b16 %v485
    %v1870 = vunpack.c.h.b16 %v485
    %v1871 = vunpack.c.l.b16 %v486
    %v1872 = vunpack.c.h.b16 %v486
    %v1873 = vunpack.c.l.b16 %v487
    %v1874 = vunpack.c.h.b16 %v487
    %v1875 = vunpack.c.l.b16 %v488
    %v1876 = vunpack.c.h.b16 %v488
    %v1877 = vunpack.c.l.b16 %v489
    %v1878 = vunpack.c.h.b16 %v489
    %v1879 = vunpack.c.l.b16 %v490
    %v1880 = vunpack.c.h.b16 %v490
    %v1881 = vunpack.c.l.b16 %v491
    %v1882 = vunpack.c.h.b16 %v491
    %v1883 = vunpack.c.l.b16 %v492
    %v1884 = vunpack.c.h.b16 %v492
    %v1885 = vunpack.c.l.b16 %v493
    %v1886 = vunpack.c.h.b16 %v493
    %v1887 = vunpack.c.l.b16 %v494
    %v1888 = vunpack.c.h.b16 %v494
    %v1889 = vunpack.c.l.b16 %v495
    %v1890 = vunpack.c.h.b16 %v495
    %v1891 = vunpack.c.l.b16 %v496
    %v1892 = vunpack.c.h.b16 %v496
    %v1893 = vunpack.c.l.b16 %v497
    %v1894 = vunpack.c.h.b16 %v497
    %v1895 = vunpack.c.l.b16 %v498
    %v1896 = vunpack.c.h.b16 %v498
    %v1897 = vunpack.c.l.b16 %v499
    %v1898 = vunpack.c.h.b16 %v499
    %v1899 = vunpack.c.l.b16 %v500
    %v1900 = vunpack.c.h.b16 %v500
    %v1901 = vunpack.c.l.b16 %v501
    %v1902 = vunpack.c.h.b16 %v501
    %v1903 = vunpack.c.l.b16 %v502
    %v1904 = vunpack.c.h.b16 %v502
    %v1905 = vunpack.c.l.b16 %v503
    %v1906 = vunpack.c.h.b16 %v503
    %v1907 = vunpack.c.l.b16 %v504
    %v1908 = vunpack.c.h.b16 %v504
    %v1909 = vunpack.c.l.b16 %v505
    %v1910 = vunpack.c.h.b16 %v505
    %v1911 = vunpack.c.l.b16 %v506
    %v1912 = vunpack.c.h.b16 %v506
    %v1913 = vunpack.c.l.b16 %v507
    %v1914 = vunpack.c.h.b16 %v507
    %v1915 = vunpack.c.l.b16 %v508
    %v1916 = vunpack.c.h.b16 %v508
    %v1917 = vunpack.c.l.b16 %v509
    %v1918 = vunpack.c.h.b16 %v509
    %v1919 = vunpack.c.l.b16 %v510
    %v1920 = vunpack.c.h.b16 %v510
    %v1921 = vunpack.c.l.b16 %v511
    %v1922 = vunpack.c.h.b16 %v511
    %v1923 = vunpack.c.l.b16 %v512
    %v1924 = vunpack.c.h.b16 %v512
    %v1925 = vunpack.c.l.b16 %v513
    %v1926 = vunpack.c.h.b16 %v513
    %v1927 = vunpack.c.l.b16 %v514
    %v1928 = vunpack.c.h.b16 %v514
    %v1929 = vunpack.c.l.b16 %v515
    %v1930 = vunpack.c.h.b16 %v515
    %v1931 = vunpack.c.l.b16 %v516
    %v1932 = vunpack.c.h.b16 %v516
    %v1933 = vunpack.c.l.b16 %v517
    %v1934 = vunpack.c.h.b16 %v517
    %v1935 = vunpack.c.l.b16 %v518
    %v1936 = vunpack.c.h.b16 %v518
    %v1937 = vunpack.c.l.b16 %v519
    %v1938 = vunpack.c.h.b16 %v519
    %v1939 = vunpack.c.l.b16 %v520
    %v1940 = vunpack.c.h.b16 %v520
    %v1941 = vunpack.c.l.b16 %v521
    %v1942 = vunpack.c.h.b16 %v521
    %v1943 = vunpack.c.l.b16 %v522
    %v1944 = vunpack.c.h.b16 %v522
    %v1945 = vunpack.c.l.b16 %v523
    %v1946 = vunpack.c.h.b16 %v523
    %v1947 = vunpack.c.l.b16 %v524
    %v1948 = vunpack.c.h.b16 %v524
    %v1949 = vunpack.c.l.b16 %v525
    %v1950 = vunpack.c.h.b16 %v525
    %v1951 = vunpack.c.l.b16 %v526
    %v1952 = vunpack.c.h.b16 %v526
    %v1953 = vunpack.c.l.b16 %v527
    %v1954 = vunpack.c.h.b16 %v527
    %v1955 = vunpack.c.l.b16 %v528
    %v1956 = vunpack.c.h.b16 %v528
    %v1957 = vunpack.c.l.b16 %v529
    %v1958 = vunpack.c.h.b16 %v529
    %v1959 = vunpack.c.l.b16 %v530
    %v1960 = vunpack.c.h.b16 %v530
    %v1961 = vunpack.c.l.b16 %v531
    %v1962 = vunpack.c.h.b16 %v531
    %v1963 = vunpack.c.l.b16 %v532
    %v1964 = vunpack.c.h.b16 %v532
    %v1965 = vunpack.c.l.b16 %v533
    %v1966 = vunpack.c.h.b16 %v533
    %v1967 = vunpack.c.l.b16 %v534
    %v1968 = vunpack.c.h.b16 %v534
    %v1969 = vunpack.c.l.b16 %v535
    %v1970 = vunpack.c.h.b16 %v535
    %v1971 = vunpack.c.l.b16 %v536
    %v1972 = vunpack.c.h.b16 %v536
    %v1973 = vunpack.c.l.b16 %v537
    %v1974 = vunpack.c.h.b16 %v537
    %v1975 = vunpack.c.l.b16 %v538
    %v1976 = vunpack.c.h.b16 %v538
    %v1977 = vunpack.c.l.b16 %v539
    %v1978 = vunpack.c.h.b16 %v539
    %v1979 = vunpack.c.l.b16 %v540
    %v1980 = vunpack.c.h.b16 %v540
    %v1981 = vunpack.c.l.b16 %v541
    %v1982 = vunpack.c.h.b16 %v541
    %v1983 = vunpack.c.l.b16 %v542
    %v1984 = vunpack.c.h.b16 %v542
    %v1985 = vunpack.c.l.b16 %v543
    %v1986 = vunpack.c.h.b16 %v543
    %v1987 = vunpack.c.l.b16 %v544
    %v1988 = vunpack.c.h.b16 %v544
    %v1989 = vunpack.c.l.b16 %v545
    %v1990 = vunpack.c.h.b16 %v545
    %v1991 = vunpack.c.l.b16 %v546
    %v1992 = vunpack.c.h.b16 %v546
    %v1993 = vunpack.c.l.b16 %v547
    %v1994 = vunpack.c.h.b16 %v547
    %v1995 = vunpack.c.l.b16 %v548
    %v1996 = vunpack.c.h.b16 %v548
    %v1997 = vunpack.c.l.b16 %v549
    %v1998 = vunpack.c.h.b16 %v549
    %v1999 = vunpack.c.l.b16 %v550
    %v2000 = vunpack.c.h.b16 %v550
    %v2001 = vunpack.c.l.b16 %v551
    %v2002 = vunpack.c.h.b16 %v551
    %v2003 = vunpack.c.l.b16 %v552
    %v2004 = vunpack.c.h.b16 %v552
    %v2005 = vunpack.c.l.b16 %v553
    %v2006 = vunpack.c.h.b16 %v553
    %v2007 = vunpack.c.l.b16 %v554
    %v2008 = vunpack.c.h.b16 %v554
    %v2009 = vunpack.c.l.b16 %v555
    %v2010 = vunpack.c.h.b16 %v555
    %v2011 = vunpack.c.l.b16 %v556
    %v2012 = vunpack.c.h.b16 %v556
    %v2013 = vunpack.c.l.b16 %v557
    %v2014 = vunpack.c.h.b16 %v557
    %v2015 = vunpack.c.l.b16 %v558
    %v2016 = vunpack.c.h.b16 %v558
    %v2017 = vunpack.c.l.b16 %v559
    %v2018 = vunpack.c.h.b16 %v559
    %v2019 = vunpack.c.l.b16 %v560
    %v2020 = vunpack.c.h.b16 %v560
    %v2021 = vunpack.c.l.b16 %v561
    %v2022 = vunpack.c.h.b16 %v561
    %v2023 = vunpack.c.l.b16 %v562
    %v2024 = vunpack.c.h.b16 %v562
    %v2025 = vunpack.c.l.b16 %v563
    %v2026 = vunpack.c.h.b16 %v563
    %v2027 = vunpack.c.l.b16 %v564
    %v2028 = vunpack.c.h.b16 %v564
    %v2029 = vunpack.c.l.b16 %v565
    %v2030 = vunpack.c.h.b16 %v565
    %v2031 = vunpack.c.l.b16 %v566
    %v2032 = vunpack.c.h.b16 %v566
    %v2033 = vunpack.c.l.b16 %v567
    %v2034 = vunpack.c.h.b16 %v567
    %v2035 = vunpack.c.l.b16 %v568
    %v2036 = vunpack.c.h.b16 %v568
    %v2037 = vunpack.c.l.b16 %v569
    %v2038 = vunpack.c.h.b16 %v569
    %v2039 = vunpack.c.l.b16 %v570
    %v2040 = vunpack.c.h.b16 %v570
    %v2041 = vunpack.c.l.b16 %v571
    %v2042 = vunpack.c.h.b16 %v571
    %v2043 = vunpack.c.l.b16 %v572
    %v2044 = vunpack.c.h.b16 %v572
    %v2045 = vunpack.c.l.b16 %v573
    %v2046 = vunpack.c.h.b16 %v573
    %v2047 = vunpack.c.l.b16 %v574
    %v2048 = vunpack.c.h.b16 %v574
    %v2049 = vunpack.c.l.b16 %v575
    %v2050 = vunpack.c.h.b16 %v575
    %v2051 = vunpack.c.l.b16 %v576
    %v2052 = vunpack.c.h.b16 %v576
    %v2053 = vunpack.c.l.b16 %v577
    %v2054 = vunpack.c.h.b16 %v577
    %v2055 = vunpack.c.l.b16 %v578
    %v2056 = vunpack.c.h.b16 %v578
    %v2057 = vunpack.c.l.b16 %v579
    %v2058 = vunpack.c.h.b16 %v579
    %v2059 = vunpack.c.l.b16 %v580
    %v2060 = vunpack.c.h.b16 %v580
    %v2061 = vunpack.c.l.b16 %v581
    %v2062 = vunpack.c.h.b16 %v581
    %v2063 = vunpack.c.l.b16 %v582
    %v2064 = vunpack.c.h.b16 %v582
    %v2065 = vunpack.c.l.b16 %v583
    %v2066 = vunpack.c.h.b16 %v583
    %v2067 = vunpack.c.l.b16 %v584
    %v2068 = vunpack.c.h.b16 %v584
    %v2069 = vunpack.c.l.b16 %v585
    %v2070 = vunpack.c.h.b16 %v585
    %v2071 = vunpack.c.l.b16 %v586
    %v2072 = vunpack.c.h.b16 %v586
    %v2073 = vunpack.c.l.b16 %v587
    %v2074 = vunpack.c.h.b16 %v587
    %v2075 = vunpack.c.l.b16 %v588
    %v2076 = vunpack.c.h.b16 %v588
    %v2077 = vunpack.c.l.b16 %v589
    %v2078 = vunpack.c.h.b16 %v589
    %v2079 = vunpack.c.l.b16 %v590
    %v2080 = vunpack.c.h.b16 %v590
    %v2081 = vunpack.c.l.b16 %v591
    %v2082 = vunpack.c.h.b16 %v591
    %v2083 = vunpack.c.l.b16 %v592
    %v2084 = vunpack.c.h.b16 %v592
    %v2085 = vunpack.c.l.b16 %v593
    %v2086 = vunpack.c.h.b16 %v593
    %v2087 = vunpack.c.l.b16 %v594
    %v2088 = vunpack.c.h.b16 %v594
    %v2089 = vunpack.c.l.b16 %v595
    %v2090 = vunpack.c.h.b16 %v595
    %v2091 = vunpack.c.l.b16 %v596
    %v2092 = vunpack.c.h.b16 %v596
    %v2093 = vunpack.c.l.b16 %v597
    %v2094 = vunpack.c.h.b16 %v597
    %v2095 = vunpack.c.l.b16 %v598
    %v2096 = vunpack.c.h.b16 %v598
    %v2097 = vunpack.c.l.b16 %v599
    %v2098 = vunpack.c.h.b16 %v599
    %v2099 = vunpack.c.l.b16 %v600
    %v2100 = vunpack.c.h.b16 %v600
    %v2101 = vunpack.c.l.b16 %v601
    %v2102 = vunpack.c.h.b16 %v601
    %v2103 = vunpack.c.l.b16 %v602
    %v2104 = vunpack.c.h.b16 %v602
    %v2105 = vunpack.c.l.b16 %v603
    %v2106 = vunpack.c.h.b16 %v603
    %v2107 = vunpack.c.l.b16 %v604
    %v2108 = vunpack.c.h.b16 %v604
    %v2109 = vunpack.c.l.b16 %v605
    %v2110 = vunpack.c.h.b16 %v605
    %v2111 = vunpack.c.l.b16 %v606
    %v2112 = vunpack.c.h.b16 %v606
    %v2113 = vunpack.c.l.b16 %v607
    %v2114 = vunpack.c.h.b16 %v607
    %v2115 = vunpack.c.l.b16 %v608
    %v2116 = vunpack.c.h.b16 %v608
    %v2117 = vunpack.c.l.b16 %v609
    %v2118 = vunpack.c.h.b16 %v609
    %v2119 = vunpack.c.l.b16 %v610
    %v2120 = vunpack.c.h.b16 %v610
    %v2121 = vunpack.c.l.b16 %v611
    %v2122 = vunpack.c.h.b16 %v611
    %v2123 = vunpack.c.l.b16 %v612
    %v2124 = vunpack.c.h.b16 %v612
    %v2125 = vunpack.c.l.b16 %v613
    %v2126 = vunpack.c.h.b16 %v613
    %v2127 = vunpack.c.l.b16 %v614
    %v2128 = vunpack.c.h.b16 %v614
    %v2129 = vunpack.c.l.b16 %v615
    %v2130 = vunpack.c.h.b16 %v615
    %v2131 = vunpack.c.l.b16 %v616
    %v2132 = vunpack.c.h.b16 %v616
    %v2133 = vunpack.c.l.b16 %v617
    %v2134 = vunpack.c.h.b16 %v617
    %v2135 = vunpack.c.l.b16 %v618
    %v2136 = vunpack.c.h.b16 %v618
    %v2137 = vunpack.c.l.b16 %v619
    %v2138 = vunpack.c.h.b16 %v619
    %v2139 = vunpack.c.l.b16 %v620
    %v2140 = vunpack.c.h.b16 %v620
    %v2141 = vunpack.c.l.b16 %v621
    %v2142 = vunpack.c.h.b16 %v621
    %v2143 = vunpack.c.l.b16 %v622
    %v2144 = vunpack.c.h.b16 %v622
    %v2145 = vunpack.c.l.b16 %v623
    %v2146 = vunpack.c.h.b16 %v623
    %v2147 = vunpack.c.l.b16 %v624
    %v2148 = vunpack.c.h.b16 %v624
    %v2149 = vunpack.c.l.b16 %v625
    %v2150 = vunpack.c.h.b16 %v625
    %v2151 = vunpack.c.l.b16 %v626
    %v2152 = vunpack.c.h.b16 %v626
    %v2153 = vunpack.c.l.b16 %v627
    %v2154 = vunpack.c.h.b16 %v627
    %v2155 = vunpack.c.l.b16 %v628
    %v2156 = vunpack.c.h.b16 %v628
    %v2157 = vunpack.c.l.b16 %v629
    %v2158 = vunpack.c.h.b16 %v629
    %v2159 = vunpack.c.l.b16 %v630
    %v2160 = vunpack.c.h.b16 %v630
    %v2161 = vunpack.c.l.b16 %v631
    %v2162 = vunpack.c.h.b16 %v631
    %v2163 = vunpack.c.l.b16 %v632
    %v2164 = vunpack.c.h.b16 %v632
    %v2165 = vunpack.c.l.b16 %v633
    %v2166 = vunpack.c.h.b16 %v633
    %v2167 = vunpack.c.l.b16 %v634
    %v2168 = vunpack.c.h.b16 %v634
    %v2169 = vunpack.c.l.b16 %v635
    %v2170 = vunpack.c.h.b16 %v635
    %v2171 = vunpack.c.l.b16 %v636
    %v2172 = vunpack.c.h.b16 %v636
    %v2173 = vunpack.c.l.b16 %v637
    %v2174 = vunpack.c.h.b16 %v637
    %v2175 = vunpack.c.l.b16 %v638
    %v2176 = vunpack.c.h.b16 %v638
    %v2177 = vunpack.c.l.b16 %v639
    %v2178 = vunpack.c.h.b16 %v639
    %v2179 = vunpack.c.l.b16 %v640
    %v2180 = vunpack.c.h.b16 %v640
    %v2181 = vunpack.c.l.b16 %v641
    %v2182 = vunpack.c.h.b16 %v641
    %v2183 = vunpack.c.l.b16 %v642
    %v2184 = vunpack.c.h.b16 %v642
    %v2185 = vunpack.c.l.b16 %v643
    %v2186 = vunpack.c.h.b16 %v643
    %v2187 = vunpack.c.l.b16 %v644
    %v2188 = vunpack.c.h.b16 %v644
    %v2189 = vunpack.c.l.b16 %v645
    %v2190 = vunpack.c.h.b16 %v645
    %v2191 = vunpack.c.l.b16 %v646
    %v2192 = vunpack.c.h.b16 %v646
    %v2193 = vunpack.c.l.b16 %v647
    %v2194 = vunpack.c.h.b16 %v647
    %v2195 = vunpack.c.l.b16 %v648
    %v2196 = vunpack.c.h.b16 %v648
    %v2197 = vunpack.c.l.b16 %v649
    %v2198 = vunpack.c.h.b16 %v649
    %v2199 = vunpack.c.l.b16 %v650
    %v2200 = vunpack.c.h.b16 %v650
    %v2201 = vunpack.c.l.b16 %v651
    %v2202 = vunpack.c.h.b16 %v651
    %v2203 = vunpack.c.l.b16 %v652
    %v2204 = vunpack.c.h.b16 %v652
    %v2205 = vunpack.c.l.b16 %v653
    %v2206 = vunpack.c.h.b16 %v653
    %v2207 = vunpack.c.l.b16 %v654
    %v2208 = vunpack.c.h.b16 %v654
    %v2209 = vunpack.c.l.b16 %v655
    %v2210 = vunpack.c.h.b16 %v655
    %v2211 = vunpack.c.l.b16 %v656
    %v2212 = vunpack.c.h.b16 %v656
    %v2213 = vunpack.c.l.b16 %v657
    %v2214 = vunpack.c.h.b16 %v657
    %v2215 = vunpack.c.l.b16 %v658
    %v2216 = vunpack.c.h.b16 %v658
    %v2217 = vunpack.c.l.b16 %v659
    %v2218 = vunpack.c.h.b16 %v659
    %v2219 = vunpack.c.l.b16 %v660
    %v2220 = vunpack.c.h.b16 %v660
    %v2221 = vunpack.c.l.b16 %v661
    %v2222 = vunpack.c.h.b16 %v661
    %v2223 = vunpack.c.l.b16 %v662
    %v2224 = vunpack.c.h.b16 %v662
    %v2225 = vunpack.c.l.b16 %v663
    %v2226 = vunpack.c.h.b16 %v663
    %v2227 = vunpack.c.l.b16 %v664
    %v2228 = vunpack.c.h.b16 %v664
    %v2229 = vunpack.c.l.b16 %v665
    %v2230 = vunpack.c.h.b16 %v665
    %v2231 = vunpack.c.l.b16 %v666
    %v2232 = vunpack.c.h.b16 %v666
    %v2233 = vunpack.c.l.b16 %v667
    %v2234 = vunpack.c.h.b16 %v667
    %v2235 = vunpack.c.l.b16 %v668
    %v2236 = vunpack.c.h.b16 %v668
    %v2237 = vunpack.c.l.b16 %v669
    %v2238 = vunpack.c.h.b16 %v669
    %v2239 = vunpack.c.l.b16 %v670
    %v2240 = vunpack.c.h.b16 %v670
    %v2241 = vunpack.c.l.b16 %v671
    %v2242 = vunpack.c.h.b16 %v671
    %v2243 = vunpack.c.l.b16 %v672
    %v2244 = vunpack.c.h.b16 %v672
    %v2245 = vunpack.c.l.b16 %v673
    %v2246 = vunpack.c.h.b16 %v673
    %v2247 = vunpack.c.l.b16 %v674
    %v2248 = vunpack.c.h.b16 %v674
    %v2249 = vunpack.c.l.b16 %v675
    %v2250 = vunpack.c.h.b16 %v675
    %v2251 = vunpack.c.l.b16 %v676
    %v2252 = vunpack.c.h.b16 %v676
    %v2253 = vunpack.c.l.b16 %v677
    %v2254 = vunpack.c.h.b16 %v677
    %v2255 = vunpack.c.l.b16 %v678
    %v2256 = vunpack.c.h.b16 %v678
    %v2257 = vpack.c.b16 %v1241, %v1233
    %v2258 = vpack.c.b16 %v1242, %v1234
    %v2259 = vpack.c.b16 %v1243, %v1235
    %v2260 = vpack.c.b16 %v1244, %v1236
    %v2261 = vpack.c.b16 %v1245, %v1237
    %v2262 = vpack.c.b16 %v1246, %v1238
    %v2263 = vpack.c.b16 %v1247, %v1239
    %v2264 = vpack.c.b16 %v1248, %v1240
    %v2265 = vpack.c.b16 %v1257, %v1249
    %v2266 = vpack.c.b16 %v1258, %v1250
    %v2267 = vpack.c.b16 %v1259, %v1251
    %v2268 = vpack.c.b16 %v1260, %v1252
    %v2269 = vpack.c.b16 %v1261, %v1253
    %v2270 = vpack.c.b16 %v1262, %v1254
    %v2271 = vpack.c.b16 %v1263, %v1255
    %v2272 = vpack.c.b16 %v1264, %v1256
    %v2273 = vpack.c.b16 %v1273, %v1265
    %v2274 = vpack.c.b16 %v1274, %v1266
    %v2275 = vpack.c.b16 %v1275, %v1267
    %v2276 = vpack.c.b16 %v1276, %v1268
    %v2277 = vpack.c.b16 %v1277, %v1269
    %v2278 = vpack.c.b16 %v1278, %v1270
    %v2279 = vpack.c.b16 %v1279, %v1271
    %v2280 = vpack.c.b16 %v1280, %v1272
    %v2281 = vpack.c.b16 %v1289, %v1281
    %v2282 = vpack.c.b16 %v1290, %v1282
    %v2283 = vpack.c.b16 %v1291, %v1283
    %v2284 = vpack.c.b16 %v1292, %v1284
    %v2285 = vpack.c.b16 %v1293, %v1285
    %v2286 = vpack.c.b16 %v1294, %v1286
    %v2287 = vpack.c.b16 %v1295, %v1287
    %v2288 = vpack.c.b16 %v1296, %v1288
    %v2289 = vpack.c.b16 %v1305, %v1297
    %v2290 = vpack.c.b16 %v1306, %v1298
    %v2291 = vpack.c.b16 %v1307, %v1299
    %v2292 = vpack.c.b16 %v1308, %v1300
    %v2293 = vpack.c.b16 %v1309, %v1301
    %v2294 = vpack.c.b16 %v1310, %v1302
    %v2295 = vpack.c.b16 %v1311, %v1303
    %v2296 = vpack.c.b16 %v1312, %v1304
    %v2297 = vpack.c.b16 %v1321, %v1313
    %v2298 = vpack.c.b16 %v1322, %v1314
    %v2299 = vpack.c.b16 %v1323, %v1315
    %v2300 = vpack.c.b16 %v1324, %v1316
    %v2301 = vpack.c.b16 %v1325, %v1317
    %v2302 = vpack.c.b16 %v1326, %v1318
    %v2303 = vpack.c.b16 %v1327, %v1319
    %v2304 = vpack.c.b16 %v1328, %v1320
    %v2305 = vpack.c.b16 %v1337, %v1329
    %v2306 = vpack.c.b16 %v1338, %v1330
    %v2307 = vpack.c.b16 %v1339, %v1331
    %v2308 = vpack.c.b16 %v1340, %v1332
    %v2309 = vpack.c.b16 %v1341, %v1333
    %v2310 = vpack.c.b16 %v1342, %v1334
    %v2311 = vpack.c.b16 %v1343, %v1335
    %v2312 = vpack.c.b16 %v1344, %v1336
    %v2313 = vpack.c.b16 %v1353, %v1345
    %v2314 = vpack.c.b16 %v1354, %v1346
    %v2315 = vpack.c.b16 %v1355, %v1347
    %v2316 = vpack.c.b16 %v1356, %v1348
    %v2317 = vpack.c.b16 %v1357, %v1349
    %v2318 = vpack.c.b16 %v1358, %v1350
    %v2319 = vpack.c.b16 %v1359, %v1351
    %v2320 = vpack.c.b16 %v1360, %v1352
    %v2321 = vpack.c.b16 %v1369, %v1361
    %v2322 = vpack.c.b16 %v1370, %v1362
    %v2323 = vpack.c.b16 %v1371, %v1363
    %v2324 = vpack.c.b16 %v1372, %v1364
    %v2325 = vpack.c.b16 %v1373, %v1365
    %v2326 = vpack.c.b16 %v1374, %v1366
    %v2327 = vpack.c.b16 %v1375, %v1367
    %v2328 = vpack.c.b16 %v1376, %v1368
    %v2329 = vpack.c.b16 %v1385, %v1377
    %v2330 = vpack.c.b16 %v1386, %v1378
    %v2331 = vpack.c.b16 %v1387, %v1379
    %v2332 = vpack.c.b16 %v1388, %v1380
    %v2333 = vpack.c.b16 %v1389, %v1381
    %v2334 = vpack.c.b16 %v1390, %v1382
    %v2335 = vpack.c.b16 %v1391, %v1383
    %v2336 = vpack.c.b16 %v1392, %v1384
    %v2337 = vpack.c.b16 %v1401, %v1393
    %v2338 = vpack.c.b16 %v1402, %v1394
    %v2339 = vpack.c.b16 %v1403, %v1395
    %v2340 = vpack.c.b16 %v1404, %v1396
    %v2341 = vpack.c.b16 %v1405, %v1397
    %v2342 = vpack.c.b16 %v1406, %v1398
    %v2343 = vpack.c.b16 %v1407, %v1399
    %v2344 = vpack.c.b16 %v1408, %v1400
    %v2345 = vpack.c.b16 %v1417, %v1409
    %v2346 = vpack.c.b16 %v1418, %v1410
    %v2347 = vpack.c.b16 %v1419, %v1411
    %v2348 = vpack.c.b16 %v1420, %v1412
    %v2349 = vpack.c.b16 %v1421, %v1413
    %v2350 = vpack.c.b16 %v1422, %v1414
    %v2351 = vpack.c.b16 %v1423, %v1415
    %v2352 = vpack.c.b16 %v1424, %v1416
    %v2353 = vpack.c.b16 %v1433, %v1425
    %v2354 = vpack.c.b16 %v1434, %v1426
    %v2355 = vpack.c.b16 %v1435, %v1427
    %v2356 = vpack.c.b16 %v1436, %v1428
    %v2357 = vpack.c.b16 %v1437, %v1429
    %v2358 = vpack.c.b16 %v1438, %v1430
    %v2359 = vpack.c.b16 %v1439, %v1431
    %v2360 = vpack.c.b16 %v1440, %v1432
    %v2361 = vpack.c.b16 %v1449, %v1441
    %v2362 = vpack.c.b16 %v1450, %v1442
    %v2363 = vpack.c.b16 %v1451, %v1443
    %v2364 = vpack.c.b16 %v1452, %v1444
    %v2365 = vpack.c.b16 %v1453, %v1445
    %v2366 = vpack.c.b16 %v1454, %v1446
    %v2367 = vpack.c.b16 %v1455, %v1447
    %v2368 = vpack.c.b16 %v1456, %v1448
    %v2369 = vpack.c.b16 %v1465, %v1457
    %v2370 = vpack.c.b16 %v1466, %v1458
    %v2371 = vpack.c.b16 %v1467, %v1459
    %v2372 = vpack.c.b16 %v1468, %v1460
    %v2373 = vpack.c.b16 %v1469, %v1461
    %v2374 = vpack.c.b16 %v1470, %v1462
    %v2375 = vpack.c.b16 %v1471, %v1463
    %v2376 = vpack.c.b16 %v1472, %v1464
    %v2377 = vpack.c.b16 %v1481, %v1473
    %v2378 = vpack.c.b16 %v1482, %v1474
    %v2379 = vpack.c.b16 %v1483, %v1475
    %v2380 = vpack.c.b16 %v1484, %v1476
    %v2381 = vpack.c.b16 %v1485, %v1477
    %v2382 = vpack.c.b16 %v1486, %v1478
    %v2383 = vpack.c.b16 %v1487, %v1479
    %v2384 = vpack.c.b16 %v1488, %v1480
    %v2385 = vpack.c.b16 %v1497, %v1489
    %v2386 = vpack.c.b16 %v1498, %v1490
    %v2387 = vpack.c.b16 %v1499, %v1491
    %v2388 = vpack.c.b16 %v1500, %v1492
    %v2389 = vpack.c.b16 %v1501, %v1493
    %v2390 = vpack.c.b16 %v1502, %v1494
    %v2391 = vpack.c.b16 %v1503, %v1495
    %v2392 = vpack.c.b16 %v1504, %v1496
    %v2393 = vpack.c.b16 %v1513, %v1505
    %v2394 = vpack.c.b16 %v1514, %v1506
    %v2395 = vpack.c.b16 %v1515, %v1507
    %v2396 = vpack.c.b16 %v1516, %v1508
    %v2397 = vpack.c.b16 %v1517, %v1509
    %v2398 = vpack.c.b16 %v1518, %v1510
    %v2399 = vpack.c.b16 %v1519, %v1511
    %v2400 = vpack.c.b16 %v1520, %v1512
    %v2401 = vpack.c.b16 %v1529, %v1521
    %v2402 = vpack.c.b16 %v1530, %v1522
    %v2403 = vpack.c.b16 %v1531, %v1523
    %v2404 = vpack.c.b16 %v1532, %v1524
    %v2405 = vpack.c.b16 %v1533, %v1525
    %v2406 = vpack.c.b16 %v1534, %v1526
    %v2407 = vpack.c.b16 %v1535, %v1527
    %v2408 = vpack.c.b16 %v1536, %v1528
    %v2409 = vpack.c.b16 %v1545, %v1537
    %v2410 = vpack.c.b16 %v1546, %v1538
    %v2411 = vpack.c.b16 %v1547, %v1539
    %v2412 = vpack.c.b16 %v1548, %v1540
    %v2413 = vpack.c.b16 %v1549, %v1541
    %v2414 = vpack.c.b16 %v1550, %v1542
    %v2415 = vpack.c.b16 %v1551, %v1543
    %v2416 = vpack.c.b16 %v1552, %v1544
    %v2417 = vpack.c.b16 %v1561, %v1553
    %v2418 = vpack.c.b16 %v1562, %v1554
    %v2419 = vpack.c.b16 %v1563, %v1555
    %v2420 = vpack.c.b16 %v1564, %v1556
    %v2421 = vpack.c.b16 %v1565, %v1557
    %v2422 = vpack.c.b16 %v1566, %v1558
    %v2423 = vpack.c.b16 %v1567, %v1559
    %v2424 = vpack.c.b16 %v1568, %v1560
    %v2425 = vpack.c.b16 %v1577, %v1569
    %v2426 = vpack.c.b16 %v1578, %v1570
    %v2427 = vpack.c.b16 %v1579, %v1571
    %v2428 = vpack.c.b16 %v1580, %v1572
    %v2429 = vpack.c.b16 %v1581, %v1573
    %v2430 = vpack.c.b16 %v1582, %v1574
    %v2431 = vpack.c.b16 %v1583, %v1575
    %v2432 = vpack.c.b16 %v1584, %v1576
    %v2433 = vpack.c.b16 %v1593, %v1585
    %v2434 = vpack.c.b16 %v1594, %v1586
    %v2435 = vpack.c.b16 %v1595, %v1587
    %v2436 = vpack.c.b16 %v1596, %v1588
    %v2437 = vpack.c.b16 %v1597, %v1589
    %v2438 = vpack.c.b16 %v1598, %v1590
    %v2439 = vpack.c.b16 %v1599, %v1591
    %v2440 = vpack.c.b16 %v1600, %v1592
    %v2441 = vpack.c.b16 %v1609, %v1601
    %v2442 = vpack.c.b16 %v1610, %v1602
    %v2443 = vpack.c.b16 %v1611, %v1603
    %v2444 = vpack.c.b16 %v1612, %v1604
    %v2445 = vpack.c.b16 %v1613, %v1605
    %v2446 = vpack.c.b16 %v1614, %v1606
    %v2447 = vpack.c.b16 %v1615, %v1607
    %v2448 = vpack.c.b16 %v1616, %v1608
    %v2449 = vpack.c.b16 %v1625, %v1617
    %v2450 = vpack.c.b16 %v1626, %v1618
    %v2451 = vpack.c.b16 %v1627, %v1619
    %v2452 = vpack.c.b16 %v1628, %v1620
    %v2453 = vpack.c.b16 %v1629, %v1621
    %v2454 = vpack.c.b16 %v1630, %v1622
    %v2455 = vpack.c.b16 %v1631, %v1623
    %v2456 = vpack.c.b16 %v1632, %v1624
    %v2457 = vpack.c.b16 %v1641, %v1633
    %v2458 = vpack.c.b16 %v1642, %v1634
    %v2459 = vpack.c.b16 %v1643, %v1635
    %v2460 = vpack.c.b16 %v1644, %v1636
    %v2461 = vpack.c.b16 %v1645, %v1637
    %v2462 = vpack.c.b16 %v1646, %v1638
    %v2463 = vpack.c.b16 %v1647, %v1639
    %v2464 = vpack.c.b16 %v1648, %v1640
    %v2465 = vpack.c.b16 %v1657, %v1649
    %v2466 = vpack.c.b16 %v1658, %v1650
    %v2467 = vpack.c.b16 %v1659, %v1651
    %v2468 = vpack.c.b16 %v1660, %v1652
    %v2469 = vpack.c.b16 %v1661, %v1653
    %v2470 = vpack.c.b16 %v1662, %v1654
    %v2471 = vpack.c.b16 %v1663, %v1655
    %v2472 = vpack.c.b16 %v1664, %v1656
    %v2473 = vpack.c.b16 %v1673, %v1665
    %v2474 = vpack.c.b16 %v1674, %v1666
    %v2475 = vpack.c.b16 %v1675, %v1667
    %v2476 = vpack.c.b16 %v1676, %v1668
    %v2477 = vpack.c.b16 %v1677, %v1669
    %v2478 = vpack.c.b16 %v1678, %v1670
    %v2479 = vpack.c.b16 %v1679, %v1671
    %v2480 = vpack.c.b16 %v1680, %v1672
    %v2481 = vpack.c.b16 %v1689, %v1681
    %v2482 = vpack.c.b16 %v1690, %v1682
    %v2483 = vpack.c.b16 %v1691, %v1683
    %v2484 = vpack.c.b16 %v1692, %v1684
    %v2485 = vpack.c.b16 %v1693, %v1685
    %v2486 = vpack.c.b16 %v1694, %v1686
    %v2487 = vpack.c.b16 %v1695, %v1687
    %v2488 = vpack.c.b16 %v1696, %v1688
    %v2489 = vpack.c.b16 %v1705, %v1697
    %v2490 = vpack.c.b16 %v1706, %v1698
    %v2491 = vpack.c.b16 %v1707, %v1699
    %v2492 = vpack.c.b16 %v1708, %v1700
    %v2493 = vpack.c.b16 %v1709, %v1701
    %v2494 = vpack.c.b16 %v1710, %v1702
    %v2495 = vpack.c.b16 %v1711, %v1703
    %v2496 = vpack.c.b16 %v1712, %v1704
    %v2497 = vpack.c.b16 %v1721, %v1713
    %v2498 = vpack.c.b16 %v1722, %v1714
    %v2499 = vpack.c.b16 %v1723, %v1715
    %v2500 = vpack.c.b16 %v1724, %v1716
    %v2501 = vpack.c.b16 %v1725, %v1717
    %v2502 = vpack.c.b16 %v1726, %v1718
    %v2503 = vpack.c.b16 %v1727, %v1719
    %v2504 = vpack.c.b16 %v1728, %v1720
    %v2505 = vpack.c.b16 %v1737, %v1729
    %v2506 = vpack.c.b16 %v1738, %v1730
    %v2507 = vpack.c.b16 %v1739, %v1731
    %v2508 = vpack.c.b16 %v1740, %v1732
    %v2509 = vpack.c.b16 %v1741, %v1733
    %v2510 = vpack.c.b16 %v1742, %v1734
    %v2511 = vpack.c.b16 %v1743, %v1735
    %v2512 = vpack.c.b16 %v1744, %v1736
    %v2513 = vpack.c.b16 %v1753, %v1745
    %v2514 = vpack.c.b16 %v1754, %v1746
    %v2515 = vpack.c.b16 %v1755, %v1747
    %v2516 = vpack.c.b16 %v1756, %v1748
    %v2517 = vpack.c.b16 %v1757, %v1749
    %v2518 = vpack.c.b16 %v1758, %v1750
    %v2519 = vpack.c.b16 %v1759, %v1751
    %v2520 = vpack.c.b16 %v1760, %v1752
    %v2521 = vpack.c.b16 %v1769, %v1761
    %v2522 = vpack.c.b16 %v1770, %v1762
    %v2523 = vpack.c.b16 %v1771, %v1763
    %v2524 = vpack.c.b16 %v1772, %v1764
    %v2525 = vpack.c.b16 %v1773, %v1765
    %v2526 = vpack.c.b16 %v1774, %v1766
    %v2527 = vpack.c.b16 %v1775, %v1767
    %v2528 = vpack.c.b16 %v1776, %v1768
    %v2529 = vpack.c.b16 %v1785, %v1777
    %v2530 = vpack.c.b16 %v1786, %v1778
    %v2531 = vpack.c.b16 %v1787, %v1779
    %v2532 = vpack.c.b16 %v1788, %v1780
    %v2533 = vpack.c.b16 %v1789, %v1781
    %v2534 = vpack.c.b16 %v1790, %v1782
    %v2535 = vpack.c.b16 %v1791, %v1783
    %v2536 = vpack.c.b16 %v1792, %v1784
    %v2537 = vpack.c.b16 %v1801, %v1793
    %v2538 = vpack.c.b16 %v1802, %v1794
    %v2539 = vpack.c.b16 %v1803, %v1795
    %v2540 = vpack.c.b16 %v1804, %v1796
    %v2541 = vpack.c.b16 %v1805, %v1797
    %v2542 = vpack.c.b16 %v1806, %v1798
    %v2543 = vpack.c.b16 %v1807, %v1799
    %v2544 = vpack.c.b16 %v1808, %v1800
    %v2545 = vpack.c.b16 %v1817, %v1809
    %v2546 = vpack.c.b16 %v1818, %v1810
    %v2547 = vpack.c.b16 %v1819, %v1811
    %v2548 = vpack.c.b16 %v1820, %v1812
    %v2549 = vpack.c.b16 %v1821, %v1813
    %v2550 = vpack.c.b16 %v1822, %v1814
    %v2551 = vpack.c.b16 %v1823, %v1815
    %v2552 = vpack.c.b16 %v1824, %v1816
    %v2553 = vpack.c.b16 %v1833, %v1825
    %v2554 = vpack.c.b16 %v1834, %v1826
    %v2555 = vpack.c.b16 %v1835, %v1827
    %v2556 = vpack.c.b16 %v1836, %v1828
    %v2557 = vpack.c.b16 %v1837, %v1829
    %v2558 = vpack.c.b16 %v1838, %v1830
    %v2559 = vpack.c.b16 %v1839, %v1831
    %v2560 = vpack.c.b16 %v1840, %v1832
    %v2561 = vpack.c.b16 %v1849, %v1841
    %v2562 = vpack.c.b16 %v1850, %v1842
    %v2563 = vpack.c.b16 %v1851, %v1843
    %v2564 = vpack.c.b16 %v1852, %v1844
    %v2565 = vpack.c.b16 %v1853, %v1845
    %v2566 = vpack.c.b16 %v1854, %v1846
    %v2567 = vpack.c.b16 %v1855, %v1847
    %v2568 = vpack.c.b16 %v1856, %v1848
    %v2569 = vpack.c.b16 %v1865, %v1857
    %v2570 = vpack.c.b16 %v1866, %v1858
    %v2571 = vpack.c.b16 %v1867, %v1859
    %v2572 = vpack.c.b16 %v1868, %v1860
    %v2573 = vpack.c.b16 %v1869, %v1861
    %v2574 = vpack.c.b16 %v1870, %v1862
    %v2575 = vpack.c.b16 %v1871, %v1863
    %v2576 = vpack.c.b16 %v1872, %v1864
    %v2577 = vpack.c.b16 %v1881, %v1873
    %v2578 = vpack.c.b16 %v1882, %v1874
    %v2579 = vpack.c.b16 %v1883, %v1875
    %v2580 = vpack.c.b16 %v1884, %v1876
    %v2581 = vpack.c.b16 %v1885, %v1877
    %v2582 = vpack.c.b16 %v1886, %v1878
    %v2583 = vpack.c.b16 %v1887, %v1879
    %v2584 = vpack.c.b16 %v1888, %v1880
    %v2585 = vpack.c.b16 %v1897, %v1889
    %v2586 = vpack.c.b16 %v1898, %v1890
    %v2587 = vpack.c.b16 %v1899, %v1891
    %v2588 = vpack.c.b16 %v1900, %v1892
    %v2589 = vpack.c.b16 %v1901, %v1893
    %v2590 = vpack.c.b16 %v1902, %v1894
    %v2591 = vpack.c.b16 %v1903, %v1895
    %v2592 = vpack.c.b16 %v1904, %v1896
    %v2593 = vpack.c.b16 %v1913, %v1905
    %v2594 = vpack.c.b16 %v1914, %v1906
    %v2595 = vpack.c.b16 %v1915, %v1907
    %v2596 = vpack.c.b16 %v1916, %v1908
    %v2597 = vpack.c.b16 %v1917, %v1909
    %v2598 = vpack.c.b16 %v1918, %v1910
    %v2599 = vpack.c.b16 %v1919, %v1911
    %v2600 = vpack.c.b16 %v1920, %v1912
    %v2601 = vpack.c.b16 %v1929, %v1921
    %v2602 = vpack.c.b16 %v1930, %v1922
    %v2603 = vpack.c.b16 %v1931, %v1923
    %v2604 = vpack.c.b16 %v1932, %v1924
    %v2605 = vpack.c.b16 %v1933, %v1925
    %v2606 = vpack.c.b16 %v1934, %v1926
    %v2607 = vpack.c.b16 %v1935, %v1927
    %v2608 = vpack.c.b16 %v1936, %v1928
    %v2609 = vpack.c.b16 %v1945, %v1937
    %v2610 = vpack.c.b16 %v1946, %v1938
    %v2611 = vpack.c.b16 %v1947, %v1939
    %v2612 = vpack.c.b16 %v1948, %v1940
    %v2613 = vpack.c.b16 %v1949, %v1941
    %v2614 = vpack.c.b16 %v1950, %v1942
    %v2615 = vpack.c.b16 %v1951, %v1943
    %v2616 = vpack.c.b16 %v1952, %v1944
    %v2617 = vpack.c.b16 %v1961, %v1953
    %v2618 = vpack.c.b16 %v1962, %v1954
    %v2619 = vpack.c.b16 %v1963, %v1955
    %v2620 = vpack.c.b16 %v1964, %v1956
    %v2621 = vpack.c.b16 %v1965, %v1957
    %v2622 = vpack.c.b16 %v1966, %v1958
    %v2623 = vpack.c.b16 %v1967, %v1959
    %v2624 = vpack.c.b16 %v1968, %v1960
    %v2625 = vpack.c.b16 %v1977, %v1969
    %v2626 = vpack.c.b16 %v1978, %v1970
    %v2627 = vpack.c.b16 %v1979, %v1971
    %v2628 = vpack.c.b16 %v1980, %v1972
    %v2629 = vpack.c.b16 %v1981, %v1973
    %v2630 = vpack.c.b16 %v1982, %v1974
    %v2631 = vpack.c.b16 %v1983, %v1975
    %v2632 = vpack.c.b16 %v1984, %v1976
    %v2633 = vpack.c.b16 %v1993, %v1985
    %v2634 = vpack.c.b16 %v1994, %v1986
    %v2635 = vpack.c.b16 %v1995, %v1987
    %v2636 = vpack.c.b16 %v1996, %v1988
    %v2637 = vpack.c.b16 %v1997, %v1989
    %v2638 = vpack.c.b16 %v1998, %v1990
    %v2639 = vpack.c.b16 %v1999, %v1991
    %v2640 = vpack.c.b16 %v2000, %v1992
    %v2641 = vpack.c.b16 %v2009, %v2001
    %v2642 = vpack.c.b16 %v2010, %v2002
    %v2643 = vpack.c.b16 %v2011, %v2003
    %v2644 = vpack.c.b16 %v2012, %v2004
    %v2645 = vpack.c.b16 %v2013, %v2005
    %v2646 = vpack.c.b16 %v2014, %v2006
    %v2647 = vpack.c.b16 %v2015, %v2007
    %v2648 = vpack.c.b16 %v2016, %v2008
    %v2649 = vpack.c.b16 %v2025, %v2017
    %v2650 = vpack.c.b16 %v2026, %v2018
    %v2651 = vpack.c.b16 %v2027, %v2019
    %v2652 = vpack.c.b16 %v2028, %v2020
    %v2653 = vpack.c.b16 %v2029, %v2021
    %v2654 = vpack.c.b16 %v2030, %v2022
    %v2655 = vpack.c.b16 %v2031, %v2023
    %v2656 = vpack.c.b16 %v2032, %v2024
    %v2657 = vpack.c.b16 %v2041, %v2033
    %v2658 = vpack.c.b16 %v2042, %v2034
    %v2659 = vpack.c.b16 %v2043, %v2035
    %v2660 = vpack.c.b16 %v2044, %v2036
    %v2661 = vpack.c.b16 %v2045, %v2037
    %v2662 = vpack.c.b16 %v2046, %v2038
    %v2663 = vpack.c.b16 %v2047, %v2039
    %v2664 = vpack.c.b16 %v2048, %v2040
    %v2665 = vpack.c.b16 %v2057, %v2049
    %v2666 = vpack.c.b16 %v2058, %v2050
    %v2667 = vpack.c.b16 %v2059, %v2051
    %v2668 = vpack.c.b16 %v2060, %v2052
    %v2669 = vpack.c.b16 %v2061, %v2053
    %v2670 = vpack.c.b16 %v2062, %v2054
    %v2671 = vpack.c.b16 %v2063, %v2055
    %v2672 = vpack.c.b16 %v2064, %v2056
    %v2673 = vpack.c.b16 %v2073, %v2065
    %v2674 = vpack.c.b16 %v2074, %v2066
    %v2675 = vpack.c.b16 %v2075, %v2067
    %v2676 = vpack.c.b16 %v2076, %v2068
    %v2677 = vpack.c.b16 %v2077, %v2069
    %v2678 = vpack.c.b16 %v2078, %v2070
    %v2679 = vpack.c.b16 %v2079, %v2071
    %v2680 = vpack.c.b16 %v2080, %v2072
    %v2681 = vpack.c.b16 %v2089, %v2081
    %v2682 = vpack.c.b16 %v2090, %v2082
    %v2683 = vpack.c.b16 %v2091, %v2083
    %v2684 = vpack.c.b16 %v2092, %v2084
    %v2685 = vpack.c.b16 %v2093, %v2085
    %v2686 = vpack.c.b16 %v2094, %v2086
    %v2687 = vpack.c.b16 %v2095, %v2087
    %v2688 = vpack.c.b16 %v2096, %v2088
    %v2689 = vpack.c.b16 %v2105, %v2097
    %v2690 = vpack.c.b16 %v2106, %v2098
    %v2691 = vpack.c.b16 %v2107, %v2099
    %v2692 = vpack.c.b16 %v2108, %v2100
    %v2693 = vpack.c.b16 %v2109, %v2101
    %v2694 = vpack.c.b16 %v2110, %v2102
    %v2695 = vpack.c.b16 %v2111, %v2103
    %v2696 = vpack.c.b16 %v2112, %v2104
    %v2697 = vpack.c.b16 %v2121, %v2113
    %v2698 = vpack.c.b16 %v2122, %v2114
    %v2699 = vpack.c.b16 %v2123, %v2115
    %v2700 = vpack.c.b16 %v2124, %v2116
    %v2701 = vpack.c.b16 %v2125, %v2117
    %v2702 = vpack.c.b16 %v2126, %v2118
    %v2703 = vpack.c.b16 %v2127, %v2119
    %v2704 = vpack.c.b16 %v2128, %v2120
    %v2705 = vpack.c.b16 %v2137, %v2129
    %v2706 = vpack.c.b16 %v2138, %v2130
    %v2707 = vpack.c.b16 %v2139, %v2131
    %v2708 = vpack.c.b16 %v2140, %v2132
    %v2709 = vpack.c.b16 %v2141, %v2133
    %v2710 = vpack.c.b16 %v2142, %v2134
    %v2711 = vpack.c.b16 %v2143, %v2135
    %v2712 = vpack.c.b16 %v2144, %v2136
    %v2713 = vpack.c.b16 %v2153, %v2145
    %v2714 = vpack.c.b16 %v2154, %v2146
    %v2715 = vpack.c.b16 %v2155, %v2147
    %v2716 = vpack.c.b16 %v2156, %v2148
    %v2717 = vpack.c.b16 %v2157, %v2149
    %v2718 = vpack.c.b16 %v2158, %v2150
    %v2719 = vpack.c.b16 %v2159, %v2151
    %v2720 = vpack.c.b16 %v2160, %v2152
    %v2721 = vpack.c.b16 %v2169, %v2161
    %v2722 = vpack.c.b16 %v2170, %v2162
    %v2723 = vpack.c.b16 %v2171, %v2163
    %v2724 = vpack.c.b16 %v2172, %v2164
    %v2725 = vpack.c.b16 %v2173, %v2165
    %v2726 = vpack.c.b16 %v2174, %v2166
    %v2727 = vpack.c.b16 %v2175, %v2167
    %v2728 = vpack.c.b16 %v2176, %v2168
    %v2729 = vpack.c.b16 %v2185, %v2177
    %v2730 = vpack.c.b16 %v2186, %v2178
    %v2731 = vpack.c.b16 %v2187, %v2179
    %v2732 = vpack.c.b16 %v2188, %v2180
    %v2733 = vpack.c.b16 %v2189, %v2181
    %v2734 = vpack.c.b16 %v2190, %v2182
    %v2735 = vpack.c.b16 %v2191, %v2183
    %v2736 = vpack.c.b16 %v2192, %v2184
    %v2737 = vpack.c.b16 %v2201, %v2193
    %v2738 = vpack.c.b16 %v2202, %v2194
    %v2739 = vpack.c.b16 %v2203, %v2195
    %v2740 = vpack.c.b16 %v2204, %v2196
    %v2741 = vpack.c.b16 %v2205, %v2197
    %v2742 = vpack.c.b16 %v2206, %v2198
    %v2743 = vpack.c.b16 %v2207, %v2199
    %v2744 = vpack.c.b16 %v2208, %v2200
    %v2745 = vpack.c.b16 %v2217, %v2209
    %v2746 = vpack.c.b16 %v2218, %v2210
    %v2747 = vpack.c.b16 %v2219, %v2211
    %v2748 = vpack.c.b16 %v2220, %v2212
    %v2749 = vpack.c.b16 %v2221, %v2213
    %v2750 = vpack.c.b16 %v2222, %v2214
    %v2751 = vpack.c.b16 %v2223, %v2215
    %v2752 = vpack.c.b16 %v2224, %v2216
    %v2753 = vpack.c.b16 %v2233, %v2225
    %v2754 = vpack.c.b16 %v2234, %v2226
    %v2755 = vpack.c.b16 %v2235, %v2227
    %v2756 = vpack.c.b16 %v2236, %v2228
    %v2757 = vpack.c.b16 %v2237, %v2229
    %v2758 = vpack.c.b16 %v2238, %v2230
    %v2759 = vpack.c.b16 %v2239, %v2231
    %v2760 = vpack.c.b16 %v2240, %v2232
    %v2761 = vpack.c.b16 %v2249, %v2241
    %v2762 = vpack.c.b16 %v2250, %v2242
    %v2763 = vpack.c.b16 %v2251, %v2243
    %v2764 = vpack.c.b16 %v2252, %v2244
    %v2765 = vpack.c.b16 %v2253, %v2245
    %v2766 = vpack.c.b16 %v2254, %v2246
    %v2767 = vpack.c.b16 %v2255, %v2247
    %v2768 = vpack.c.b16 %v2256, %v2248
    %3281 = vmatprep.subr.bf16.mxu0 %v2258
    %3282 = vmatpush1.bf16.msra.mxu0 %v2257
    %3283 = vmatprep.subr.bf16.mxu0 %v2266
    %3284 = vmatpush1.bf16.msra.mxu0 %v2265
    %3285 = vmatprep.subr.bf16.mxu0 %v2274
    %3286 = vmatpush1.bf16.msra.mxu0 %v2273
    %3287 = vmatprep.subr.bf16.mxu0 %v2282
    %3288 = vmatpush1.bf16.msra.mxu0 %v2281
    %3289 = vmatprep.subr.bf16.mxu0 %v2290
    %3290 = vmatpush1.bf16.msra.mxu0 %v2289
    %3291 = vmatprep.subr.bf16.mxu0 %v2298
    %3292 = vmatpush1.bf16.msra.mxu0 %v2297
    %3293 = vmatprep.subr.bf16.mxu0 %v2306
    %3294 = vmatpush1.bf16.msra.mxu0 %v2305
    %3295 = vmatprep.subr.bf16.mxu0 %v2314
    %3296 = vmatpush1.bf16.msra.mxu0 %v2313
    %3297 = vmatprep.subr.bf16.mxu0 %v2322
    %3298 = vmatpush1.bf16.msra.mxu0 %v2321
    %3299 = vmatprep.subr.bf16.mxu0 %v2330
    %3300 = vmatpush1.bf16.msra.mxu0 %v2329
    %3301 = vmatprep.subr.bf16.mxu0 %v2338
    %3302 = vmatpush1.bf16.msra.mxu0 %v2337
    %3303 = vmatprep.subr.bf16.mxu0 %v2346
    %3304 = vmatpush1.bf16.msra.mxu0 %v2345
    %3305 = vmatprep.subr.bf16.mxu0 %v2354
    %3306 = vmatpush1.bf16.msra.mxu0 %v2353
    %3307 = vmatprep.subr.bf16.mxu0 %v2362
    %3308 = vmatpush1.bf16.msra.mxu0 %v2361
    %3309 = vmatprep.subr.bf16.mxu0 %v2370
    %3310 = vmatpush1.bf16.msra.mxu0 %v2369
    %3311 = vmatprep.subr.bf16.mxu0 %v2378
    %3312 = vmatpush1.bf16.msra.mxu0 %v2377
    %3313 = vmatprep.mubr.bf16.mxu0 %v160
    %3314 = vmatmul.mubr.bf16.gmra.mrb[0].mxu0 %v159
    %v3315 = vpop.f32.mrb[0].mxu0
    %v3316 = vadd.f32 %v684, %v3315
    %v3317 = vpop.f32.mrb[0].mxu0
    %v3318 = vadd.f32 %v688, %v3317
    %v3319 = vpop.f32.mrb[0].mxu0
    %v3320 = vpop.f32.mrb[0].mxu0
    %3321 = vdwg.mxu0
    %3322 = vmatprep.subr.bf16.mxu0 %v2386
    %3323 = vmatpush1.bf16.msra.mxu0 %v2385
    %3324 = vmatprep.subr.bf16.mxu0 %v2394
    %3325 = vmatpush1.bf16.msra.mxu0 %v2393
    %3326 = vmatprep.subr.bf16.mxu0 %v2402
    %3327 = vmatpush1.bf16.msra.mxu0 %v2401
    %3328 = vmatprep.subr.bf16.mxu0 %v2410
    %3329 = vmatpush1.bf16.msra.mxu0 %v2409
    %3330 = vmatprep.subr.bf16.mxu0 %v2418
    %3331 = vmatpush1.bf16.msra.mxu0 %v2417
    %3332 = vmatprep.subr.bf16.mxu0 %v2426
    %3333 = vmatpush1.bf16.msra.mxu0 %v2425
    %3334 = vmatprep.subr.bf16.mxu0 %v2434
    %3335 = vmatpush1.bf16.msra.mxu0 %v2433
    %3336 = vmatprep.subr.bf16.mxu0 %v2442
    %3337 = vmatpush1.bf16.msra.mxu0 %v2441
    %3338 = vmatprep.subr.bf16.mxu0 %v2450
    %3339 = vmatpush1.bf16.msra.mxu0 %v2449
    %3340 = vmatprep.subr.bf16.mxu0 %v2458
    %3341 = vmatpush1.bf16.msra.mxu0 %v2457
    %3342 = vmatprep.subr.bf16.mxu0 %v2466
    %3343 = vmatpush1.bf16.msra.mxu0 %v2465
    %3344 = vmatprep.subr.bf16.mxu0 %v2474
    %3345 = vmatpush1.bf16.msra.mxu0 %v2473
    %3346 = vmatprep.subr.bf16.mxu0 %v2482
    %3347 = vmatpush1.bf16.msra.mxu0 %v2481
    %3348 = vmatprep.subr.bf16.mxu0 %v2490
    %3349 = vmatpush1.bf16.msra.mxu0 %v2489
    %3350 = vmatprep.subr.bf16.mxu0 %v2498
    %3351 = vmatpush1.bf16.msra.mxu0 %v2497
    %3352 = vmatprep.subr.bf16.mxu0 %v2506
    %3353 = vmatpush1.bf16.msra.mxu0 %v2505
    %3354 = vmatprep.mubr.bf16.mxu0 %v162
    %3355 = vmatmul.mubr.bf16.gmra.mrb[0].mxu0 %v161
    %v3356 = vpop.f32.mrb[0].mxu0
    %v3357 = vadd.f32 %v3316, %v3356
    %v3358 = vpop.f32.mrb[0].mxu0
    %v3359 = vadd.f32 %v3318, %v3358
    %v3360 = vpop.f32.mrb[0].mxu0
    %v3361 = vpop.f32.mrb[0].mxu0
    %3362 = vdwg.mxu0
    %3363 = vmatprep.subr.bf16.mxu0 %v2514
    %3364 = vmatpush1.bf16.msra.mxu0 %v2513
    %3365 = vmatprep.subr.bf16.mxu0 %v2522
    %3366 = vmatpush1.bf16.msra.mxu0 %v2521
    %3367 = vmatprep.subr.bf16.mxu0 %v2530
    %3368 = vmatpush1.bf16.msra.mxu0 %v2529
    %3369 = vmatprep.subr.bf16.mxu0 %v2538
    %3370 = vmatpush1.bf16.msra.mxu0 %v2537
    %3371 = vmatprep.subr.bf16.mxu0 %v2546
    %3372 = vmatpush1.bf16.msra.mxu0 %v2545
    %3373 = vmatprep.subr.bf16.mxu0 %v2554
    %3374 = vmatpush1.bf16.msra.mxu0 %v2553
    %3375 = vmatprep.subr.bf16.mxu0 %v2562
    %3376 = vmatpush1.bf16.msra.mxu0 %v2561
    %3377 = vmatprep.subr.bf16.mxu0 %v2570
    %3378 = vmatpush1.bf16.msra.mxu0 %v2569
    %3379 = vmatprep.subr.bf16.mxu0 %v2578
    %3380 = vmatpush1.bf16.msra.mxu0 %v2577
    %3381 = vmatprep.subr.bf16.mxu0 %v2586
    %3382 = vmatpush1.bf16.msra.mxu0 %v2585
    %3383 = vmatprep.subr.bf16.mxu0 %v2594
    %3384 = vmatpush1.bf16.msra.mxu0 %v2593
    %3385 = vmatprep.subr.bf16.mxu0 %v2602
    %3386 = vmatpush1.bf16.msra.mxu0 %v2601
    %3387 = vmatprep.subr.bf16.mxu0 %v2610
    %3388 = vmatpush1.bf16.msra.mxu0 %v2609
    %3389 = vmatprep.subr.bf16.mxu0 %v2618
    %3390 = vmatpush1.bf16.msra.mxu0 %v2617
    %3391 = vmatprep.subr.bf16.mxu0 %v2626
    %3392 = vmatpush1.bf16.msra.mxu0 %v2625
    %3393 = vmatprep.subr.bf16.mxu0 %v2634
    %3394 = vmatpush1.bf16.msra.mxu0 %v2633
    %3395 = vmatprep.mubr.bf16.mxu0 %v164
    %3396 = vmatmul.mubr.bf16.gmra.mrb[0].mxu0 %v163
    %v3397 = vpop.f32.mrb[0].mxu0
    %v3398 = vadd.f32 %v3357, %v3397
    %v3399 = vpop.f32.mrb[0].mxu0
    %v3400 = vadd.f32 %v3359, %v3399
    %v3401 = vpop.f32.mrb[0].mxu0
    %v3402 = vpop.f32.mrb[0].mxu0
    %3403 = vdwg.mxu0
    %3404 = vmatprep.subr.bf16.mxu0 %v2642
    %3405 = vmatpush1.bf16.msra.mxu0 %v2641
    %3406 = vmatprep.subr.bf16.mxu0 %v2650
    %3407 = vmatpush1.bf16.msra.mxu0 %v2649
    %3408 = vmatprep.subr.bf16.mxu0 %v2658
    %3409 = vmatpush1.bf16.msra.mxu0 %v2657
    %3410 = vmatprep.subr.bf16.mxu0 %v2666
    %3411 = vmatpush1.bf16.msra.mxu0 %v2665
    %3412 = vmatprep.subr.bf16.mxu0 %v2674
    %3413 = vmatpush1.bf16.msra.mxu0 %v2673
    %3414 = vmatprep.subr.bf16.mxu0 %v2682
    %3415 = vmatpush1.bf16.msra.mxu0 %v2681
    %3416 = vmatprep.subr.bf16.mxu0 %v2690
    %3417 = vmatpush1.bf16.msra.mxu0 %v2689
    %3418 = vmatprep.subr.bf16.mxu0 %v2698
    %3419 = vmatpush1.bf16.msra.mxu0 %v2697
    %3420 = vmatprep.subr.bf16.mxu0 %v2706
    %3421 = vmatpush1.bf16.msra.mxu0 %v2705
    %3422 = vmatprep.subr.bf16.mxu0 %v2714
    %3423 = vmatpush1.bf16.msra.mxu0 %v2713
    %3424 = vmatprep.subr.bf16.mxu0 %v2722
    %3425 = vmatpush1.bf16.msra.mxu0 %v2721
    %3426 = vmatprep.subr.bf16.mxu0 %v2730
    %3427 = vmatpush1.bf16.msra.mxu0 %v2729
    %3428 = vmatprep.subr.bf16.mxu0 %v2738
    %3429 = vmatpush1.bf16.msra.mxu0 %v2737
    %3430 = vmatprep.subr.bf16.mxu0 %v2746
    %3431 = vmatpush1.bf16.msra.mxu0 %v2745
    %3432 = vmatprep.subr.bf16.mxu0 %v2754
    %3433 = vmatpush1.bf16.msra.mxu0 %v2753
    %3434 = vmatprep.subr.bf16.mxu0 %v2762
    %3435 = vmatpush1.bf16.msra.mxu0 %v2761
    %3436 = vmatprep.mubr.bf16.mxu0 %v166
    %3437 = vmatmul.mubr.bf16.gmra.mrb[0].mxu0 %v165
    %v3438 = vpop.f32.mrb[0].mxu0
    %v3439 = vadd.f32 %v3398, %v3438
    %v3440 = vpop.f32.mrb[0].mxu0
    %v3441 = vadd.f32 %v3400, %v3440
    %v3442 = vpop.f32.mrb[0].mxu0
    %v3443 = vpop.f32.mrb[0].mxu0
    %3444 = vdwg.mxu0
    %3445 = vmatprep.subr.bf16.mxu0 %v2260
    %3446 = vmatpush1.bf16.msra.mxu0 %v2259
    %3447 = vmatprep.subr.bf16.mxu0 %v2268
    %3448 = vmatpush1.bf16.msra.mxu0 %v2267
    %3449 = vmatprep.subr.bf16.mxu0 %v2276
    %3450 = vmatpush1.bf16.msra.mxu0 %v2275
    %3451 = vmatprep.subr.bf16.mxu0 %v2284
    %3452 = vmatpush1.bf16.msra.mxu0 %v2283
    %3453 = vmatprep.subr.bf16.mxu0 %v2292
    %3454 = vmatpush1.bf16.msra.mxu0 %v2291
    %3455 = vmatprep.subr.bf16.mxu0 %v2300
    %3456 = vmatpush1.bf16.msra.mxu0 %v2299
    %3457 = vmatprep.subr.bf16.mxu0 %v2308
    %3458 = vmatpush1.bf16.msra.mxu0 %v2307
    %3459 = vmatprep.subr.bf16.mxu0 %v2316
    %3460 = vmatpush1.bf16.msra.mxu0 %v2315
    %3461 = vmatprep.subr.bf16.mxu0 %v2324
    %3462 = vmatpush1.bf16.msra.mxu0 %v2323
    %3463 = vmatprep.subr.bf16.mxu0 %v2332
    %3464 = vmatpush1.bf16.msra.mxu0 %v2331
    %3465 = vmatprep.subr.bf16.mxu0 %v2340
    %3466 = vmatpush1.bf16.msra.mxu0 %v2339
    %3467 = vmatprep.subr.bf16.mxu0 %v2348
    %3468 = vmatpush1.bf16.msra.mxu0 %v2347
    %3469 = vmatprep.subr.bf16.mxu0 %v2356
    %3470 = vmatpush1.bf16.msra.mxu0 %v2355
    %3471 = vmatprep.subr.bf16.mxu0 %v2364
    %3472 = vmatpush1.bf16.msra.mxu0 %v2363
    %3473 = vmatprep.subr.bf16.mxu0 %v2372
    %3474 = vmatpush1.bf16.msra.mxu0 %v2371
    %3475 = vmatprep.subr.bf16.mxu0 %v2380
    %3476 = vmatpush1.bf16.msra.mxu0 %v2379
    %3477 = vmatprep.mubr.bf16.mxu0 %v160
    %3478 = vmatmul.mubr.bf16.gmra.mrb[0].mxu0 %v159
    %v3479 = vpop.f32.mrb[0].mxu0
    %v3480 = vadd.f32 %v692, %v3479
    %v3481 = vpop.f32.mrb[0].mxu0
    %v3482 = vadd.f32 %v696, %v3481
    %v3483 = vpop.f32.mrb[0].mxu0
    %v3484 = vpop.f32.mrb[0].mxu0
    %3485 = vdwg.mxu0
    %3486 = vmatprep.subr.bf16.mxu0 %v2388
    %3487 = vmatpush1.bf16.msra.mxu0 %v2387
    %3488 = vmatprep.subr.bf16.mxu0 %v2396
    %3489 = vmatpush1.bf16.msra.mxu0 %v2395
    %3490 = vmatprep.subr.bf16.mxu0 %v2404
    %3491 = vmatpush1.bf16.msra.mxu0 %v2403
    %3492 = vmatprep.subr.bf16.mxu0 %v2412
    %3493 = vmatpush1.bf16.msra.mxu0 %v2411
    %3494 = vmatprep.subr.bf16.mxu0 %v2420
    %3495 = vmatpush1.bf16.msra.mxu0 %v2419
    %3496 = vmatprep.subr.bf16.mxu0 %v2428
    %3497 = vmatpush1.bf16.msra.mxu0 %v2427
    %3498 = vmatprep.subr.bf16.mxu0 %v2436
    %3499 = vmatpush1.bf16.msra.mxu0 %v2435
    %3500 = vmatprep.subr.bf16.mxu0 %v2444
    %3501 = vmatpush1.bf16.msra.mxu0 %v2443
    %3502 = vmatprep.subr.bf16.mxu0 %v2452
    %3503 = vmatpush1.bf16.msra.mxu0 %v2451
    %3504 = vmatprep.subr.bf16.mxu0 %v2460
    %3505 = vmatpush1.bf16.msra.mxu0 %v2459
    %3506 = vmatprep.subr.bf16.mxu0 %v2468
    %3507 = vmatpush1.bf16.msra.mxu0 %v2467
    %3508 = vmatprep.subr.bf16.mxu0 %v2476
    %3509 = vmatpush1.bf16.msra.mxu0 %v2475
    %3510 = vmatprep.subr.bf16.mxu0 %v2484
    %3511 = vmatpush1.bf16.msra.mxu0 %v2483
    %3512 = vmatprep.subr.bf16.mxu0 %v2492
    %3513 = vmatpush1.bf16.msra.mxu0 %v2491
    %3514 = vmatprep.subr.bf16.mxu0 %v2500
    %3515 = vmatpush1.bf16.msra.mxu0 %v2499
    %3516 = vmatprep.subr.bf16.mxu0 %v2508
    %3517 = vmatpush1.bf16.msra.mxu0 %v2507
    %3518 = vmatprep.mubr.bf16.mxu0 %v162
    %3519 = vmatmul.mubr.bf16.gmra.mrb[0].mxu0 %v161
    %v3520 = vpop.f32.mrb[0].mxu0
    %v3521 = vadd.f32 %v3480, %v3520
    %v3522 = vpop.f32.mrb[0].mxu0
    %v3523 = vadd.f32 %v3482, %v3522
    %v3524 = vpop.f32.mrb[0].mxu0
    %v3525 = vpop.f32.mrb[0].mxu0
    %3526 = vdwg.mxu0
    %3527 = vmatprep.subr.bf16.mxu0 %v2516
    %3528 = vmatpush1.bf16.msra.mxu0 %v2515
    %3529 = vmatprep.subr.bf16.mxu0 %v2524
    %3530 = vmatpush1.bf16.msra.mxu0 %v2523
    %3531 = vmatprep.subr.bf16.mxu0 %v2532
    %3532 = vmatpush1.bf16.msra.mxu0 %v2531
    %3533 = vmatprep.subr.bf16.mxu0 %v2540
    %3534 = vmatpush1.bf16.msra.mxu0 %v2539
    %3535 = vmatprep.subr.bf16.mxu0 %v2548
    %3536 = vmatpush1.bf16.msra.mxu0 %v2547
    %3537 = vmatprep.subr.bf16.mxu0 %v2556
    %3538 = vmatpush1.bf16.msra.mxu0 %v2555
    %3539 = vmatprep.subr.bf16.mxu0 %v2564
    %3540 = vmatpush1.bf16.msra.mxu0 %v2563
    %3541 = vmatprep.subr.bf16.mxu0 %v2572
    %3542 = vmatpush1.bf16.msra.mxu0 %v2571
    %3543 = vmatprep.subr.bf16.mxu0 %v2580
    %3544 = vmatpush1.bf16.msra.mxu0 %v2579
    %3545 = vmatprep.subr.bf16.mxu0 %v2588
    %3546 = vmatpush1.bf16.msra.mxu0 %v2587
    %3547 = vmatprep.subr.bf16.mxu0 %v2596
    %3548 = vmatpush1.bf16.msra.mxu0 %v2595
    %3549 = vmatprep.subr.bf16.mxu0 %v2604
    %3550 = vmatpush1.bf16.msra.mxu0 %v2603
    %3551 = vmatprep.subr.bf16.mxu0 %v2612
    %3552 = vmatpush1.bf16.msra.mxu0 %v2611
    %3553 = vmatprep.subr.bf16.mxu0 %v2620
    %3554 = vmatpush1.bf16.msra.mxu0 %v2619
    %3555 = vmatprep.subr.bf16.mxu0 %v2628
    %3556 = vmatpush1.bf16.msra.mxu0 %v2627
    %3557 = vmatprep.subr.bf16.mxu0 %v2636
    %3558 = vmatpush1.bf16.msra.mxu0 %v2635
    %3559 = vmatprep.mubr.bf16.mxu0 %v164
    %3560 = vmatmul.mubr.bf16.gmra.mrb[0].mxu0 %v163
    %v3561 = vpop.f32.mrb[0].mxu0
    %v3562 = vadd.f32 %v3521, %v3561
    %v3563 = vpop.f32.mrb[0].mxu0
    %v3564 = vadd.f32 %v3523, %v3563
    %v3565 = vpop.f32.mrb[0].mxu0
    %v3566 = vpop.f32.mrb[0].mxu0
    %3567 = vdwg.mxu0
    %3568 = vmatprep.subr.bf16.mxu0 %v2644
    %3569 = vmatpush1.bf16.msra.mxu0 %v2643
    %3570 = vmatprep.subr.bf16.mxu0 %v2652
    %3571 = vmatpush1.bf16.msra.mxu0 %v2651
    %3572 = vmatprep.subr.bf16.mxu0 %v2660
    %3573 = vmatpush1.bf16.msra.mxu0 %v2659
    %3574 = vmatprep.subr.bf16.mxu0 %v2668
    %3575 = vmatpush1.bf16.msra.mxu0 %v2667
    %3576 = vmatprep.subr.bf16.mxu0 %v2676
    %3577 = vmatpush1.bf16.msra.mxu0 %v2675
    %3578 = vmatprep.subr.bf16.mxu0 %v2684
    %3579 = vmatpush1.bf16.msra.mxu0 %v2683
    %3580 = vmatprep.subr.bf16.mxu0 %v2692
    %3581 = vmatpush1.bf16.msra.mxu0 %v2691
    %3582 = vmatprep.subr.bf16.mxu0 %v2700
    %3583 = vmatpush1.bf16.msra.mxu0 %v2699
    %3584 = vmatprep.subr.bf16.mxu0 %v2708
    %3585 = vmatpush1.bf16.msra.mxu0 %v2707
    %3586 = vmatprep.subr.bf16.mxu0 %v2716
    %3587 = vmatpush1.bf16.msra.mxu0 %v2715
    %3588 = vmatprep.subr.bf16.mxu0 %v2724
    %3589 = vmatpush1.bf16.msra.mxu0 %v2723
    %3590 = vmatprep.subr.bf16.mxu0 %v2732
    %3591 = vmatpush1.bf16.msra.mxu0 %v2731
    %3592 = vmatprep.subr.bf16.mxu0 %v2740
    %3593 = vmatpush1.bf16.msra.mxu0 %v2739
    %3594 = vmatprep.subr.bf16.mxu0 %v2748
    %3595 = vmatpush1.bf16.msra.mxu0 %v2747
    %3596 = vmatprep.subr.bf16.mxu0 %v2756
    %3597 = vmatpush1.bf16.msra.mxu0 %v2755
    %3598 = vmatprep.subr.bf16.mxu0 %v2764
    %3599 = vmatpush1.bf16.msra.mxu0 %v2763
    %3600 = vmatprep.mubr.bf16.mxu0 %v166
    %3601 = vmatmul.mubr.bf16.gmra.mrb[0].mxu0 %v165
    %v3602 = vpop.f32.mrb[0].mxu0
    %v3603 = vadd.f32 %v3562, %v3602
    %v3604 = vpop.f32.mrb[0].mxu0
    %v3605 = vadd.f32 %v3564, %v3604
    %v3606 = vpop.f32.mrb[0].mxu0
    %v3607 = vpop.f32.mrb[0].mxu0
    %3608 = vdwg.mxu0
    %3609 = vmatprep.subr.bf16.mxu0 %v2262
    %3610 = vmatpush1.bf16.msra.mxu0 %v2261
    %3611 = vmatprep.subr.bf16.mxu0 %v2270
    %3612 = vmatpush1.bf16.msra.mxu0 %v2269
    %3613 = vmatprep.subr.bf16.mxu0 %v2278
    %3614 = vmatpush1.bf16.msra.mxu0 %v2277
    %3615 = vmatprep.subr.bf16.mxu0 %v2286
    %3616 = vmatpush1.bf16.msra.mxu0 %v2285
    %3617 = vmatprep.subr.bf16.mxu0 %v2294
    %3618 = vmatpush1.bf16.msra.mxu0 %v2293
    %3619 = vmatprep.subr.bf16.mxu0 %v2302
    %3620 = vmatpush1.bf16.msra.mxu0 %v2301
    %3621 = vmatprep.subr.bf16.mxu0 %v2310
    %3622 = vmatpush1.bf16.msra.mxu0 %v2309
    %3623 = vmatprep.subr.bf16.mxu0 %v2318
    %3624 = vmatpush1.bf16.msra.mxu0 %v2317
    %3625 = vmatprep.subr.bf16.mxu0 %v2326
    %3626 = vmatpush1.bf16.msra.mxu0 %v2325
    %3627 = vmatprep.subr.bf16.mxu0 %v2334
    %3628 = vmatpush1.bf16.msra.mxu0 %v2333
    %3629 = vmatprep.subr.bf16.mxu0 %v2342
    %3630 = vmatpush1.bf16.msra.mxu0 %v2341
    %3631 = vmatprep.subr.bf16.mxu0 %v2350
    %3632 = vmatpush1.bf16.msra.mxu0 %v2349
    %3633 = vmatprep.subr.bf16.mxu0 %v2358
    %3634 = vmatpush1.bf16.msra.mxu0 %v2357
    %3635 = vmatprep.subr.bf16.mxu0 %v2366
    %3636 = vmatpush1.bf16.msra.mxu0 %v2365
    %3637 = vmatprep.subr.bf16.mxu0 %v2374
    %3638 = vmatpush1.bf16.msra.mxu0 %v2373
    %3639 = vmatprep.subr.bf16.mxu0 %v2382
    %3640 = vmatpush1.bf16.msra.mxu0 %v2381
    %3641 = vmatprep.mubr.bf16.mxu0 %v160
    %3642 = vmatmul.mubr.bf16.gmra.mrb[0].mxu0 %v159
    %v3643 = vpop.f32.mrb[0].mxu0
    %v3644 = vadd.f32 %v700, %v3643
    %v3645 = vpop.f32.mrb[0].mxu0
    %v3646 = vadd.f32 %v704, %v3645
    %v3647 = vpop.f32.mrb[0].mxu0
    %v3648 = vpop.f32.mrb[0].mxu0
    %3649 = vdwg.mxu0
    %3650 = vmatprep.subr.bf16.mxu0 %v2390
    %3651 = vmatpush1.bf16.msra.mxu0 %v2389
    %3652 = vmatprep.subr.bf16.mxu0 %v2398
    %3653 = vmatpush1.bf16.msra.mxu0 %v2397
    %3654 = vmatprep.subr.bf16.mxu0 %v2406
    %3655 = vmatpush1.bf16.msra.mxu0 %v2405
    %3656 = vmatprep.subr.bf16.mxu0 %v2414
    %3657 = vmatpush1.bf16.msra.mxu0 %v2413
    %3658 = vmatprep.subr.bf16.mxu0 %v2422
    %3659 = vmatpush1.bf16.msra.mxu0 %v2421
    %3660 = vmatprep.subr.bf16.mxu0 %v2430
    %3661 = vmatpush1.bf16.msra.mxu0 %v2429
    %3662 = vmatprep.subr.bf16.mxu0 %v2438
    %3663 = vmatpush1.bf16.msra.mxu0 %v2437
    %3664 = vmatprep.subr.bf16.mxu0 %v2446
    %3665 = vmatpush1.bf16.msra.mxu0 %v2445
    %3666 = vmatprep.subr.bf16.mxu0 %v2454
    %3667 = vmatpush1.bf16.msra.mxu0 %v2453
    %3668 = vmatprep.subr.bf16.mxu0 %v2462
    %3669 = vmatpush1.bf16.msra.mxu0 %v2461
    %3670 = vmatprep.subr.bf16.mxu0 %v2470
    %3671 = vmatpush1.bf16.msra.mxu0 %v2469
    %3672 = vmatprep.subr.bf16.mxu0 %v2478
    %3673 = vmatpush1.bf16.msra.mxu0 %v2477
    %3674 = vmatprep.subr.bf16.mxu0 %v2486
    %3675 = vmatpush1.bf16.msra.mxu0 %v2485
    %3676 = vmatprep.subr.bf16.mxu0 %v2494
    %3677 = vmatpush1.bf16.msra.mxu0 %v2493
    %3678 = vmatprep.subr.bf16.mxu0 %v2502
    %3679 = vmatpush1.bf16.msra.mxu0 %v2501
    %3680 = vmatprep.subr.bf16.mxu0 %v2510
    %3681 = vmatpush1.bf16.msra.mxu0 %v2509
    %3682 = vmatprep.mubr.bf16.mxu0 %v162
    %3683 = vmatmul.mubr.bf16.gmra.mrb[0].mxu0 %v161
    %v3684 = vpop.f32.mrb[0].mxu0
    %v3685 = vadd.f32 %v3644, %v3684
    %v3686 = vpop.f32.mrb[0].mxu0
    %v3687 = vadd.f32 %v3646, %v3686
    %v3688 = vpop.f32.mrb[0].mxu0
    %v3689 = vpop.f32.mrb[0].mxu0
    %3690 = vdwg.mxu0
    %3691 = vmatprep.subr.bf16.mxu0 %v2518
    %3692 = vmatpush1.bf16.msra.mxu0 %v2517
    %3693 = vmatprep.subr.bf16.mxu0 %v2526
    %3694 = vmatpush1.bf16.msra.mxu0 %v2525
    %3695 = vmatprep.subr.bf16.mxu0 %v2534
    %3696 = vmatpush1.bf16.msra.mxu0 %v2533
    %3697 = vmatprep.subr.bf16.mxu0 %v2542
    %3698 = vmatpush1.bf16.msra.mxu0 %v2541
    %3699 = vmatprep.subr.bf16.mxu0 %v2550
    %3700 = vmatpush1.bf16.msra.mxu0 %v2549
    %3701 = vmatprep.subr.bf16.mxu0 %v2558
    %3702 = vmatpush1.bf16.msra.mxu0 %v2557
    %3703 = vmatprep.subr.bf16.mxu0 %v2566
    %3704 = vmatpush1.bf16.msra.mxu0 %v2565
    %3705 = vmatprep.subr.bf16.mxu0 %v2574
    %3706 = vmatpush1.bf16.msra.mxu0 %v2573
    %3707 = vmatprep.subr.bf16.mxu0 %v2582
    %3708 = vmatpush1.bf16.msra.mxu0 %v2581
    %3709 = vmatprep.subr.bf16.mxu0 %v2590
    %3710 = vmatpush1.bf16.msra.mxu0 %v2589
    %3711 = vmatprep.subr.bf16.mxu0 %v2598
    %3712 = vmatpush1.bf16.msra.mxu0 %v2597
    %3713 = vmatprep.subr.bf16.mxu0 %v2606
    %3714 = vmatpush1.bf16.msra.mxu0 %v2605
    %3715 = vmatprep.subr.bf16.mxu0 %v2614
    %3716 = vmatpush1.bf16.msra.mxu0 %v2613
    %3717 = vmatprep.subr.bf16.mxu0 %v2622
    %3718 = vmatpush1.bf16.msra.mxu0 %v2621
    %3719 = vmatprep.subr.bf16.mxu0 %v2630
    %3720 = vmatpush1.bf16.msra.mxu0 %v2629
    %3721 = vmatprep.subr.bf16.mxu0 %v2638
    %3722 = vmatpush1.bf16.msra.mxu0 %v2637
    %3723 = vmatprep.mubr.bf16.mxu0 %v164
    %3724 = vmatmul.mubr.bf16.gmra.mrb[0].mxu0 %v163
    %v3725 = vpop.f32.mrb[0].mxu0
    %v3726 = vadd.f32 %v3685, %v3725
    %v3727 = vpop.f32.mrb[0].mxu0
    %v3728 = vadd.f32 %v3687, %v3727
    %v3729 = vpop.f32.mrb[0].mxu0
    %v3730 = vpop.f32.mrb[0].mxu0
    %3731 = vdwg.mxu0
    %3732 = vmatprep.subr.bf16.mxu0 %v2646
    %3733 = vmatpush1.bf16.msra.mxu0 %v2645
    %3734 = vmatprep.subr.bf16.mxu0 %v2654
    %3735 = vmatpush1.bf16.msra.mxu0 %v2653
    %3736 = vmatprep.subr.bf16.mxu0 %v2662
    %3737 = vmatpush1.bf16.msra.mxu0 %v2661
    %3738 = vmatprep.subr.bf16.mxu0 %v2670
    %3739 = vmatpush1.bf16.msra.mxu0 %v2669
    %3740 = vmatprep.subr.bf16.mxu0 %v2678
    %3741 = vmatpush1.bf16.msra.mxu0 %v2677
    %3742 = vmatprep.subr.bf16.mxu0 %v2686
    %3743 = vmatpush1.bf16.msra.mxu0 %v2685
    %3744 = vmatprep.subr.bf16.mxu0 %v2694
    %3745 = vmatpush1.bf16.msra.mxu0 %v2693
    %3746 = vmatprep.subr.bf16.mxu0 %v2702
    %3747 = vmatpush1.bf16.msra.mxu0 %v2701
    %3748 = vmatprep.subr.bf16.mxu0 %v2710
    %3749 = vmatpush1.bf16.msra.mxu0 %v2709
    %3750 = vmatprep.subr.bf16.mxu0 %v2718
    %3751 = vmatpush1.bf16.msra.mxu0 %v2717
    %3752 = vmatprep.subr.bf16.mxu0 %v2726
    %3753 = vmatpush1.bf16.msra.mxu0 %v2725
    %3754 = vmatprep.subr.bf16.mxu0 %v2734
    %3755 = vmatpush1.bf16.msra.mxu0 %v2733
    %3756 = vmatprep.subr.bf16.mxu0 %v2742
    %3757 = vmatpush1.bf16.msra.mxu0 %v2741
    %3758 = vmatprep.subr.bf16.mxu0 %v2750
    %3759 = vmatpush1.bf16.msra.mxu0 %v2749
    %3760 = vmatprep.subr.bf16.mxu0 %v2758
    %3761 = vmatpush1.bf16.msra.mxu0 %v2757
    %3762 = vmatprep.subr.bf16.mxu0 %v2766
    %3763 = vmatpush1.bf16.msra.mxu0 %v2765
    %3764 = vmatprep.mubr.bf16.mxu0 %v166
    %3765 = vmatmul.mubr.bf16.gmra.mrb[0].mxu0 %v165
    %v3766 = vpop.f32.mrb[0].mxu0
    %v3767 = vadd.f32 %v3726, %v3766
    %v3768 = vpop.f32.mrb[0].mxu0
    %v3769 = vadd.f32 %v3728, %v3768
    %v3770 = vpop.f32.mrb[0].mxu0
    %v3771 = vpop.f32.mrb[0].mxu0
    %3772 = vdwg.mxu0
    %3773 = vmatprep.subr.bf16.mxu0 %v2264
    %3774 = vmatpush1.bf16.msra.mxu0 %v2263
    %3775 = vmatprep.subr.bf16.mxu0 %v2272
    %3776 = vmatpush1.bf16.msra.mxu0 %v2271
    %3777 = vmatprep.subr.bf16.mxu0 %v2280
    %3778 = vmatpush1.bf16.msra.mxu0 %v2279
    %3779 = vmatprep.subr.bf16.mxu0 %v2288
    %3780 = vmatpush1.bf16.msra.mxu0 %v2287
    %3781 = vmatprep.subr.bf16.mxu0 %v2296
    %3782 = vmatpush1.bf16.msra.mxu0 %v2295
    %3783 = vmatprep.subr.bf16.mxu0 %v2304
    %3784 = vmatpush1.bf16.msra.mxu0 %v2303
    %3785 = vmatprep.subr.bf16.mxu0 %v2312
    %3786 = vmatpush1.bf16.msra.mxu0 %v2311
    %3787 = vmatprep.subr.bf16.mxu0 %v2320
    %3788 = vmatpush1.bf16.msra.mxu0 %v2319
    %3789 = vmatprep.subr.bf16.mxu0 %v2328
    %3790 = vmatpush1.bf16.msra.mxu0 %v2327
    %3791 = vmatprep.subr.bf16.mxu0 %v2336
    %3792 = vmatpush1.bf16.msra.mxu0 %v2335
    %3793 = vmatprep.subr.bf16.mxu0 %v2344
    %3794 = vmatpush1.bf16.msra.mxu0 %v2343
    %3795 = vmatprep.subr.bf16.mxu0 %v2352
    %3796 = vmatpush1.bf16.msra.mxu0 %v2351
    %3797 = vmatprep.subr.bf16.mxu0 %v2360
    %3798 = vmatpush1.bf16.msra.mxu0 %v2359
    %3799 = vmatprep.subr.bf16.mxu0 %v2368
    %3800 = vmatpush1.bf16.msra.mxu0 %v2367
    %3801 = vmatprep.subr.bf16.mxu0 %v2376
    %3802 = vmatpush1.bf16.msra.mxu0 %v2375
    %3803 = vmatprep.subr.bf16.mxu0 %v2384
    %3804 = vmatpush1.bf16.msra.mxu0 %v2383
    %3805 = vmatprep.mubr.bf16.mxu0 %v160
    %3806 = vmatmul.mubr.bf16.gmra.mrb[0].mxu0 %v159
    %v3807 = vpop.f32.mrb[0].mxu0
    %v3808 = vadd.f32 %v708, %v3807
    %v3809 = vpop.f32.mrb[0].mxu0
    %v3810 = vadd.f32 %v712, %v3809
    %v3811 = vpop.f32.mrb[0].mxu0
    %v3812 = vpop.f32.mrb[0].mxu0
    %3813 = vdwg.mxu0
    %3814 = vmatprep.subr.bf16.mxu0 %v2392
    %3815 = vmatpush1.bf16.msra.mxu0 %v2391
    %3816 = vmatprep.subr.bf16.mxu0 %v2400
    %3817 = vmatpush1.bf16.msra.mxu0 %v2399
    %3818 = vmatprep.subr.bf16.mxu0 %v2408
    %3819 = vmatpush1.bf16.msra.mxu0 %v2407
    %3820 = vmatprep.subr.bf16.mxu0 %v2416
    %3821 = vmatpush1.bf16.msra.mxu0 %v2415
    %3822 = vmatprep.subr.bf16.mxu0 %v2424
    %3823 = vmatpush1.bf16.msra.mxu0 %v2423
    %3824 = vmatprep.subr.bf16.mxu0 %v2432
    %3825 = vmatpush1.bf16.msra.mxu0 %v2431
    %3826 = vmatprep.subr.bf16.mxu0 %v2440
    %3827 = vmatpush1.bf16.msra.mxu0 %v2439
    %3828 = vmatprep.subr.bf16.mxu0 %v2448
    %3829 = vmatpush1.bf16.msra.mxu0 %v2447
    %3830 = vmatprep.subr.bf16.mxu0 %v2456
    %3831 = vmatpush1.bf16.msra.mxu0 %v2455
    %3832 = vmatprep.subr.bf16.mxu0 %v2464
    %3833 = vmatpush1.bf16.msra.mxu0 %v2463
    %3834 = vmatprep.subr.bf16.mxu0 %v2472
    %3835 = vmatpush1.bf16.msra.mxu0 %v2471
    %3836 = vmatprep.subr.bf16.mxu0 %v2480
    %3837 = vmatpush1.bf16.msra.mxu0 %v2479
    %3838 = vmatprep.subr.bf16.mxu0 %v2488
    %3839 = vmatpush1.bf16.msra.mxu0 %v2487
    %3840 = vmatprep.subr.bf16.mxu0 %v2496
    %3841 = vmatpush1.bf16.msra.mxu0 %v2495
    %3842 = vmatprep.subr.bf16.mxu0 %v2504
    %3843 = vmatpush1.bf16.msra.mxu0 %v2503
    %3844 = vmatprep.subr.bf16.mxu0 %v2512
    %3845 = vmatpush1.bf16.msra.mxu0 %v2511
    %3846 = vmatprep.mubr.bf16.mxu0 %v162
    %3847 = vmatmul.mubr.bf16.gmra.mrb[0].mxu0 %v161
    %v3848 = vpop.f32.mrb[0].mxu0
    %v3849 = vadd.f32 %v3808, %v3848
    %v3850 = vpop.f32.mrb[0].mxu0
    %v3851 = vadd.f32 %v3810, %v3850
    %v3852 = vpop.f32.mrb[0].mxu0
    %v3853 = vpop.f32.mrb[0].mxu0
    %3854 = vdwg.mxu0
    %3855 = vmatprep.subr.bf16.mxu0 %v2520
    %3856 = vmatpush1.bf16.msra.mxu0 %v2519
    %3857 = vmatprep.subr.bf16.mxu0 %v2528
    %3858 = vmatpush1.bf16.msra.mxu0 %v2527
    %3859 = vmatprep.subr.bf16.mxu0 %v2536
    %3860 = vmatpush1.bf16.msra.mxu0 %v2535
    %3861 = vmatprep.subr.bf16.mxu0 %v2544
    %3862 = vmatpush1.bf16.msra.mxu0 %v2543
    %3863 = vmatprep.subr.bf16.mxu0 %v2552
    %3864 = vmatpush1.bf16.msra.mxu0 %v2551
    %3865 = vmatprep.subr.bf16.mxu0 %v2560
    %3866 = vmatpush1.bf16.msra.mxu0 %v2559
    %3867 = vmatprep.subr.bf16.mxu0 %v2568
    %3868 = vmatpush1.bf16.msra.mxu0 %v2567
    %3869 = vmatprep.subr.bf16.mxu0 %v2576
    %3870 = vmatpush1.bf16.msra.mxu0 %v2575
    %3871 = vmatprep.subr.bf16.mxu0 %v2584
    %3872 = vmatpush1.bf16.msra.mxu0 %v2583
    %3873 = vmatprep.subr.bf16.mxu0 %v2592
    %3874 = vmatpush1.bf16.msra.mxu0 %v2591
    %3875 = vmatprep.subr.bf16.mxu0 %v2600
    %3876 = vmatpush1.bf16.msra.mxu0 %v2599
    %3877 = vmatprep.subr.bf16.mxu0 %v2608
    %3878 = vmatpush1.bf16.msra.mxu0 %v2607
    %3879 = vmatprep.subr.bf16.mxu0 %v2616
    %3880 = vmatpush1.bf16.msra.mxu0 %v2615
    %3881 = vmatprep.subr.bf16.mxu0 %v2624
    %3882 = vmatpush1.bf16.msra.mxu0 %v2623
    %3883 = vmatprep.subr.bf16.mxu0 %v2632
    %3884 = vmatpush1.bf16.msra.mxu0 %v2631
    %3885 = vmatprep.subr.bf16.mxu0 %v2640
    %3886 = vmatpush1.bf16.msra.mxu0 %v2639
    %3887 = vmatprep.mubr.bf16.mxu0 %v164
    %3888 = vmatmul.mubr.bf16.gmra.mrb[0].mxu0 %v163
    %v3889 = vpop.f32.mrb[0].mxu0
    %v3890 = vadd.f32 %v3849, %v3889
    %v3891 = vpop.f32.mrb[0].mxu0
    %v3892 = vadd.f32 %v3851, %v3891
    %v3893 = vpop.f32.mrb[0].mxu0
    %v3894 = vpop.f32.mrb[0].mxu0
    %3895 = vdwg.mxu0
    %3896 = vmatprep.subr.bf16.mxu0 %v2648
    %3897 = vmatpush1.bf16.msra.mxu0 %v2647
    %3898 = vmatprep.subr.bf16.mxu0 %v2656
    %3899 = vmatpush1.bf16.msra.mxu0 %v2655
    %3900 = vmatprep.subr.bf16.mxu0 %v2664
    %3901 = vmatpush1.bf16.msra.mxu0 %v2663
    %3902 = vmatprep.subr.bf16.mxu0 %v2672
    %3903 = vmatpush1.bf16.msra.mxu0 %v2671
    %3904 = vmatprep.subr.bf16.mxu0 %v2680
    %3905 = vmatpush1.bf16.msra.mxu0 %v2679
    %3906 = vmatprep.subr.bf16.mxu0 %v2688
    %3907 = vmatpush1.bf16.msra.mxu0 %v2687
    %3908 = vmatprep.subr.bf16.mxu0 %v2696
    %3909 = vmatpush1.bf16.msra.mxu0 %v2695
    %3910 = vmatprep.subr.bf16.mxu0 %v2704
    %3911 = vmatpush1.bf16.msra.mxu0 %v2703
    %3912 = vmatprep.subr.bf16.mxu0 %v2712
    %3913 = vmatpush1.bf16.msra.mxu0 %v2711
    %3914 = vmatprep.subr.bf16.mxu0 %v2720
    %3915 = vmatpush1.bf16.msra.mxu0 %v2719
    %3916 = vmatprep.subr.bf16.mxu0 %v2728
    %3917 = vmatpush1.bf16.msra.mxu0 %v2727
    %3918 = vmatprep.subr.bf16.mxu0 %v2736
    %3919 = vmatpush1.bf16.msra.mxu0 %v2735
    %3920 = vmatprep.subr.bf16.mxu0 %v2744
    %3921 = vmatpush1.bf16.msra.mxu0 %v2743
    %3922 = vmatprep.subr.bf16.mxu0 %v2752
    %3923 = vmatpush1.bf16.msra.mxu0 %v2751
    %3924 = vmatprep.subr.bf16.mxu0 %v2760
    %3925 = vmatpush1.bf16.msra.mxu0 %v2759
    %3926 = vmatprep.subr.bf16.mxu0 %v2768
    %3927 = vmatpush1.bf16.msra.mxu0 %v2767
    %3928 = vmatprep.mubr.bf16.mxu0 %v166
    %3929 = vmatmul.mubr.bf16.gmra.mrb[0].mxu0 %v165
    %v3930 = vpop.f32.mrb[0].mxu0
    %v3931 = vadd.f32 %v3890, %v3930
    %v3932 = vpop.f32.mrb[0].mxu0
    %v3933 = vadd.f32 %v3892, %v3932
    %v3934 = vpop.f32.mrb[0].mxu0
    %v3935 = vpop.f32.mrb[0].mxu0
    %3936 = vdwg.mxu0
    %vm3937 = vcmask 1041408
    %v3938 = vsel %vm3937, %v3439, 0.0
    %v3939 = vrot.slane %v3938, 4
    %v3940 = vadd.f32 %v3938, %v3939
    %v3941 = vrot.slane %v3940, 2
    %v3942 = vadd.f32 %v3940, %v3941
    %v3943 = vrot.slane %v3942, 1
    %v3944 = vadd.f32 %v3942, %v3943
    %v3945 = vsel %vm3937, %v3441, 0.0
    %v3946 = vrot.slane %v3945, 4
    %v3947 = vadd.f32 %v3945, %v3946
    %v3948 = vrot.slane %v3947, 2
    %v3949 = vadd.f32 %v3947, %v3948
    %v3950 = vrot.slane %v3949, 1
    %v3951 = vadd.f32 %v3949, %v3950
    %v3952 = vsel %vm3937, %v3603, 0.0
    %v3953 = vrot.slane %v3952, 4
    %v3954 = vadd.f32 %v3952, %v3953
    %v3955 = vrot.slane %v3954, 2
    %v3956 = vadd.f32 %v3954, %v3955
    %v3957 = vrot.slane %v3956, 1
    %v3958 = vadd.f32 %v3956, %v3957
    %v3959 = vsel %vm3937, %v3605, 0.0
    %v3960 = vrot.slane %v3959, 4
    %v3961 = vadd.f32 %v3959, %v3960
    %v3962 = vrot.slane %v3961, 2
    %v3963 = vadd.f32 %v3961, %v3962
    %v3964 = vrot.slane %v3963, 1
    %v3965 = vadd.f32 %v3963, %v3964
    %v3966 = vsel %vm3937, %v3767, 0.0
    %v3967 = vrot.slane %v3966, 4
    %v3968 = vadd.f32 %v3966, %v3967
    %v3969 = vrot.slane %v3968, 2
    %v3970 = vadd.f32 %v3968, %v3969
    %v3971 = vrot.slane %v3970, 1
    %v3972 = vadd.f32 %v3970, %v3971
    %v3973 = vsel %vm3937, %v3769, 0.0
    %v3974 = vrot.slane %v3973, 4
    %v3975 = vadd.f32 %v3973, %v3974
    %v3976 = vrot.slane %v3975, 2
    %v3977 = vadd.f32 %v3975, %v3976
    %v3978 = vrot.slane %v3977, 1
    %v3979 = vadd.f32 %v3977, %v3978
    %v3980 = vsel %vm3937, %v3931, 0.0
    %v3981 = vrot.slane %v3980, 4
    %v3982 = vadd.f32 %v3980, %v3981
    %v3983 = vrot.slane %v3982, 2
    %v3984 = vadd.f32 %v3982, %v3983
    %v3985 = vrot.slane %v3984, 1
    %v3986 = vadd.f32 %v3984, %v3985
    %v3987 = vsel %vm3937, %v3933, 0.0
    %v3988 = vrot.slane %v3987, 4
    %v3989 = vadd.f32 %v3987, %v3988
    %v3990 = vrot.slane %v3989, 2
    %v3991 = vadd.f32 %v3989, %v3990
    %v3992 = vrot.slane %v3991, 1
    %v3993 = vadd.f32 %v3991, %v3992
    %v3994 = vrcp.pop 2.0
    %v3995 = vmul.f32 %v3944, %v3994
    %v3996 = vmul.f32 %v3951, %v3994
    %v3997 = vmul.f32 %v3958, %v3994
    %v3998 = vmul.f32 %v3965, %v3994
    %v3999 = vmul.f32 %v3972, %v3994
    %v4000 = vmul.f32 %v3979, %v3994
    %v4001 = vmul.f32 %v3986, %v3994
    %v4002 = vmul.f32 %v3993, %v3994
    %v4003 = vsub.f32 %v3439, %v3995
    %v4004 = vsub.f32 %v3441, %v3996
    %v4005 = vsub.f32 %v3603, %v3997
    %v4006 = vsub.f32 %v3605, %v3998
    %v4007 = vsub.f32 %v3767, %v3999
    %v4008 = vsub.f32 %v3769, %v4000
    %v4009 = vsub.f32 %v3931, %v4001
    %v4010 = vsub.f32 %v3933, %v4002
    %v4011 = vmul.f32 %v4003, %v4003
    %v4012 = vmul.f32 %v4004, %v4004
    %v4013 = vmul.f32 %v4005, %v4005
    %v4014 = vmul.f32 %v4006, %v4006
    %v4015 = vmul.f32 %v4007, %v4007
    %v4016 = vmul.f32 %v4008, %v4008
    %v4017 = vmul.f32 %v4009, %v4009
    %v4018 = vmul.f32 %v4010, %v4010
    %v4019 = vsel %vm3937, %v4011, 0.0
    %v4020 = vrot.slane %v4019, 4
    %v4021 = vadd.f32 %v4019, %v4020
    %v4022 = vrot.slane %v4021, 2
    %v4023 = vadd.f32 %v4021, %v4022
    %v4024 = vrot.slane %v4023, 1
    %v4025 = vadd.f32 %v4023, %v4024
    %v4026 = vsel %vm3937, %v4012, 0.0
    %v4027 = vrot.slane %v4026, 4
    %v4028 = vadd.f32 %v4026, %v4027
    %v4029 = vrot.slane %v4028, 2
    %v4030 = vadd.f32 %v4028, %v4029
    %v4031 = vrot.slane %v4030, 1
    %v4032 = vadd.f32 %v4030, %v4031
    %v4033 = vsel %vm3937, %v4013, 0.0
    %v4034 = vrot.slane %v4033, 4
    %v4035 = vadd.f32 %v4033, %v4034
    %v4036 = vrot.slane %v4035, 2
    %v4037 = vadd.f32 %v4035, %v4036
    %v4038 = vrot.slane %v4037, 1
    %v4039 = vadd.f32 %v4037, %v4038
    %v4040 = vsel %vm3937, %v4014, 0.0
    %v4041 = vrot.slane %v4040, 4
    %v4042 = vadd.f32 %v4040, %v4041
    %v4043 = vrot.slane %v4042, 2
    %v4044 = vadd.f32 %v4042, %v4043
    %v4045 = vrot.slane %v4044, 1
    %v4046 = vadd.f32 %v4044, %v4045
    %v4047 = vsel %vm3937, %v4015, 0.0
    %v4048 = vrot.slane %v4047, 4
    %v4049 = vadd.f32 %v4047, %v4048
    %v4050 = vrot.slane %v4049, 2
    %v4051 = vadd.f32 %v4049, %v4050
    %v4052 = vrot.slane %v4051, 1
    %v4053 = vadd.f32 %v4051, %v4052
    %v4054 = vsel %vm3937, %v4016, 0.0
    %v4055 = vrot.slane %v4054, 4
    %v4056 = vadd.f32 %v4054, %v4055
    %v4057 = vrot.slane %v4056, 2
    %v4058 = vadd.f32 %v4056, %v4057
    %v4059 = vrot.slane %v4058, 1
    %v4060 = vadd.f32 %v4058, %v4059
    %v4061 = vsel %vm3937, %v4017, 0.0
    %v4062 = vrot.slane %v4061, 4
    %v4063 = vadd.f32 %v4061, %v4062
    %v4064 = vrot.slane %v4063, 2
    %v4065 = vadd.f32 %v4063, %v4064
    %v4066 = vrot.slane %v4065, 1
    %v4067 = vadd.f32 %v4065, %v4066
    %v4068 = vsel %vm3937, %v4018, 0.0
    %v4069 = vrot.slane %v4068, 4
    %v4070 = vadd.f32 %v4068, %v4069
    %v4071 = vrot.slane %v4070, 2
    %v4072 = vadd.f32 %v4070, %v4071
    %v4073 = vrot.slane %v4072, 1
    %v4074 = vadd.f32 %v4072, %v4073
    %v4075 = vmul.f32 %v4025, %v3994
    %v4076 = vmul.f32 %v4032, %v3994
    %v4077 = vmul.f32 %v4039, %v3994
    %v4078 = vmul.f32 %v4046, %v3994
    %v4079 = vmul.f32 %v4053, %v3994
    %v4080 = vmul.f32 %v4060, %v3994
    %v4081 = vmul.f32 %v4067, %v3994
    %v4082 = vmul.f32 %v4074, %v3994
    %v4083 = vld [vmem:[#allocation8] sm:$0xff]
    %v4085 = vlaneseq
    %v4086 = vshrl.u32 %v4085, 7
    %v4087 = vsub.s32 0, %v4086
    %v4088 = vrot.slane %v4083, %v4087
    %v4089 = vlaneseq
    %v4090 = vshrl.u32 %v4089, 7
    %v4091 = vsub.s32 1, %v4090
    %v4092 = vrot.slane %v4083, %v4091
    %v4093 = vlaneseq
    %v4094 = vshrl.u32 %v4093, 7
    %v4095 = vsub.s32 2, %v4094
    %v4096 = vrot.slane %v4083, %v4095
    %v4097 = vlaneseq
    %v4098 = vshrl.u32 %v4097, 7
    %v4099 = vsub.s32 3, %v4098
    %v4100 = vrot.slane %v4083, %v4099
    %v4101 = vlaneseq
    %v4102 = vshrl.u32 %v4101, 7
    %v4103 = vsub.s32 4, %v4102
    %v4104 = vrot.slane %v4083, %v4103
    %v4105 = vlaneseq
    %v4106 = vshrl.u32 %v4105, 7
    %v4107 = vsub.s32 5, %v4106
    %v4108 = vrot.slane %v4083, %v4107
    %v4109 = vlaneseq
    %v4110 = vshrl.u32 %v4109, 7
    %v4111 = vsub.s32 6, %v4110
    %v4112 = vrot.slane %v4083, %v4111
    %v4113 = vlaneseq
    %v4114 = vshrl.u32 %v4113, 7
    %v4115 = vsub.s32 7, %v4114
    %v4116 = vrot.slane %v4083, %v4115
    %v4125 = vmul.f32 %v4088, %v4003
    %v4126 = vmul.f32 %v4092, %v4004
    %v4127 = vmul.f32 %v4096, %v4005
    %v4128 = vmul.f32 %v4100, %v4006
    %v4129 = vmul.f32 %v4104, %v4007
    %v4130 = vmul.f32 %v4108, %v4008
    %v4131 = vmul.f32 %v4112, %v4009
    %v4132 = vmul.f32 %v4116, %v4010
    %v4133 = vadd.f32 %v4075, 1e-05
    %v4134 = vadd.f32 %v4076, 1e-05
    %v4135 = vadd.f32 %v4077, 1e-05
    %v4136 = vadd.f32 %v4078, 1e-05
    %v4137 = vadd.f32 %v4079, 1e-05
    %v4138 = vadd.f32 %v4080, 1e-05
    %v4139 = vadd.f32 %v4081, 1e-05
    %v4140 = vadd.f32 %v4082, 1e-05
    %v4141 = vrsqrt.pop %v4133
    %v4142 = vrsqrt.pop %v4134
    %v4143 = vrsqrt.pop %v4135
    %v4144 = vrsqrt.pop %v4136
    %v4145 = vrsqrt.pop %v4137
    %v4146 = vrsqrt.pop %v4138
    %v4147 = vrsqrt.pop %v4139
    %v4148 = vrsqrt.pop %v4140
    %v4149 = vmul.f32 %v4125, %v4141
    %v4150 = vmul.f32 %v4126, %v4142
    %v4151 = vmul.f32 %v4127, %v4143
    %v4152 = vmul.f32 %v4128, %v4144
    %v4153 = vmul.f32 %v4129, %v4145
    %v4154 = vmul.f32 %v4130, %v4146
    %v4155 = vmul.f32 %v4131, %v4147
    %v4156 = vmul.f32 %v4132, %v4148
    %v4157 = vld [vmem:[#allocation10] sm:$0xff]
    %v4159 = vlaneseq
    %v4160 = vshrl.u32 %v4159, 7
    %v4161 = vsub.s32 0, %v4160
    %v4162 = vrot.slane %v4157, %v4161
    %v4163 = vlaneseq
    %v4164 = vshrl.u32 %v4163, 7
    %v4165 = vsub.s32 1, %v4164
    %v4166 = vrot.slane %v4157, %v4165
    %v4167 = vlaneseq
    %v4168 = vshrl.u32 %v4167, 7
    %v4169 = vsub.s32 2, %v4168
    %v4170 = vrot.slane %v4157, %v4169
    %v4171 = vlaneseq
    %v4172 = vshrl.u32 %v4171, 7
    %v4173 = vsub.s32 3, %v4172
    %v4174 = vrot.slane %v4157, %v4173
    %v4175 = vlaneseq
    %v4176 = vshrl.u32 %v4175, 7
    %v4177 = vsub.s32 4, %v4176
    %v4178 = vrot.slane %v4157, %v4177
    %v4179 = vlaneseq
    %v4180 = vshrl.u32 %v4179, 7
    %v4181 = vsub.s32 5, %v4180
    %v4182 = vrot.slane %v4157, %v4181
    %v4183 = vlaneseq
    %v4184 = vshrl.u32 %v4183, 7
    %v4185 = vsub.s32 6, %v4184
    %v4186 = vrot.slane %v4157, %v4185
    %v4187 = vlaneseq
    %v4188 = vshrl.u32 %v4187, 7
    %v4189 = vsub.s32 7, %v4188
    %v4190 = vrot.slane %v4157, %v4189
    %v4199 = vadd.f32 %v4149, %v4162
    %v4200 = vadd.f32 %v4150, %v4166
    %v4201 = vadd.f32 %v4151, %v4170
    %v4202 = vadd.f32 %v4152, %v4174
    %v4203 = vadd.f32 %v4153, %v4178
    %v4204 = vadd.f32 %v4154, %v4182
    %v4205 = vadd.f32 %v4155, %v4186
    %v4206 = vadd.f32 %v4156, %v4190
    %v4207 = vmax.f32 %v4199, 0.0
    %v4208 = vmax.f32 %v4200, 0.0
    %v4209 = vmax.f32 %v4201, 0.0
    %v4210 = vmax.f32 %v4202, 0.0
    %v4211 = vmax.f32 %v4203, 0.0
    %v4212 = vmax.f32 %v4204, 0.0
    %v4213 = vmax.f32 %v4205, 0.0
    %v4214 = vmax.f32 %v4206, 0.0
    %v4215 = vpack.c.bf16 %v4207, %v4207
    %v4216 = vpack.c.bf16 %v4208, %v4208
    %v4217 = vpack.c.bf16 %v4209, %v4209
    %v4218 = vpack.c.bf16 %v4210, %v4210
    %v4219 = vpack.c.bf16 %v4211, %v4211
    %v4220 = vpack.c.bf16 %v4212, %v4212
    %v4221 = vpack.c.bf16 %v4213, %v4213
    %v4222 = vpack.c.bf16 %v4214, %v4214
    %v4223 = vld [vmem:[#allocation11] sm:$0xf]
    %v4224 = vld [vmem:[#allocation11 + $0x4] sm:$0xf]
    %v4225 = vld [vmem:[#allocation11 + $0x8] sm:$0xf]
    %v4226 = vld [vmem:[#allocation11 + $0xc] sm:$0xf]
    %v4227 = vld [vmem:[#allocation11 + $0x10] sm:$0xf]
    %v4228 = vld [vmem:[#allocation11 + $0x14] sm:$0xf]
    %v4229 = vld [vmem:[#allocation11 + $0x18] sm:$0xf]
    %v4230 = vld [vmem:[#allocation11 + $0x1c] sm:$0xf]
    %v4231 = vld [vmem:[#allocation11 + $0x20] sm:$0xf]
    %v4232 = vld [vmem:[#allocation11 + $0x24] sm:$0xf]
    %v4233 = vld [vmem:[#allocation11 + $0x28] sm:$0xf]
    %v4234 = vld [vmem:[#allocation11 + $0x2c] sm:$0xf]
    %v4235 = vld [vmem:[#allocation11 + $0x30] sm:$0xf]
    %v4236 = vld [vmem:[#allocation11 + $0x34] sm:$0xf]
    %v4237 = vld [vmem:[#allocation11 + $0x38] sm:$0xf]
    %v4238 = vld [vmem:[#allocation11 + $0x3c] sm:$0xf]
    %v4239 = vld [vmem:[#allocation11 + $0x40] sm:$0xf]
    %v4240 = vld [vmem:[#allocation11 + $0x44] sm:$0xf]
    %v4241 = vld [vmem:[#allocation11 + $0x48] sm:$0xf]
    %v4242 = vld [vmem:[#allocation11 + $0x4c] sm:$0xf]
    %v4243 = vld [vmem:[#allocation11 + $0x50] sm:$0xf]
    %v4244 = vld [vmem:[#allocation11 + $0x54] sm:$0xf]
    %v4245 = vld [vmem:[#allocation11 + $0x58] sm:$0xf]
    %v4246 = vld [vmem:[#allocation11 + $0x5c] sm:$0xf]
    %v4247 = vld [vmem:[#allocation11 + $0x60] sm:$0xf]
    %v4248 = vld [vmem:[#allocation11 + $0x64] sm:$0xf]
    %v4249 = vld [vmem:[#allocation11 + $0x68] sm:$0xf]
    %v4250 = vld [vmem:[#allocation11 + $0x6c] sm:$0xf]
    %v4251 = vld [vmem:[#allocation11 + $0x70] sm:$0xf]
    %v4252 = vld [vmem:[#allocation11 + $0x74] sm:$0xf]
    %v4253 = vld [vmem:[#allocation11 + $0x78] sm:$0xf]
    %v4254 = vld [vmem:[#allocation11 + $0x7c] sm:$0xf]
    %v4255 = vld [vmem:[#allocation11 + $0x80] sm:$0xf]
    %v4256 = vld [vmem:[#allocation11 + $0x84] sm:$0xf]
    %v4257 = vld [vmem:[#allocation11 + $0x88] sm:$0xf]
    %v4258 = vld [vmem:[#allocation11 + $0x8c] sm:$0xf]
    %v4259 = vld [vmem:[#allocation11 + $0x90] sm:$0xf]
    %v4260 = vld [vmem:[#allocation11 + $0x94] sm:$0xf]
    %v4261 = vld [vmem:[#allocation11 + $0x98] sm:$0xf]
    %v4262 = vld [vmem:[#allocation11 + $0x9c] sm:$0xf]
    %v4263 = vld [vmem:[#allocation11 + $0xa0] sm:$0xf]
    %v4264 = vld [vmem:[#allocation11 + $0xa4] sm:$0xf]
    %v4265 = vld [vmem:[#allocation11 + $0xa8] sm:$0xf]
    %v4266 = vld [vmem:[#allocation11 + $0xac] sm:$0xf]
    %v4267 = vld [vmem:[#allocation11 + $0xb0] sm:$0xf]
    %v4268 = vld [vmem:[#allocation11 + $0xb4] sm:$0xf]
    %v4269 = vld [vmem:[#allocation11 + $0xb8] sm:$0xf]
    %v4270 = vld [vmem:[#allocation11 + $0xbc] sm:$0xf]
    %v4271 = vld [vmem:[#allocation11 + $0xc0] sm:$0xf]
    %v4272 = vld [vmem:[#allocation11 + $0xc4] sm:$0xf]
    %v4273 = vld [vmem:[#allocation11 + $0xc8] sm:$0xf]
    %v4274 = vld [vmem:[#allocation11 + $0xcc] sm:$0xf]
    %v4275 = vld [vmem:[#allocation11 + $0xd0] sm:$0xf]
    %v4276 = vld [vmem:[#allocation11 + $0xd4] sm:$0xf]
    %v4277 = vld [vmem:[#allocation11 + $0xd8] sm:$0xf]
    %v4278 = vld [vmem:[#allocation11 + $0xdc] sm:$0xf]
    %v4279 = vld [vmem:[#allocation11 + $0xe0] sm:$0xf]
    %v4280 = vld [vmem:[#allocation11 + $0xe4] sm:$0xf]
    %v4281 = vld [vmem:[#allocation11 + $0xe8] sm:$0xf]
    %v4282 = vld [vmem:[#allocation11 + $0xec] sm:$0xf]
    %v4283 = vld [vmem:[#allocation11 + $0xf0] sm:$0xf]
    %v4284 = vld [vmem:[#allocation11 + $0xf4] sm:$0xf]
    %v4285 = vld [vmem:[#allocation11 + $0xf8] sm:$0xf]
    %v4286 = vld [vmem:[#allocation11 + $0xfc] sm:$0xf]
    %v4287 = vld [vmem:[#allocation11 + $0x100] sm:$0xf]
    %v4288 = vld [vmem:[#allocation11 + $0x104] sm:$0xf]
    %v4289 = vld [vmem:[#allocation11 + $0x108] sm:$0xf]
    %v4290 = vld [vmem:[#allocation11 + $0x10c] sm:$0xf]
    %v4291 = vld [vmem:[#allocation11 + $0x110] sm:$0xf]
    %v4292 = vld [vmem:[#allocation11 + $0x114] sm:$0xf]
    %v4293 = vld [vmem:[#allocation11 + $0x118] sm:$0xf]
    %v4294 = vld [vmem:[#allocation11 + $0x11c] sm:$0xf]
    %v4295 = vld [vmem:[#allocation11 + $0x120] sm:$0xf]
    %v4296 = vld [vmem:[#allocation11 + $0x124] sm:$0xf]
    %v4297 = vld [vmem:[#allocation11 + $0x128] sm:$0xf]
    %v4298 = vld [vmem:[#allocation11 + $0x12c] sm:$0xf]
    %v4299 = vld [vmem:[#allocation11 + $0x130] sm:$0xf]
    %v4300 = vld [vmem:[#allocation11 + $0x134] sm:$0xf]
    %v4301 = vld [vmem:[#allocation11 + $0x138] sm:$0xf]
    %v4302 = vld [vmem:[#allocation11 + $0x13c] sm:$0xf]
    %v4303 = vld [vmem:[#allocation11 + $0x140] sm:$0xf]
    %v4304 = vld [vmem:[#allocation11 + $0x144] sm:$0xf]
    %v4305 = vld [vmem:[#allocation11 + $0x148] sm:$0xf]
    %v4306 = vld [vmem:[#allocation11 + $0x14c] sm:$0xf]
    %v4307 = vld [vmem:[#allocation11 + $0x150] sm:$0xf]
    %v4308 = vld [vmem:[#allocation11 + $0x154] sm:$0xf]
    %v4309 = vld [vmem:[#allocation11 + $0x158] sm:$0xf]
    %v4310 = vld [vmem:[#allocation11 + $0x15c] sm:$0xf]
    %v4311 = vld [vmem:[#allocation11 + $0x160] sm:$0xf]
    %v4312 = vld [vmem:[#allocation11 + $0x164] sm:$0xf]
    %v4313 = vld [vmem:[#allocation11 + $0x168] sm:$0xf]
    %v4314 = vld [vmem:[#allocation11 + $0x16c] sm:$0xf]
    %v4315 = vld [vmem:[#allocation11 + $0x170] sm:$0xf]
    %v4316 = vld [vmem:[#allocation11 + $0x174] sm:$0xf]
    %v4317 = vld [vmem:[#allocation11 + $0x178] sm:$0xf]
    %v4318 = vld [vmem:[#allocation11 + $0x17c] sm:$0xf]
    %v4319 = vld [vmem:[#allocation11 + $0x180] sm:$0xf]
    %v4320 = vld [vmem:[#allocation11 + $0x184] sm:$0xf]
    %v4321 = vld [vmem:[#allocation11 + $0x188] sm:$0xf]
    %v4322 = vld [vmem:[#allocation11 + $0x18c] sm:$0xf]
    %v4323 = vld [vmem:[#allocation11 + $0x190] sm:$0xf]
    %v4324 = vld [vmem:[#allocation11 + $0x194] sm:$0xf]
    %v4325 = vld [vmem:[#allocation11 + $0x198] sm:$0xf]
    %v4326 = vld [vmem:[#allocation11 + $0x19c] sm:$0xf]
    %v4327 = vld [vmem:[#allocation11 + $0x1a0] sm:$0xf]
    %v4328 = vld [vmem:[#allocation11 + $0x1a4] sm:$0xf]
    %v4329 = vld [vmem:[#allocation11 + $0x1a8] sm:$0xf]
    %v4330 = vld [vmem:[#allocation11 + $0x1ac] sm:$0xf]
    %v4331 = vld [vmem:[#allocation11 + $0x1b0] sm:$0xf]
    %v4332 = vld [vmem:[#allocation11 + $0x1b4] sm:$0xf]
    %v4333 = vld [vmem:[#allocation11 + $0x1b8] sm:$0xf]
    %v4334 = vld [vmem:[#allocation11 + $0x1bc] sm:$0xf]
    %v4335 = vld [vmem:[#allocation11 + $0x1c0] sm:$0xf]
    %v4336 = vld [vmem:[#allocation11 + $0x1c4] sm:$0xf]
    %v4337 = vld [vmem:[#allocation11 + $0x1c8] sm:$0xf]
    %v4338 = vld [vmem:[#allocation11 + $0x1cc] sm:$0xf]
    %v4339 = vld [vmem:[#allocation11 + $0x1d0] sm:$0xf]
    %v4340 = vld [vmem:[#allocation11 + $0x1d4] sm:$0xf]
    %v4341 = vld [vmem:[#allocation11 + $0x1d8] sm:$0xf]
    %v4342 = vld [vmem:[#allocation11 + $0x1dc] sm:$0xf]
    %v4343 = vld [vmem:[#allocation11 + $0x1e0] sm:$0xf]
    %v4344 = vld [vmem:[#allocation11 + $0x1e4] sm:$0xf]
    %v4345 = vld [vmem:[#allocation11 + $0x1e8] sm:$0xf]
    %v4346 = vld [vmem:[#allocation11 + $0x1ec] sm:$0xf]
    %v4347 = vld [vmem:[#allocation11 + $0x1f0] sm:$0xf]
    %v4348 = vld [vmem:[#allocation11 + $0x1f4] sm:$0xf]
    %v4349 = vld [vmem:[#allocation11 + $0x1f8] sm:$0xf]
    %v4350 = vld [vmem:[#allocation11 + $0x1fc] sm:$0xf]
    %v4351 = vld [vmem:[#allocation13] sm:$0x1]
    %v4353 = vlaneseq
    %v4354 = vshrl.u32 %v4353, 7
    %v4355 = vsub.s32 0, %v4354
    %v4356 = vrot.slane %v4351, %v4355
    %v4486 = vunpack.c.l.b16 %v4223
    %v4487 = vunpack.c.l.b16 %v4224
    %v4488 = vunpack.c.l.b16 %v4225
    %v4489 = vunpack.c.l.b16 %v4226
    %v4490 = vunpack.c.l.b16 %v4227
    %v4491 = vunpack.c.l.b16 %v4228
    %v4492 = vunpack.c.l.b16 %v4229
    %v4493 = vunpack.c.l.b16 %v4230
    %v4494 = vunpack.c.l.b16 %v4231
    %v4495 = vunpack.c.l.b16 %v4232
    %v4496 = vunpack.c.l.b16 %v4233
    %v4497 = vunpack.c.l.b16 %v4234
    %v4498 = vunpack.c.l.b16 %v4235
    %v4499 = vunpack.c.l.b16 %v4236
    %v4500 = vunpack.c.l.b16 %v4237
    %v4501 = vunpack.c.l.b16 %v4238
    %v4502 = vunpack.c.l.b16 %v4239
    %v4503 = vunpack.c.l.b16 %v4240
    %v4504 = vunpack.c.l.b16 %v4241
    %v4505 = vunpack.c.l.b16 %v4242
    %v4506 = vunpack.c.l.b16 %v4243
    %v4507 = vunpack.c.l.b16 %v4244
    %v4508 = vunpack.c.l.b16 %v4245
    %v4509 = vunpack.c.l.b16 %v4246
    %v4510 = vunpack.c.l.b16 %v4247
    %v4511 = vunpack.c.l.b16 %v4248
    %v4512 = vunpack.c.l.b16 %v4249
    %v4513 = vunpack.c.l.b16 %v4250
    %v4514 = vunpack.c.l.b16 %v4251
    %v4515 = vunpack.c.l.b16 %v4252
    %v4516 = vunpack.c.l.b16 %v4253
    %v4517 = vunpack.c.l.b16 %v4254
    %v4518 = vunpack.c.l.b16 %v4255
    %v4519 = vunpack.c.l.b16 %v4256
    %v4520 = vunpack.c.l.b16 %v4257
    %v4521 = vunpack.c.l.b16 %v4258
    %v4522 = vunpack.c.l.b16 %v4259
    %v4523 = vunpack.c.l.b16 %v4260
    %v4524 = vunpack.c.l.b16 %v4261
    %v4525 = vunpack.c.l.b16 %v4262
    %v4526 = vunpack.c.l.b16 %v4263
    %v4527 = vunpack.c.l.b16 %v4264
    %v4528 = vunpack.c.l.b16 %v4265
    %v4529 = vunpack.c.l.b16 %v4266
    %v4530 = vunpack.c.l.b16 %v4267
    %v4531 = vunpack.c.l.b16 %v4268
    %v4532 = vunpack.c.l.b16 %v4269
    %v4533 = vunpack.c.l.b16 %v4270
    %v4534 = vunpack.c.l.b16 %v4271
    %v4535 = vunpack.c.l.b16 %v4272
    %v4536 = vunpack.c.l.b16 %v4273
    %v4537 = vunpack.c.l.b16 %v4274
    %v4538 = vunpack.c.l.b16 %v4275
    %v4539 = vunpack.c.l.b16 %v4276
    %v4540 = vunpack.c.l.b16 %v4277
    %v4541 = vunpack.c.l.b16 %v4278
    %v4542 = vunpack.c.l.b16 %v4279
    %v4543 = vunpack.c.l.b16 %v4280
    %v4544 = vunpack.c.l.b16 %v4281
    %v4545 = vunpack.c.l.b16 %v4282
    %v4546 = vunpack.c.l.b16 %v4283
    %v4547 = vunpack.c.l.b16 %v4284
    %v4548 = vunpack.c.l.b16 %v4285
    %v4549 = vunpack.c.l.b16 %v4286
    %v4550 = vunpack.c.l.b16 %v4287
    %v4551 = vunpack.c.l.b16 %v4288
    %v4552 = vunpack.c.l.b16 %v4289
    %v4553 = vunpack.c.l.b16 %v4290
    %v4554 = vunpack.c.l.b16 %v4291
    %v4555 = vunpack.c.l.b16 %v4292
    %v4556 = vunpack.c.l.b16 %v4293
    %v4557 = vunpack.c.l.b16 %v4294
    %v4558 = vunpack.c.l.b16 %v4295
    %v4559 = vunpack.c.l.b16 %v4296
    %v4560 = vunpack.c.l.b16 %v4297
    %v4561 = vunpack.c.l.b16 %v4298
    %v4562 = vunpack.c.l.b16 %v4299
    %v4563 = vunpack.c.l.b16 %v4300
    %v4564 = vunpack.c.l.b16 %v4301
    %v4565 = vunpack.c.l.b16 %v4302
    %v4566 = vunpack.c.l.b16 %v4303
    %v4567 = vunpack.c.l.b16 %v4304
    %v4568 = vunpack.c.l.b16 %v4305
    %v4569 = vunpack.c.l.b16 %v4306
    %v4570 = vunpack.c.l.b16 %v4307
    %v4571 = vunpack.c.l.b16 %v4308
    %v4572 = vunpack.c.l.b16 %v4309
    %v4573 = vunpack.c.l.b16 %v4310
    %v4574 = vunpack.c.l.b16 %v4311
    %v4575 = vunpack.c.l.b16 %v4312
    %v4576 = vunpack.c.l.b16 %v4313
    %v4577 = vunpack.c.l.b16 %v4314
    %v4578 = vunpack.c.l.b16 %v4315
    %v4579 = vunpack.c.l.b16 %v4316
    %v4580 = vunpack.c.l.b16 %v4317
    %v4581 = vunpack.c.l.b16 %v4318
    %v4582 = vunpack.c.l.b16 %v4319
    %v4583 = vunpack.c.l.b16 %v4320
    %v4584 = vunpack.c.l.b16 %v4321
    %v4585 = vunpack.c.l.b16 %v4322
    %v4586 = vunpack.c.l.b16 %v4323
    %v4587 = vunpack.c.l.b16 %v4324
    %v4588 = vunpack.c.l.b16 %v4325
    %v4589 = vunpack.c.l.b16 %v4326
    %v4590 = vunpack.c.l.b16 %v4327
    %v4591 = vunpack.c.l.b16 %v4328
    %v4592 = vunpack.c.l.b16 %v4329
    %v4593 = vunpack.c.l.b16 %v4330
    %v4594 = vunpack.c.l.b16 %v4331
    %v4595 = vunpack.c.l.b16 %v4332
    %v4596 = vunpack.c.l.b16 %v4333
    %v4597 = vunpack.c.l.b16 %v4334
    %v4598 = vunpack.c.l.b16 %v4335
    %v4599 = vunpack.c.l.b16 %v4336
    %v4600 = vunpack.c.l.b16 %v4337
    %v4601 = vunpack.c.l.b16 %v4338
    %v4602 = vunpack.c.l.b16 %v4339
    %v4603 = vunpack.c.l.b16 %v4340
    %v4604 = vunpack.c.l.b16 %v4341
    %v4605 = vunpack.c.l.b16 %v4342
    %v4606 = vunpack.c.l.b16 %v4343
    %v4607 = vunpack.c.l.b16 %v4344
    %v4608 = vunpack.c.l.b16 %v4345
    %v4609 = vunpack.c.l.b16 %v4346
    %v4610 = vunpack.c.l.b16 %v4347
    %v4611 = vunpack.c.l.b16 %v4348
    %v4612 = vunpack.c.l.b16 %v4349
    %v4613 = vunpack.c.l.b16 %v4350
    %v4614 = vpack.c.b16 %v4487, %v4486
    %v4615 = vpack.c.b16 %v4489, %v4488
    %v4616 = vpack.c.b16 %v4491, %v4490
    %v4617 = vpack.c.b16 %v4493, %v4492
    %v4618 = vpack.c.b16 %v4495, %v4494
    %v4619 = vpack.c.b16 %v4497, %v4496
    %v4620 = vpack.c.b16 %v4499, %v4498
    %v4621 = vpack.c.b16 %v4501, %v4500
    %v4622 = vpack.c.b16 %v4503, %v4502
    %v4623 = vpack.c.b16 %v4505, %v4504
    %v4624 = vpack.c.b16 %v4507, %v4506
    %v4625 = vpack.c.b16 %v4509, %v4508
    %v4626 = vpack.c.b16 %v4511, %v4510
    %v4627 = vpack.c.b16 %v4513, %v4512
    %v4628 = vpack.c.b16 %v4515, %v4514
    %v4629 = vpack.c.b16 %v4517, %v4516
    %v4630 = vpack.c.b16 %v4519, %v4518
    %v4631 = vpack.c.b16 %v4521, %v4520
    %v4632 = vpack.c.b16 %v4523, %v4522
    %v4633 = vpack.c.b16 %v4525, %v4524
    %v4634 = vpack.c.b16 %v4527, %v4526
    %v4635 = vpack.c.b16 %v4529, %v4528
    %v4636 = vpack.c.b16 %v4531, %v4530
    %v4637 = vpack.c.b16 %v4533, %v4532
    %v4638 = vpack.c.b16 %v4535, %v4534
    %v4639 = vpack.c.b16 %v4537, %v4536
    %v4640 = vpack.c.b16 %v4539, %v4538
    %v4641 = vpack.c.b16 %v4541, %v4540
    %v4642 = vpack.c.b16 %v4543, %v4542
    %v4643 = vpack.c.b16 %v4545, %v4544
    %v4644 = vpack.c.b16 %v4547, %v4546
    %v4645 = vpack.c.b16 %v4549, %v4548
    %v4646 = vpack.c.b16 %v4551, %v4550
    %v4647 = vpack.c.b16 %v4553, %v4552
    %v4648 = vpack.c.b16 %v4555, %v4554
    %v4649 = vpack.c.b16 %v4557, %v4556
    %v4650 = vpack.c.b16 %v4559, %v4558
    %v4651 = vpack.c.b16 %v4561, %v4560
    %v4652 = vpack.c.b16 %v4563, %v4562
    %v4653 = vpack.c.b16 %v4565, %v4564
    %v4654 = vpack.c.b16 %v4567, %v4566
    %v4655 = vpack.c.b16 %v4569, %v4568
    %v4656 = vpack.c.b16 %v4571, %v4570
    %v4657 = vpack.c.b16 %v4573, %v4572
    %v4658 = vpack.c.b16 %v4575, %v4574
    %v4659 = vpack.c.b16 %v4577, %v4576
    %v4660 = vpack.c.b16 %v4579, %v4578
    %v4661 = vpack.c.b16 %v4581, %v4580
    %v4662 = vpack.c.b16 %v4583, %v4582
    %v4663 = vpack.c.b16 %v4585, %v4584
    %v4664 = vpack.c.b16 %v4587, %v4586
    %v4665 = vpack.c.b16 %v4589, %v4588
    %v4666 = vpack.c.b16 %v4591, %v4590
    %v4667 = vpack.c.b16 %v4593, %v4592
    %v4668 = vpack.c.b16 %v4595, %v4594
    %v4669 = vpack.c.b16 %v4597, %v4596
    %v4670 = vpack.c.b16 %v4599, %v4598
    %v4671 = vpack.c.b16 %v4601, %v4600
    %v4672 = vpack.c.b16 %v4603, %v4602
    %v4673 = vpack.c.b16 %v4605, %v4604
    %v4674 = vpack.c.b16 %v4607, %v4606
    %v4675 = vpack.c.b16 %v4609, %v4608
    %v4676 = vpack.c.b16 %v4611, %v4610
    %v4677 = vpack.c.b16 %v4613, %v4612
    %4742 = vmatprep.subr.bf16.mxu0 0
    %4743 = vmatpush1.bf16.msra.mxu0 %v4614
    %4744 = vmatprep.subr.bf16.mxu0 0
    %4745 = vmatpush1.bf16.msra.mxu0 %v4615
    %4746 = vmatprep.subr.bf16.mxu0 0
    %4747 = vmatpush1.bf16.msra.mxu0 %v4616
    %4748 = vmatprep.subr.bf16.mxu0 0
    %4749 = vmatpush1.bf16.msra.mxu0 %v4617
    %4750 = vmatprep.subr.bf16.mxu0 0
    %4751 = vmatpush1.bf16.msra.mxu0 %v4618
    %4752 = vmatprep.subr.bf16.mxu0 0
    %4753 = vmatpush1.bf16.msra.mxu0 %v4619
    %4754 = vmatprep.subr.bf16.mxu0 0
    %4755 = vmatpush1.bf16.msra.mxu0 %v4620
    %4756 = vmatprep.subr.bf16.mxu0 0
    %4757 = vmatpush1.bf16.msra.mxu0 %v4621
    %4758 = vmatprep.subr.bf16.mxu0 0
    %4759 = vmatpush1.bf16.msra.mxu0 %v4622
    %4760 = vmatprep.subr.bf16.mxu0 0
    %4761 = vmatpush1.bf16.msra.mxu0 %v4623
    %4762 = vmatprep.subr.bf16.mxu0 0
    %4763 = vmatpush1.bf16.msra.mxu0 %v4624
    %4764 = vmatprep.subr.bf16.mxu0 0
    %4765 = vmatpush1.bf16.msra.mxu0 %v4625
    %4766 = vmatprep.subr.bf16.mxu0 0
    %4767 = vmatpush1.bf16.msra.mxu0 %v4626
    %4768 = vmatprep.subr.bf16.mxu0 0
    %4769 = vmatpush1.bf16.msra.mxu0 %v4627
    %4770 = vmatprep.subr.bf16.mxu0 0
    %4771 = vmatpush1.bf16.msra.mxu0 %v4628
    %4772 = vmatprep.subr.bf16.mxu0 0
    %4773 = vmatpush1.bf16.msra.mxu0 %v4629
    %4774 = vmatprep.mubr.bf16.mxu0 %v4216
    %4775 = vmatmul.mubr.bf16.gmra.mrb[0].mxu0 %v4215
    %v4776 = vpop.f32.mrb[0].mxu0
    %v4777 = vadd.f32 %v4356, %v4776
    %v4778 = vpop.f32.mrb[0].mxu0
    %v4779 = vpop.f32.mrb[0].mxu0
    %v4780 = vpop.f32.mrb[0].mxu0
    %4781 = vdwg.mxu0
    %4782 = vmatprep.subr.bf16.mxu0 0
    %4783 = vmatpush1.bf16.msra.mxu0 %v4630
    %4784 = vmatprep.subr.bf16.mxu0 0
    %4785 = vmatpush1.bf16.msra.mxu0 %v4631
    %4786 = vmatprep.subr.bf16.mxu0 0
    %4787 = vmatpush1.bf16.msra.mxu0 %v4632
    %4788 = vmatprep.subr.bf16.mxu0 0
    %4789 = vmatpush1.bf16.msra.mxu0 %v4633
    %4790 = vmatprep.subr.bf16.mxu0 0
    %4791 = vmatpush1.bf16.msra.mxu0 %v4634
    %4792 = vmatprep.subr.bf16.mxu0 0
    %4793 = vmatpush1.bf16.msra.mxu0 %v4635
    %4794 = vmatprep.subr.bf16.mxu0 0
    %4795 = vmatpush1.bf16.msra.mxu0 %v4636
    %4796 = vmatprep.subr.bf16.mxu0 0
    %4797 = vmatpush1.bf16.msra.mxu0 %v4637
    %4798 = vmatprep.subr.bf16.mxu0 0
    %4799 = vmatpush1.bf16.msra.mxu0 %v4638
    %4800 = vmatprep.subr.bf16.mxu0 0
    %4801 = vmatpush1.bf16.msra.mxu0 %v4639
    %4802 = vmatprep.subr.bf16.mxu0 0
    %4803 = vmatpush1.bf16.msra.mxu0 %v4640
    %4804 = vmatprep.subr.bf16.mxu0 0
    %4805 = vmatpush1.bf16.msra.mxu0 %v4641
    %4806 = vmatprep.subr.bf16.mxu0 0
    %4807 = vmatpush1.bf16.msra.mxu0 %v4642
    %4808 = vmatprep.subr.bf16.mxu0 0
    %4809 = vmatpush1.bf16.msra.mxu0 %v4643
    %4810 = vmatprep.subr.bf16.mxu0 0
    %4811 = vmatpush1.bf16.msra.mxu0 %v4644
    %4812 = vmatprep.subr.bf16.mxu0 0
    %4813 = vmatpush1.bf16.msra.mxu0 %v4645
    %4814 = vmatprep.mubr.bf16.mxu0 %v4218
    %4815 = vmatmul.mubr.bf16.gmra.mrb[0].mxu0 %v4217
    %v4816 = vpop.f32.mrb[0].mxu0
    %v4817 = vadd.f32 %v4777, %v4816
    %v4818 = vpop.f32.mrb[0].mxu0
    %v4819 = vpop.f32.mrb[0].mxu0
    %v4820 = vpop.f32.mrb[0].mxu0
    %4821 = vdwg.mxu0
    %4822 = vmatprep.subr.bf16.mxu0 0
    %4823 = vmatpush1.bf16.msra.mxu0 %v4646
    %4824 = vmatprep.subr.bf16.mxu0 0
    %4825 = vmatpush1.bf16.msra.mxu0 %v4647
    %4826 = vmatprep.subr.bf16.mxu0 0
    %4827 = vmatpush1.bf16.msra.mxu0 %v4648
    %4828 = vmatprep.subr.bf16.mxu0 0
    %4829 = vmatpush1.bf16.msra.mxu0 %v4649
    %4830 = vmatprep.subr.bf16.mxu0 0
    %4831 = vmatpush1.bf16.msra.mxu0 %v4650
    %4832 = vmatprep.subr.bf16.mxu0 0
    %4833 = vmatpush1.bf16.msra.mxu0 %v4651
    %4834 = vmatprep.subr.bf16.mxu0 0
    %4835 = vmatpush1.bf16.msra.mxu0 %v4652
    %4836 = vmatprep.subr.bf16.mxu0 0
    %4837 = vmatpush1.bf16.msra.mxu0 %v4653
    %4838 = vmatprep.subr.bf16.mxu0 0
    %4839 = vmatpush1.bf16.msra.mxu0 %v4654
    %4840 = vmatprep.subr.bf16.mxu0 0
    %4841 = vmatpush1.bf16.msra.mxu0 %v4655
    %4842 = vmatprep.subr.bf16.mxu0 0
    %4843 = vmatpush1.bf16.msra.mxu0 %v4656
    %4844 = vmatprep.subr.bf16.mxu0 0
    %4845 = vmatpush1.bf16.msra.mxu0 %v4657
    %4846 = vmatprep.subr.bf16.mxu0 0
    %4847 = vmatpush1.bf16.msra.mxu0 %v4658
    %4848 = vmatprep.subr.bf16.mxu0 0
    %4849 = vmatpush1.bf16.msra.mxu0 %v4659
    %4850 = vmatprep.subr.bf16.mxu0 0
    %4851 = vmatpush1.bf16.msra.mxu0 %v4660
    %4852 = vmatprep.subr.bf16.mxu0 0
    %4853 = vmatpush1.bf16.msra.mxu0 %v4661
    %4854 = vmatprep.mubr.bf16.mxu0 %v4220
    %4855 = vmatmul.mubr.bf16.gmra.mrb[0].mxu0 %v4219
    %v4856 = vpop.f32.mrb[0].mxu0
    %v4857 = vadd.f32 %v4817, %v4856
    %v4858 = vpop.f32.mrb[0].mxu0
    %v4859 = vpop.f32.mrb[0].mxu0
    %v4860 = vpop.f32.mrb[0].mxu0
    %4861 = vdwg.mxu0
    %4862 = vmatprep.subr.bf16.mxu0 0
    %4863 = vmatpush1.bf16.msra.mxu0 %v4662
    %4864 = vmatprep.subr.bf16.mxu0 0
    %4865 = vmatpush1.bf16.msra.mxu0 %v4663
    %4866 = vmatprep.subr.bf16.mxu0 0
    %4867 = vmatpush1.bf16.msra.mxu0 %v4664
    %4868 = vmatprep.subr.bf16.mxu0 0
    %4869 = vmatpush1.bf16.msra.mxu0 %v4665
    %4870 = vmatprep.subr.bf16.mxu0 0
    %4871 = vmatpush1.bf16.msra.mxu0 %v4666
    %4872 = vmatprep.subr.bf16.mxu0 0
    %4873 = vmatpush1.bf16.msra.mxu0 %v4667
    %4874 = vmatprep.subr.bf16.mxu0 0
    %4875 = vmatpush1.bf16.msra.mxu0 %v4668
    %4876 = vmatprep.subr.bf16.mxu0 0
    %4877 = vmatpush1.bf16.msra.mxu0 %v4669
    %4878 = vmatprep.subr.bf16.mxu0 0
    %4879 = vmatpush1.bf16.msra.mxu0 %v4670
    %4880 = vmatprep.subr.bf16.mxu0 0
    %4881 = vmatpush1.bf16.msra.mxu0 %v4671
    %4882 = vmatprep.subr.bf16.mxu0 0
    %4883 = vmatpush1.bf16.msra.mxu0 %v4672
    %4884 = vmatprep.subr.bf16.mxu0 0
    %4885 = vmatpush1.bf16.msra.mxu0 %v4673
    %4886 = vmatprep.subr.bf16.mxu0 0
    %4887 = vmatpush1.bf16.msra.mxu0 %v4674
    %4888 = vmatprep.subr.bf16.mxu0 0
    %4889 = vmatpush1.bf16.msra.mxu0 %v4675
    %4890 = vmatprep.subr.bf16.mxu0 0
    %4891 = vmatpush1.bf16.msra.mxu0 %v4676
    %4892 = vmatprep.subr.bf16.mxu0 0
    %4893 = vmatpush1.bf16.msra.mxu0 %v4677
    %4894 = vmatprep.mubr.bf16.mxu0 %v4222
    %4895 = vmatmul.mubr.bf16.gmra.mrb[0].mxu0 %v4221
    %v4896 = vpop.f32.mrb[0].mxu0
    %v4897 = vadd.f32 %v4857, %v4896
    %v4898 = vpop.f32.mrb[0].mxu0
    %v4899 = vpop.f32.mrb[0].mxu0
    %v4900 = vpop.f32.mrb[0].mxu0
    %4901 = vdwg.mxu0
    %4902 = vst [vmem:[#allocation14] sm:$0x3] %v4897
    // Predicated region
    $region58: #{tpu_custom_call.1} parent=1 // pred_check
      _
    $region59: #{tpu_custom_call.1} parent=1 // pred_check_branch
      %4904 = sbr.rel (0) target = $region61
    $region60: #{tpu_custom_call.1} parent=1 // pred_region
      %s4906 = ssub.s32 32, 32
      %4907 = vsyncadd [#allocation4], %s4906
      %s4909 = sshll.u32 [#allocation14], 4
      %s4910 = int_to_ptr.vmem [resolvable:$true] %s4909
      %4912 = dma.vmem_to_hbm [thread:$0]  %s4910, 32, %s7, [#allocation4]
    $region61: #{tpu_custom_call.1} parent=1 // pred_fallthru
      _
    // Predicated region
    $region62: #{tpu_custom_call.1} parent=1 // pred_check
      _
    $region63: #{tpu_custom_call.1} parent=1 // pred_check_branch
      %4914 = sbr.rel (0) target = $region65
    $region64: #{tpu_custom_call.1} parent=1 // pred_region
      %4915 = dma.done [#allocation4], 32
    $region65: #{tpu_custom_call.1} parent=1 // pred_fallthru
      _
    %4916 = vsyncpa [#allocation3], 1
    %4917 = vsyncpa [#allocation6], 1
    %4918 = vsyncpa [#allocation9], 1
    %4919 = vsyncpa [#allocation12], 1
    %4920 = vsyncpa [#allocation4], 1

</llo_original>
